<compile_context>
chip_gen: v7x
topology: tpu7x:2x2x1
jax: 0.10.0
libtpu: 0.0.40
codegen_flags: <defaults>
</compile_context>

<pallas_src>
import jax
import jax.numpy as jnp
from jax.experimental import pallas as pl
from jax.experimental.pallas import tpu as pltpu

# ----------------------------- model config ---------------------------------
NUM_LAYERS = 2        # num_encoder_layers
D_FEAT = 80           # input feature dim D
D_MODEL = 128         # d_model
FFN_DIM = 256
MEMORY_SIZE = 4
LEFT_CONTEXT = 8      # left_context_length
CHUNK = 8             # streaming chunk length T (after front-end)
CNN_KERNEL = 5        # cnn_module_kernel
VOCAB = 256           # CTC output dim
LN_EPS = 1e-5

# ----------------------------- derived sizes ---------------------------------
CTX_LEN = LEFT_CONTEXT + CHUNK + MEMORY_SIZE          # 20 attention keys
CTX_PAD = ((CTX_LEN + 7) // 8) * 8                    # 24 (sublane aligned)
STACK_ROWS = ((CHUNK + MEMORY_SIZE + 7) // 8) * 8     # 16 rows for fused QKV operand
CONV_IN_ROWS = CNN_KERNEL - 1 + CHUNK                 # 12 conv input rows
NEG_INF = -1e30


# ------------------------------- fused kernel --------------------------------
def _fused_encoder_kernel(
    # inputs
    x_ref, in_w_ref, in_b_ref, bias_ref,
    wqkv_ref, bqkv_ref, wo_ref, bo_ref, conv_w_ref,
    w1_ref, b1_ref, w2_ref, b2_ref, ln_ref, ctc_w_ref, ctc_b_ref,
    mem_ref, lk_ref, lv_ref, cc_ref,
    # outputs
    ctc_ref, mem_o_ref, lk_o_ref, lv_o_ref, cc_o_ref,
    # scratch (persists across the layer grid)
    h_ref, cat_ref, kall_ref, vall_ref, cin_ref,
):
    layer = pl.program_id(0)
    D, T, M, LC, K = D_MODEL, CHUNK, MEMORY_SIZE, LEFT_CONTEXT, CNN_KERNEL

    # ---- grid step 0: fold the (zero-padded 80->128) input projection ----
    @pl.when(layer == 0)
    def _():
        xb = x_ref[...].astype(jnp.bfloat16)
        h_ref[...] = (
            jnp.dot(xb, in_w_ref[...], preferred_element_type=jnp.float32)
            + in_b_ref[...]
        )

    h = h_ref[...]                                            # (T, D) f32

    # ---- fused Q/K/V projection of [chunk ; memory cache] (one MXU matmul) ----
    cat_ref[0:T, :] = h
    cat_ref[T:T + M, :] = mem_ref[...]
    if STACK_ROWS > T + M:
        cat_ref[T + M:, :] = jnp.zeros((STACK_ROWS - T - M, D), jnp.float32)
    qkv = (
        jnp.dot(cat_ref[...].astype(jnp.bfloat16), wqkv_ref[...],
                preferred_element_type=jnp.float32)
        + bqkv_ref[...]
    )                                                         # (STACK_ROWS, 3D)
    q = qkv[0:T, 0:D]
    k_cur = qkv[0:T, D:2 * D]
    v_cur = qkv[0:T, 2 * D:3 * D]
    mem_k = qkv[T:T + M, D:2 * D]
    mem_v = qkv[T:T + M, 2 * D:3 * D]

    # ---- attention over [left cache | current chunk | memory | pad] ----
    kall_ref[0:LC, :] = lk_ref[...]
    kall_ref[LC:LC + T, :] = k_cur
    kall_ref[LC + T:CTX_LEN, :] = mem_k
    vall_ref[0:LC, :] = lv_ref[...]
    vall_ref[LC:LC + T, :] = v_cur
    vall_ref[LC + T:CTX_LEN, :] = mem_v
    if CTX_PAD > CTX_LEN:
        kall_ref[CTX_LEN:, :] = jnp.zeros((CTX_PAD - CTX_LEN, D), jnp.float32)
        vall_ref[CTX_LEN:, :] = jnp.zeros((CTX_PAD - CTX_LEN, D), jnp.float32)

    scale = 1.0 / (D ** 0.5)
    s = jax.lax.dot_general(
        q.astype(jnp.bfloat16), kall_ref[...].astype(jnp.bfloat16),
        (((1,), (1,)), ((), ())), preferred_element_type=jnp.float32,
    ) * scale                                                 # (T, CTX_PAD)
    s = s + bias_ref[...]       # 0 = attend, -1e30 = pad / not-yet-valid memory slot
    m_row = jnp.max(s, axis=-1, keepdims=True)
    p = jnp.exp(s - m_row)
    denom = jnp.sum(p, axis=-1, keepdims=True)
    att = jnp.dot(p.astype(jnp.bfloat16), vall_ref[...].astype(jnp.bfloat16),
                  preferred_element_type=jnp.float32)
    att = att * pl.reciprocal(denom, approx=True)             # EUP slot divide
    att = (
        jnp.dot(att.astype(jnp.bfloat16), wo_ref[...],
                preferred_element_type=jnp.float32)
        + bo_ref[...]
    )

    ln = ln_ref[...]                                          # rows: g1,b1,g2,b2,g3,b3

    def _layer_norm(x, g, b):
        mu = jnp.mean(x, axis=-1, keepdims=True)
        xc = x - mu
        var = jnp.mean(xc * xc, axis=-1, keepdims=True)
        return xc * jax.lax.rsqrt(var + LN_EPS) * g + b

    h1 = _layer_norm(att + h, ln[0:1, :], ln[1:2, :])

    # ---- depthwise causal conv module, (time, channel) layout (lane dense) ----
    cin_ref[0:K - 1, :] = cc_ref[...]
    cin_ref[K - 1:, :] = h1
    w = conv_w_ref[...]                                       # (K, D)
    acc = cin_ref[0:T, :] * w[0:1, :]
    for j in range(1, K):
        acc = acc + cin_ref[j:j + T, :] * w[j:j + 1, :]
    h2 = _layer_norm(acc + h1, ln[2:3, :], ln[3:4, :])

    # ---- feed forward ----
    ff = (
        jnp.dot(h2.astype(jnp.bfloat16), w1_ref[...],
                preferred_element_type=jnp.float32)
        + b1_ref[...]
    )
    ff = jnp.maximum(ff, 0.0)
    ff = (
        jnp.dot(ff.astype(jnp.bfloat16), w2_ref[...],
                preferred_element_type=jnp.float32)
        + b2_ref[...]
    )
    h_out = _layer_norm(ff + h2, ln[4:5, :], ln[5:6, :])
    h_ref[...] = h_out                                        # carried to next layer

    # ---- streaming cache updates, written straight to the (aliased) outputs ----
    summary = jnp.mean(h_out, axis=0, keepdims=True)          # chunk summary vector
    if M > 1:
        mem_o_ref[0:M - 1, :] = mem_ref[1:M, :]
    mem_o_ref[M - 1:M, :] = summary
    if T >= LC:
        lk_o_ref[...] = k_cur[T - LC:, :]
        lv_o_ref[...] = v_cur[T - LC:, :]
    else:
        keep = LC - T
        lk_o_ref[0:keep, :] = lk_ref[T:, :]
        lk_o_ref[keep:, :] = k_cur
        lv_o_ref[0:keep, :] = lv_ref[T:, :]
        lv_o_ref[keep:, :] = v_cur
    cc_o_ref[...] = cin_ref[T:, :]                            # last K-1 conv-input rows

    # ---- last grid step: fused CTC projection + log_softmax ----
    @pl.when(layer == pl.num_programs(0) - 1)
    def _():
        logits = (
            jnp.dot(h_out.astype(jnp.bfloat16), ctc_w_ref[...],
                    preferred_element_type=jnp.float32)
            + ctc_b_ref[...]
        )
        z = logits - jnp.max(logits, axis=-1, keepdims=True)
        lse = jnp.log(jnp.sum(jnp.exp(z), axis=-1, keepdims=True))
        ctc_ref[...] = z - lse


# ----------------------------- pallas_call builder ----------------------------
def _build_fused_encoder():
    D, T, L = D_MODEL, CHUNK, NUM_LAYERS

    def shared(shape2d):                       # resident across all layers
        return pl.BlockSpec(shape2d, lambda l: (0, 0))

    def per_layer(shape2d):                    # layer-stacked, leading axis squeezed
        return pl.BlockSpec((None,) + shape2d, lambda l: (l, 0, 0))

    in_specs = [
        shared((T, D)),                      # 0  x (features zero-padded to D)
        shared((D, D)),                      # 1  in_w
        shared((1, D)),                      # 2  in_b
        shared((1, CTX_PAD)),                # 3  attention bias / memory-validity mask
        per_layer((D, 3 * D)),               # 4  wqkv
        per_layer((1, 3 * D)),               # 5  bqkv
        per_layer((D, D)),                   # 6  wo
        per_layer((1, D)),                   # 7  bo
        per_layer((CNN_KERNEL, D)),          # 8  conv_w in (K, C) layout
        per_layer((D, FFN_DIM)),             # 9  ffn_w1
        per_layer((1, FFN_DIM)),             # 10 ffn_b1
        per_layer((FFN_DIM, D)),             # 11 ffn_w2
        per_layer((1, D)),                   # 12 ffn_b2
        per_layer((8, D)),                   # 13 packed layernorm params
        shared((D, VOCAB)),                  # 14 ctc_w
        shared((1, VOCAB)),                  # 15 ctc_b
        per_layer((MEMORY_SIZE, D)),         # 16 memory cache      (aliased -> out 1)
        per_layer((LEFT_CONTEXT, D)),        # 17 left key cache    (aliased -> out 2)
        per_layer((LEFT_CONTEXT, D)),        # 18 left value cache  (aliased -> out 3)
        per_layer((CNN_KERNEL - 1, D)),      # 19 conv cache (T,C)  (aliased -> out 4)
    ]
    out_specs = (
        shared((T, VOCAB)),
        per_layer((MEMORY_SIZE, D)),
        per_layer((LEFT_CONTEXT, D)),
        per_layer((LEFT_CONTEXT, D)),
        per_layer((CNN_KERNEL - 1, D)),
    )
    out_shape = (
        jax.ShapeDtypeStruct((T, VOCAB), jnp.float32),
        jax.ShapeDtypeStruct((L, MEMORY_SIZE, D), jnp.float32),
        jax.ShapeDtypeStruct((L, LEFT_CONTEXT, D), jnp.float32),
        jax.ShapeDtypeStruct((L, LEFT_CONTEXT, D), jnp.float32),
        jax.ShapeDtypeStruct((L, CNN_KERNEL - 1, D), jnp.float32),
    )
    scratch_shapes = [
        pltpu.VMEM((T, D), jnp.float32),              # h, carried across layers
        pltpu.VMEM((STACK_ROWS, D), jnp.float32),     # [chunk ; memory] QKV operand
        pltpu.VMEM((CTX_PAD, D), jnp.float32),        # K context
        pltpu.VMEM((CTX_PAD, D), jnp.float32),        # V context
        pltpu.VMEM((CONV_IN_ROWS, D), jnp.float32),   # conv input
    ]
    return pl.pallas_call(
        _fused_encoder_kernel,
        grid_spec=pltpu.PrefetchScalarGridSpec(
            num_scalar_prefetch=0,
            grid=(L,),
            in_specs=in_specs,
            out_specs=out_specs,
            scratch_shapes=scratch_shapes,
        ),
        out_shape=out_shape,
        # streaming caches update in place (no per-chunk HBM re-allocation)
        input_output_aliases={16: 1, 17: 2, 18: 3, 19: 4},
        compiler_params=pltpu.CompilerParams(
            dimension_semantics=("arbitrary",),   # layers are sequential (h in VMEM scratch)
        ),
    )


_FUSED_ENCODER = _build_fused_encoder()


# ----------------------------- parameters ------------------------------------
def init_params(key):
    def nrm(k, shape, scale=0.02, dtype=jnp.float32):
        return (jax.random.normal(k, shape, jnp.float32) * scale).astype(dtype)

    keys = jax.random.split(key, 8)
    in_w = jnp.zeros((D_MODEL, D_MODEL), jnp.float32)
    in_w = in_w.at[:D_FEAT, :].set(nrm(keys[0], (D_FEAT, D_MODEL)))
    ln = jnp.zeros((NUM_LAYERS, 8, D_MODEL), jnp.float32)
    ln = ln.at[:, jnp.array([0, 2, 4]), :].set(1.0)   # gammas = 1, betas = 0
    return {
        "in_w": in_w.astype(jnp.bfloat16),
        "in_b": jnp.zeros((1, D_MODEL), jnp.float32),
        "ctc_w": nrm(keys[1], (D_MODEL, VOCAB), dtype=jnp.bfloat16),
        "ctc_b": jnp.zeros((1, VOCAB), jnp.float32),
        "wqkv": nrm(keys[2], (NUM_LAYERS, D_MODEL, 3 * D_MODEL), dtype=jnp.bfloat16),
        "bqkv": jnp.zeros((NUM_LAYERS, 1, 3 * D_MODEL), jnp.float32),
        "wo": nrm(keys[3], (NUM_LAYERS, D_MODEL, D_MODEL), dtype=jnp.bfloat16),
        "bo": jnp.zeros((NUM_LAYERS, 1, D_MODEL), jnp.float32),
        "conv_w": nrm(keys[4], (NUM_LAYERS, CNN_KERNEL, D_MODEL), scale=0.1),
        "ffn_w1": nrm(keys[5], (NUM_LAYERS, D_MODEL, FFN_DIM), dtype=jnp.bfloat16),
        "ffn_b1": jnp.zeros((NUM_LAYERS, 1, FFN_DIM), jnp.float32),
        "ffn_w2": nrm(keys[6], (NUM_LAYERS, FFN_DIM, D_MODEL), dtype=jnp.bfloat16),
        "ffn_b2": jnp.zeros((NUM_LAYERS, 1, D_MODEL), jnp.float32),
        "ln": ln,
    }


# ------------------------------ forward pass ----------------------------------
def encoder_ctc_forward(params, x, x_lens, num_processed_frames,
                        memory_caches, left_key_caches, left_val_caches, conv_caches):
    """Mirrors EncoderCtc.forward: returns
    (ctc_log_probs, output_lengths, out_memory_caches,
     out_left_key_caches, out_left_val_caches, output_conv_caches)."""
    b, t, d_feat = x.shape
    assert b == 1, "streaming caches carry no batch dim; B must be 1"
    assert t == CHUNK and d_feat == D_FEAT
    # TODO(synk): at B=1 the second TensorCore on v7x is idle; batching multiple streams
    # over a leading "parallel" grid axis is the way to use it.

    # lane-dense input: zero-pad 80 -> 128 features (in_w rows >= 80 are zero)
    x_pad = jnp.pad(x[0].astype(jnp.float32), ((0, 0), (0, D_MODEL - D_FEAT)))

    # num_processed_frames-dependent memory-validity mask, built once host-side as an
    # additive bias row over the padded key axis [left | chunk | memory | pad].
    n_valid = jnp.minimum(num_processed_frames[0] // CHUNK, MEMORY_SIZE).astype(jnp.int32)
    col = jnp.arange(CTX_PAD, dtype=jnp.int32)
    mem_start = LEFT_CONTEXT + CHUNK
    is_mem = (col >= mem_start) & (col < mem_start + MEMORY_SIZE)
    invalid_mem = is_mem & ((col - mem_start) < MEMORY_SIZE - n_valid)
    is_pad = col >= mem_start + MEMORY_SIZE
    attn_bias = jnp.where(invalid_mem | is_pad, NEG_INF, 0.0).astype(jnp.float32)[None, :]

    # conv cache crosses the kernel boundary in lane-dense (time, channel) layout
    conv_caches_tc = jnp.transpose(conv_caches, (0, 2, 1))

    ctc, out_mem, out_lk, out_lv, out_cc_tc = _FUSED_ENCODER(
        x_pad, params["in_w"], params["in_b"], attn_bias,
        params["wqkv"], params["bqkv"], params["wo"], params["bo"], params["conv_w"],
        params["ffn_w1"], params["ffn_b1"], params["ffn_w2"], params["ffn_b2"],
        params["ln"], params["ctc_w"], params["ctc_b"],
        memory_caches, left_key_caches, left_val_caches, conv_caches_tc)

    ctc_log_probs = ctc[None]                       # (1, T, VOCAB)
    output_lengths = x_lens
    out_conv_caches = jnp.transpose(out_cc_tc, (0, 2, 1))
    return (ctc_log_probs, output_lengths, out_mem, out_lk, out_lv, out_conv_caches)


# --------------------------------- main ---------------------------------------
if __name__ == "__main__":
    key = jax.random.PRNGKey(0)
    k_x, k_mem, k_lk, k_lv, k_cc = jax.random.split(key, 5)

    x = jax.random.normal(k_x, (1, CHUNK, D_FEAT), jnp.float32)
    x_lens = jnp.array([CHUNK], jnp.int32)
    num_processed_frames = jnp.array([0], jnp.int32)
    memory_caches = jax.random.normal(k_mem, (NUM_LAYERS, MEMORY_SIZE, D_MODEL), jnp.float32) * 0.1
    left_key_caches = jax.random.normal(k_lk, (NUM_LAYERS, LEFT_CONTEXT, D_MODEL), jnp.float32) * 0.1
    left_val_caches = jax.random.normal(k_lv, (NUM_LAYERS, LEFT_CONTEXT, D_MODEL), jnp.float32) * 0.1
    conv_caches = jax.random.normal(k_cc, (NUM_LAYERS, D_MODEL, CNN_KERNEL - 1), jnp.float32) * 0.1

    params = init_params(jax.random.PRNGKey(42))

    fwd = jax.jit(encoder_ctc_forward)
    outs = fwd(params, x, x_lens, num_processed_frames,
               memory_caches, left_key_caches, left_val_caches, conv_caches)
    outs = jax.block_until_ready(outs)

    (ctc_log_probs, output_lengths, out_mem, out_lk, out_lv, out_cc) = outs
    assert ctc_log_probs.shape == (1, CHUNK, VOCAB)
    assert out_mem.shape == (NUM_LAYERS, MEMORY_SIZE, D_MODEL)
    assert out_lk.shape == (NUM_LAYERS, LEFT_CONTEXT, D_MODEL)
    assert out_lv.shape == (NUM_LAYERS, LEFT_CONTEXT, D_MODEL)
    assert out_cc.shape == (NUM_LAYERS, D_MODEL, CNN_KERNEL - 1)
    assert bool(jnp.all(jnp.isfinite(ctc_log_probs)))
    # log_softmax rows must sum to ~1 in prob space
    assert jnp.allclose(jnp.sum(jnp.exp(ctc_log_probs), axis=-1), 1.0, atol=1e-3)
    print("KERNEL_OK")
</pallas_src>

<mosaic_0001>
module attributes {stable_mosaic.version = 11 : i64} {
  func.func @_fused_encoder_kernel(%arg0: i32, %arg1: memref<8x128xf32, #tpu.memory_space<vmem>>, %arg2: memref<128x128xbf16, #tpu.memory_space<vmem>>, %arg3: memref<1x128xf32, #tpu.memory_space<vmem>>, %arg4: memref<1x24xf32, #tpu.memory_space<vmem>>, %arg5: memref<1x128x384xbf16, #tpu.memory_space<vmem>>, %arg6: memref<1x1x384xf32, #tpu.memory_space<vmem>>, %arg7: memref<1x128x128xbf16, #tpu.memory_space<vmem>>, %arg8: memref<1x1x128xf32, #tpu.memory_space<vmem>>, %arg9: memref<1x5x128xf32, #tpu.memory_space<vmem>>, %arg10: memref<1x128x256xbf16, #tpu.memory_space<vmem>>, %arg11: memref<1x1x256xf32, #tpu.memory_space<vmem>>, %arg12: memref<1x256x128xbf16, #tpu.memory_space<vmem>>, %arg13: memref<1x1x128xf32, #tpu.memory_space<vmem>>, %arg14: memref<1x8x128xf32, #tpu.memory_space<vmem>>, %arg15: memref<128x256xbf16, #tpu.memory_space<vmem>>, %arg16: memref<1x256xf32, #tpu.memory_space<vmem>>, %arg17: memref<1x4x128xf32, #tpu.memory_space<vmem>>, %arg18: memref<1x8x128xf32, #tpu.memory_space<vmem>>, %arg19: memref<1x8x128xf32, #tpu.memory_space<vmem>>, %arg20: memref<1x4x128xf32, #tpu.memory_space<vmem>>, %arg21: memref<8x256xf32, #tpu.memory_space<vmem>>, %arg22: memref<1x4x128xf32, #tpu.memory_space<vmem>>, %arg23: memref<1x8x128xf32, #tpu.memory_space<vmem>>, %arg24: memref<1x8x128xf32, #tpu.memory_space<vmem>>, %arg25: memref<1x4x128xf32, #tpu.memory_space<vmem>>, %arg26: memref<8x128xf32, #tpu.memory_space<vmem>>, %arg27: memref<16x128xf32, #tpu.memory_space<vmem>>, %arg28: memref<24x128xf32, #tpu.memory_space<vmem>>, %arg29: memref<24x128xf32, #tpu.memory_space<vmem>>, %arg30: memref<12x128xf32, #tpu.memory_space<vmem>>) attributes {dimension_semantics = [#tpu.dimension_semantics<arbitrary>], iteration_bounds = array<i64: 2>, scalar_prefetch = 0 : i64, scratch_operands = 5 : i64, tpu.core_type = #tpu.core_type<tc>, window_params = [{pipeline_mode = #tpu.pipeline_mode<synchronous>, transform_indices = @transform_0, window_bounds = array<i64: 8, 128>}, {pipeline_mode = #tpu.pipeline_mode<synchronous>, transform_indices = @transform_1, window_bounds = array<i64: 128, 128>}, {pipeline_mode = #tpu.pipeline_mode<synchronous>, transform_indices = @transform_2, window_bounds = array<i64: 1, 128>}, {pipeline_mode = #tpu.pipeline_mode<synchronous>, transform_indices = @transform_3, window_bounds = array<i64: 1, 24>}, {transform_indices = @transform_4, window_bounds = array<i64: 1, 128, 384>}, {transform_indices = @transform_5, window_bounds = array<i64: 1, 1, 384>}, {transform_indices = @transform_6, window_bounds = array<i64: 1, 128, 128>}, {transform_indices = @transform_7, window_bounds = array<i64: 1, 1, 128>}, {transform_indices = @transform_8, window_bounds = array<i64: 1, 5, 128>}, {transform_indices = @transform_9, window_bounds = array<i64: 1, 128, 256>}, {transform_indices = @transform_10, window_bounds = array<i64: 1, 1, 256>}, {transform_indices = @transform_11, window_bounds = array<i64: 1, 256, 128>}, {transform_indices = @transform_12, window_bounds = array<i64: 1, 1, 128>}, {transform_indices = @transform_13, window_bounds = array<i64: 1, 8, 128>}, {pipeline_mode = #tpu.pipeline_mode<synchronous>, transform_indices = @transform_14, window_bounds = array<i64: 128, 256>}, {pipeline_mode = #tpu.pipeline_mode<synchronous>, transform_indices = @transform_15, window_bounds = array<i64: 1, 256>}, {transform_indices = @transform_16, window_bounds = array<i64: 1, 4, 128>}, {transform_indices = @transform_17, window_bounds = array<i64: 1, 8, 128>}, {transform_indices = @transform_18, window_bounds = array<i64: 1, 8, 128>}, {transform_indices = @transform_19, window_bounds = array<i64: 1, 4, 128>}, {pipeline_mode = #tpu.pipeline_mode<synchronous>, transform_indices = @transform_20, window_bounds = array<i64: 8, 256>}, {transform_indices = @transform_21, window_bounds = array<i64: 1, 4, 128>}, {transform_indices = @transform_22, window_bounds = array<i64: 1, 8, 128>}, {transform_indices = @transform_23, window_bounds = array<i64: 1, 8, 128>}, {transform_indices = @transform_24, window_bounds = array<i64: 1, 4, 128>}]} {
    %c0_i32 = arith.constant 0 : i32
    %0 = arith.cmpi eq, %arg0, %c0_i32 : i32
    %1 = arith.extui %0 : i1 to i32
    %c0_i32_0 = arith.constant 0 : i32
    %2 = arith.cmpi ne, %1, %c0_i32_0 : i32
    scf.if %2 {
      %c0_132 = arith.constant 0 : index
      %c0_133 = arith.constant 0 : index
      %214 = vector.load %arg1[%c0_132, %c0_133] : memref<8x128xf32, #tpu.memory_space<vmem>>, vector<8x128xf32>
      %215 = arith.truncf %214 : vector<8x128xf32> to vector<8x128xbf16>
      %c0_134 = arith.constant 0 : index
      %c0_135 = arith.constant 0 : index
      %216 = vector.load %arg2[%c0_134, %c0_135] : memref<128x128xbf16, #tpu.memory_space<vmem>>, vector<128x128xbf16>
      %cst_136 = arith.constant dense<0.000000e+00> : vector<8x128xf32>
      %217 = tpu.matmul %215, %216, %cst_136 {dimension_numbers = #tpu.dot_dimension_numbers<[1], [0], [0], [1], [0, 0, 1, 1], [], []>} : vector<8x128xbf16>, vector<128x128xbf16>, vector<8x128xf32> -> vector<8x128xf32>
      %c0_137 = arith.constant 0 : index
      %c0_138 = arith.constant 0 : index
      %218 = vector.load %arg3[%c0_137, %c0_138] : memref<1x128xf32, #tpu.memory_space<vmem>>, vector<1x128xf32>
      %219 = vector.broadcast %218 : vector<1x128xf32> to vector<8x128xf32>
      %220 = arith.addf %217, %219 : vector<8x128xf32>
      %c0_139 = arith.constant 0 : index
      %c0_140 = arith.constant 0 : index
      %221 = vector.load %arg26[%c0_139, %c0_140] : memref<8x128xf32, #tpu.memory_space<vmem>>, vector<8x128xf32>
      tpu.vector_store %arg26[%c0_139, %c0_140], %220 {strides = array<i32>} : memref<8x128xf32, #tpu.memory_space<vmem>>, vector<8x128xf32>,
    } else {
    }
    %c0 = arith.constant 0 : index
    %c0_1 = arith.constant 0 : index
    %3 = vector.load %arg26[%c0, %c0_1] : memref<8x128xf32, #tpu.memory_space<vmem>>, vector<8x128xf32>
    %c0_2 = arith.constant 0 : index
    %c0_3 = arith.constant 0 : index
    %4 = vector.load %arg27[%c0_2, %c0_3] : memref<16x128xf32, #tpu.memory_space<vmem>>, vector<8x128xf32>
    tpu.vector_store %arg27[%c0_2, %c0_3], %3 {strides = array<i32>} : memref<16x128xf32, #tpu.memory_space<vmem>>, vector<8x128xf32>,
    %c0_4 = arith.constant 0 : index
    %c0_5 = arith.constant 0 : index
    %c0_6 = arith.constant 0 : index
    %5 = vector.load %arg17[%c0_4, %c0_5, %c0_6] : memref<1x4x128xf32, #tpu.memory_space<vmem>>, vector<1x4x128xf32>
    %6 = vector.shape_cast %5 : vector<1x4x128xf32> to vector<4x128xf32>
    %c8 = arith.constant 8 : index
    %c0_7 = arith.constant 0 : index
    %7 = vector.load %arg27[%c8, %c0_7] : memref<16x128xf32, #tpu.memory_space<vmem>>, vector<4x128xf32>
    tpu.vector_store %arg27[%c8, %c0_7], %6 {strides = array<i32>} : memref<16x128xf32, #tpu.memory_space<vmem>>, vector<4x128xf32>,
    %cst = arith.constant 0.000000e+00 : f32
    %8 = vector.broadcast %cst : f32 to vector<4x128xf32>
    %c12 = arith.constant 12 : index
    %c0_8 = arith.constant 0 : index
    %9 = vector.load %arg27[%c12, %c0_8] : memref<16x128xf32, #tpu.memory_space<vmem>>, vector<4x128xf32>
    tpu.vector_store %arg27[%c12, %c0_8], %8 {strides = array<i32>} : memref<16x128xf32, #tpu.memory_space<vmem>>, vector<4x128xf32>,
    %c0_9 = arith.constant 0 : index
    %c0_10 = arith.constant 0 : index
    %10 = vector.load %arg27[%c0_9, %c0_10] : memref<16x128xf32, #tpu.memory_space<vmem>>, vector<16x128xf32>
    %11 = arith.truncf %10 : vector<16x128xf32> to vector<16x128xbf16>
    %c0_11 = arith.constant 0 : index
    %c0_12 = arith.constant 0 : index
    %c0_13 = arith.constant 0 : index
    %12 = vector.load %arg5[%c0_11, %c0_12, %c0_13] : memref<1x128x384xbf16, #tpu.memory_space<vmem>>, vector<1x128x384xbf16>
    %13 = vector.shape_cast %12 : vector<1x128x384xbf16> to vector<128x384xbf16>
    %cst_14 = arith.constant dense<0.000000e+00> : vector<16x384xf32>
    %14 = tpu.matmul %11, %13, %cst_14 {dimension_numbers = #tpu.dot_dimension_numbers<[1], [0], [0], [1], [0, 0, 1, 1], [], []>} : vector<16x128xbf16>, vector<128x384xbf16>, vector<16x384xf32> -> vector<16x384xf32>
    %c0_15 = arith.constant 0 : index
    %c0_16 = arith.constant 0 : index
    %c0_17 = arith.constant 0 : index
    %15 = vector.load %arg6[%c0_15, %c0_16, %c0_17] : memref<1x1x384xf32, #tpu.memory_space<vmem>>, vector<1x1x384xf32>
    %16 = vector.shape_cast %15 : vector<1x1x384xf32> to vector<1x384xf32>
    %17 = vector.broadcast %16 : vector<1x384xf32> to vector<16x384xf32>
    %18 = arith.addf %14, %17 : vector<16x384xf32>
    %19 = vector.extract_strided_slice %18 {offsets = [0, 0], sizes = [8, 128], strides = [1, 1]} : vector<16x384xf32> to vector<8x128xf32>
    %20 = vector.extract_strided_slice %18 {offsets = [0, 128], sizes = [8, 128], strides = [1, 1]} : vector<16x384xf32> to vector<8x128xf32>
    %21 = vector.extract_strided_slice %18 {offsets = [0, 256], sizes = [8, 128], strides = [1, 1]} : vector<16x384xf32> to vector<8x128xf32>
    %22 = vector.extract_strided_slice %18 {offsets = [8, 128], sizes = [4, 128], strides = [1, 1]} : vector<16x384xf32> to vector<4x128xf32>
    %23 = vector.extract_strided_slice %18 {offsets = [8, 256], sizes = [4, 128], strides = [1, 1]} : vector<16x384xf32> to vector<4x128xf32>
    %c0_18 = arith.constant 0 : index
    %c0_19 = arith.constant 0 : index
    %c0_20 = arith.constant 0 : index
    %24 = vector.load %arg18[%c0_18, %c0_19, %c0_20] : memref<1x8x128xf32, #tpu.memory_space<vmem>>, vector<1x8x128xf32>
    %25 = vector.shape_cast %24 : vector<1x8x128xf32> to vector<8x128xf32>
    %c0_21 = arith.constant 0 : index
    %c0_22 = arith.constant 0 : index
    %26 = vector.load %arg28[%c0_21, %c0_22] : memref<24x128xf32, #tpu.memory_space<vmem>>, vector<8x128xf32>
    tpu.vector_store %arg28[%c0_21, %c0_22], %25 {strides = array<i32>} : memref<24x128xf32, #tpu.memory_space<vmem>>, vector<8x128xf32>,
    %c8_23 = arith.constant 8 : index
    %c0_24 = arith.constant 0 : index
    %27 = vector.load %arg28[%c8_23, %c0_24] : memref<24x128xf32, #tpu.memory_space<vmem>>, vector<8x128xf32>
    tpu.vector_store %arg28[%c8_23, %c0_24], %20 {strides = array<i32>} : memref<24x128xf32, #tpu.memory_space<vmem>>, vector<8x128xf32>,
    %c16 = arith.constant 16 : index
    %c0_25 = arith.constant 0 : index
    %28 = vector.load %arg28[%c16, %c0_25] : memref<24x128xf32, #tpu.memory_space<vmem>>, vector<4x128xf32>
    tpu.vector_store %arg28[%c16, %c0_25], %22 {strides = array<i32>} : memref<24x128xf32, #tpu.memory_space<vmem>>, vector<4x128xf32>,
    %c0_26 = arith.constant 0 : index
    %c0_27 = arith.constant 0 : index
    %c0_28 = arith.constant 0 : index
    %29 = vector.load %arg19[%c0_26, %c0_27, %c0_28] : memref<1x8x128xf32, #tpu.memory_space<vmem>>, vector<1x8x128xf32>
    %30 = vector.shape_cast %29 : vector<1x8x128xf32> to vector<8x128xf32>
    %c0_29 = arith.constant 0 : index
    %c0_30 = arith.constant 0 : index
    %31 = vector.load %arg29[%c0_29, %c0_30] : memref<24x128xf32, #tpu.memory_space<vmem>>, vector<8x128xf32>
    tpu.vector_store %arg29[%c0_29, %c0_30], %30 {strides = array<i32>} : memref<24x128xf32, #tpu.memory_space<vmem>>, vector<8x128xf32>,
    %c8_31 = arith.constant 8 : index
    %c0_32 = arith.constant 0 : index
    %32 = vector.load %arg29[%c8_31, %c0_32] : memref<24x128xf32, #tpu.memory_space<vmem>>, vector<8x128xf32>
    tpu.vector_store %arg29[%c8_31, %c0_32], %21 {strides = array<i32>} : memref<24x128xf32, #tpu.memory_space<vmem>>, vector<8x128xf32>,
    %c16_33 = arith.constant 16 : index
    %c0_34 = arith.constant 0 : index
    %33 = vector.load %arg29[%c16_33, %c0_34] : memref<24x128xf32, #tpu.memory_space<vmem>>, vector<4x128xf32>
    tpu.vector_store %arg29[%c16_33, %c0_34], %23 {strides = array<i32>} : memref<24x128xf32, #tpu.memory_space<vmem>>, vector<4x128xf32>,
    %cst_35 = arith.constant 0.000000e+00 : f32
    %34 = vector.broadcast %cst_35 : f32 to vector<4x128xf32>
    %c20 = arith.constant 20 : index
    %c0_36 = arith.constant 0 : index
    %35 = vector.load %arg28[%c20, %c0_36] : memref<24x128xf32, #tpu.memory_space<vmem>>, vector<4x128xf32>
    tpu.vector_store %arg28[%c20, %c0_36], %34 {strides = array<i32>} : memref<24x128xf32, #tpu.memory_space<vmem>>, vector<4x128xf32>,
    %cst_37 = arith.constant 0.000000e+00 : f32
    %36 = vector.broadcast %cst_37 : f32 to vector<4x128xf32>
    %c20_38 = arith.constant 20 : index
    %c0_39 = arith.constant 0 : index
    %37 = vector.load %arg29[%c20_38, %c0_39] : memref<24x128xf32, #tpu.memory_space<vmem>>, vector<4x128xf32>
    tpu.vector_store %arg29[%c20_38, %c0_39], %36 {strides = array<i32>} : memref<24x128xf32, #tpu.memory_space<vmem>>, vector<4x128xf32>,
    %38 = arith.truncf %19 : vector<8x128xf32> to vector<8x128xbf16>
    %c0_40 = arith.constant 0 : index
    %c0_41 = arith.constant 0 : index
    %39 = vector.load %arg28[%c0_40, %c0_41] : memref<24x128xf32, #tpu.memory_space<vmem>>, vector<24x128xf32>
    %40 = arith.truncf %39 : vector<24x128xf32> to vector<24x128xbf16>
    %cst_42 = arith.constant dense<0.000000e+00> : vector<8x24xf32>
    %41 = tpu.matmul %38, %40, %cst_42 {dimension_numbers = #tpu.dot_dimension_numbers<[1], [1], [0], [0], [0, 0, 1, 0], [], []>} : vector<8x128xbf16>, vector<24x128xbf16>, vector<8x24xf32> -> vector<8x24xf32>
    %cst_43 = arith.constant 0.0883883461 : f32
    %42 = vector.broadcast %cst_43 : f32 to vector<8x24xf32>
    %43 = arith.mulf %41, %42 : vector<8x24xf32>
    %c0_44 = arith.constant 0 : index
    %c0_45 = arith.constant 0 : index
    %44 = vector.load %arg4[%c0_44, %c0_45] : memref<1x24xf32, #tpu.memory_space<vmem>>, vector<1x24xf32>
    %45 = vector.broadcast %44 : vector<1x24xf32> to vector<8x24xf32>
    %46 = arith.addf %43, %45 : vector<8x24xf32>
    %cst_46 = arith.constant dense<0xFF800000> : vector<8xf32>
    %47 = vector.multi_reduction <maximumf>, %46, %cst_46 [1] : vector<8x24xf32> to vector<8xf32>
    %48 = vector.shape_cast %47 : vector<8xf32> to vector<8x1xf32>
    %49 = vector.broadcast %48 : vector<8x1xf32> to vector<8x24xf32>
    %50 = arith.subf %46, %49 : vector<8x24xf32>
    %51 = math.exp %50 : vector<8x24xf32>
    %cst_47 = arith.constant dense<0.000000e+00> : vector<8xf32>
    %52 = vector.multi_reduction <add>, %51, %cst_47 [1] : vector<8x24xf32> to vector<8xf32>
    %53 = vector.shape_cast %52 : vector<8xf32> to vector<8x1xf32>
    %54 = arith.truncf %51 : vector<8x24xf32> to vector<8x24xbf16>
    %c0_48 = arith.constant 0 : index
    %c0_49 = arith.constant 0 : index
    %55 = vector.load %arg29[%c0_48, %c0_49] : memref<24x128xf32, #tpu.memory_space<vmem>>, vector<24x128xf32>
    %56 = arith.truncf %55 : vector<24x128xf32> to vector<24x128xbf16>
    %cst_50 = arith.constant dense<0.000000e+00> : vector<8x128xf32>
    %57 = tpu.matmul %54, %56, %cst_50 {dimension_numbers = #tpu.dot_dimension_numbers<[1], [0], [0], [1], [0, 0, 1, 1], [], []>} : vector<8x24xbf16>, vector<24x128xbf16>, vector<8x128xf32> -> vector<8x128xf32>
    %58 = tpu.reciprocal %53 {approx = true} : vector<8x1xf32> -> vector<8x1xf32>
    %59 = vector.broadcast %58 : vector<8x1xf32> to vector<8x128xf32>
    %60 = arith.mulf %57, %59 : vector<8x128xf32>
    %61 = arith.truncf %60 : vector<8x128xf32> to vector<8x128xbf16>
    %c0_51 = arith.constant 0 : index
    %c0_52 = arith.constant 0 : index
    %c0_53 = arith.constant 0 : index
    %62 = vector.load %arg7[%c0_51, %c0_52, %c0_53] : memref<1x128x128xbf16, #tpu.memory_space<vmem>>, vector<1x128x128xbf16>
    %63 = vector.shape_cast %62 : vector<1x128x128xbf16> to vector<128x128xbf16>
    %cst_54 = arith.constant dense<0.000000e+00> : vector<8x128xf32>
    %64 = tpu.matmul %61, %63, %cst_54 {dimension_numbers = #tpu.dot_dimension_numbers<[1], [0], [0], [1], [0, 0, 1, 1], [], []>} : vector<8x128xbf16>, vector<128x128xbf16>, vector<8x128xf32> -> vector<8x128xf32>
    %c0_55 = arith.constant 0 : index
    %c0_56 = arith.constant 0 : index
    %c0_57 = arith.constant 0 : index
    %65 = vector.load %arg8[%c0_55, %c0_56, %c0_57] : memref<1x1x128xf32, #tpu.memory_space<vmem>>, vector<1x1x128xf32>
    %66 = vector.shape_cast %65 : vector<1x1x128xf32> to vector<1x128xf32>
    %67 = vector.broadcast %66 : vector<1x128xf32> to vector<8x128xf32>
    %68 = arith.addf %64, %67 : vector<8x128xf32>
    %c0_58 = arith.constant 0 : index
    %c0_59 = arith.constant 0 : index
    %c0_60 = arith.constant 0 : index
    %69 = vector.load %arg14[%c0_58, %c0_59, %c0_60] : memref<1x8x128xf32, #tpu.memory_space<vmem>>, vector<1x8x128xf32>
    %70 = vector.shape_cast %69 : vector<1x8x128xf32> to vector<8x128xf32>
    %71 = arith.addf %68, %3 : vector<8x128xf32>
    %72 = vector.extract_strided_slice %70 {offsets = [0, 0], sizes = [1, 128], strides = [1, 1]} : vector<8x128xf32> to vector<1x128xf32>
    %73 = vector.extract_strided_slice %70 {offsets = [1, 0], sizes = [1, 128], strides = [1, 1]} : vector<8x128xf32> to vector<1x128xf32>
    %cst_61 = arith.constant dense<0.000000e+00> : vector<8xf32>
    %74 = vector.multi_reduction <add>, %71, %cst_61 [1] : vector<8x128xf32> to vector<8xf32>
    %75 = vector.shape_cast %74 : vector<8xf32> to vector<8x1xf32>
    %cst_62 = arith.constant 1.280000e+02 : f32
    %76 = vector.broadcast %cst_62 : f32 to vector<8x1xf32>
    %77 = arith.divf %75, %76 : vector<8x1xf32>
    %78 = vector.broadcast %77 : vector<8x1xf32> to vector<8x128xf32>
    %79 = arith.subf %71, %78 : vector<8x128xf32>
    %80 = arith.mulf %79, %79 : vector<8x128xf32>
    %cst_63 = arith.constant dense<0.000000e+00> : vector<8xf32>
    %81 = vector.multi_reduction <add>, %80, %cst_63 [1] : vector<8x128xf32> to vector<8xf32>
    %82 = vector.shape_cast %81 : vector<8xf32> to vector<8x1xf32>
    %cst_64 = arith.constant 1.280000e+02 : f32
    %83 = vector.broadcast %cst_64 : f32 to vector<8x1xf32>
    %84 = arith.divf %82, %83 : vector<8x1xf32>
    %cst_65 = arith.constant 9.99999974E-6 : f32
    %85 = vector.broadcast %cst_65 : f32 to vector<8x1xf32>
    %86 = arith.addf %84, %85 : vector<8x1xf32>
    %87 = math.rsqrt %86 : vector<8x1xf32>
    %88 = vector.broadcast %87 : vector<8x1xf32> to vector<8x128xf32>
    %89 = arith.mulf %79, %88 : vector<8x128xf32>
    %90 = vector.broadcast %72 : vector<1x128xf32> to vector<8x128xf32>
    %91 = arith.mulf %89, %90 : vector<8x128xf32>
    %92 = vector.broadcast %73 : vector<1x128xf32> to vector<8x128xf32>
    %93 = arith.addf %91, %92 : vector<8x128xf32>
    %c0_66 = arith.constant 0 : index
    %c0_67 = arith.constant 0 : index
    %c0_68 = arith.constant 0 : index
    %94 = vector.load %arg20[%c0_66, %c0_67, %c0_68] : memref<1x4x128xf32, #tpu.memory_space<vmem>>, vector<1x4x128xf32>
    %95 = vector.shape_cast %94 : vector<1x4x128xf32> to vector<4x128xf32>
    %c0_69 = arith.constant 0 : index
    %c0_70 = arith.constant 0 : index
    %96 = vector.load %arg30[%c0_69, %c0_70] : memref<12x128xf32, #tpu.memory_space<vmem>>, vector<4x128xf32>
    tpu.vector_store %arg30[%c0_69, %c0_70], %95 {strides = array<i32>} : memref<12x128xf32, #tpu.memory_space<vmem>>, vector<4x128xf32>,
    %c4 = arith.constant 4 : index
    %c0_71 = arith.constant 0 : index
    %97 = vector.load %arg30[%c4, %c0_71] : memref<12x128xf32, #tpu.memory_space<vmem>>, vector<8x128xf32>
    tpu.vector_store %arg30[%c4, %c0_71], %93 {strides = array<i32>} : memref<12x128xf32, #tpu.memory_space<vmem>>, vector<8x128xf32>,
    %c0_72 = arith.constant 0 : index
    %c0_73 = arith.constant 0 : index
    %c0_74 = arith.constant 0 : index
    %98 = vector.load %arg9[%c0_72, %c0_73, %c0_74] : memref<1x5x128xf32, #tpu.memory_space<vmem>>, vector<1x5x128xf32>
    %99 = vector.shape_cast %98 : vector<1x5x128xf32> to vector<5x128xf32>
    %c0_75 = arith.constant 0 : index
    %c0_76 = arith.constant 0 : index
    %100 = vector.load %arg30[%c0_75, %c0_76] : memref<12x128xf32, #tpu.memory_space<vmem>>, vector<8x128xf32>
    %101 = vector.extract_strided_slice %99 {offsets = [0, 0], sizes = [1, 128], strides = [1, 1]} : vector<5x128xf32> to vector<1x128xf32>
    %102 = vector.broadcast %101 : vector<1x128xf32> to vector<8x128xf32>
    %103 = arith.mulf %100, %102 : vector<8x128xf32>
    %c1 = arith.constant 1 : index
    %c0_77 = arith.constant 0 : index
    %104 = vector.load %arg30[%c1, %c0_77] : memref<12x128xf32, #tpu.memory_space<vmem>>, vector<8x128xf32>
    %105 = vector.extract_strided_slice %99 {offsets = [1, 0], sizes = [1, 128], strides = [1, 1]} : vector<5x128xf32> to vector<1x128xf32>
    %106 = vector.broadcast %105 : vector<1x128xf32> to vector<8x128xf32>
    %107 = arith.mulf %104, %106 : vector<8x128xf32>
    %108 = arith.addf %103, %107 : vector<8x128xf32>
    %c2 = arith.constant 2 : index
    %c0_78 = arith.constant 0 : index
    %109 = vector.load %arg30[%c2, %c0_78] : memref<12x128xf32, #tpu.memory_space<vmem>>, vector<8x128xf32>
    %110 = vector.extract_strided_slice %99 {offsets = [2, 0], sizes = [1, 128], strides = [1, 1]} : vector<5x128xf32> to vector<1x128xf32>
    %111 = vector.broadcast %110 : vector<1x128xf32> to vector<8x128xf32>
    %112 = arith.mulf %109, %111 : vector<8x128xf32>
    %113 = arith.addf %108, %112 : vector<8x128xf32>
    %c3 = arith.constant 3 : index
    %c0_79 = arith.constant 0 : index
    %114 = vector.load %arg30[%c3, %c0_79] : memref<12x128xf32, #tpu.memory_space<vmem>>, vector<8x128xf32>
    %115 = vector.extract_strided_slice %99 {offsets = [3, 0], sizes = [1, 128], strides = [1, 1]} : vector<5x128xf32> to vector<1x128xf32>
    %116 = vector.broadcast %115 : vector<1x128xf32> to vector<8x128xf32>
    %117 = arith.mulf %114, %116 : vector<8x128xf32>
    %118 = arith.addf %113, %117 : vector<8x128xf32>
    %c4_80 = arith.constant 4 : index
    %c0_81 = arith.constant 0 : index
    %119 = vector.load %arg30[%c4_80, %c0_81] : memref<12x128xf32, #tpu.memory_space<vmem>>, vector<8x128xf32>
    %120 = vector.extract_strided_slice %99 {offsets = [4, 0], sizes = [1, 128], strides = [1, 1]} : vector<5x128xf32> to vector<1x128xf32>
    %121 = vector.broadcast %120 : vector<1x128xf32> to vector<8x128xf32>
    %122 = arith.mulf %119, %121 : vector<8x128xf32>
    %123 = arith.addf %118, %122 : vector<8x128xf32>
    %124 = arith.addf %123, %93 : vector<8x128xf32>
    %125 = vector.extract_strided_slice %70 {offsets = [2, 0], sizes = [1, 128], strides = [1, 1]} : vector<8x128xf32> to vector<1x128xf32>
    %126 = vector.extract_strided_slice %70 {offsets = [3, 0], sizes = [1, 128], strides = [1, 1]} : vector<8x128xf32> to vector<1x128xf32>
    %cst_82 = arith.constant dense<0.000000e+00> : vector<8xf32>
    %127 = vector.multi_reduction <add>, %124, %cst_82 [1] : vector<8x128xf32> to vector<8xf32>
    %128 = vector.shape_cast %127 : vector<8xf32> to vector<8x1xf32>
    %cst_83 = arith.constant 1.280000e+02 : f32
    %129 = vector.broadcast %cst_83 : f32 to vector<8x1xf32>
    %130 = arith.divf %128, %129 : vector<8x1xf32>
    %131 = vector.broadcast %130 : vector<8x1xf32> to vector<8x128xf32>
    %132 = arith.subf %124, %131 : vector<8x128xf32>
    %133 = arith.mulf %132, %132 : vector<8x128xf32>
    %cst_84 = arith.constant dense<0.000000e+00> : vector<8xf32>
    %134 = vector.multi_reduction <add>, %133, %cst_84 [1] : vector<8x128xf32> to vector<8xf32>
    %135 = vector.shape_cast %134 : vector<8xf32> to vector<8x1xf32>
    %cst_85 = arith.constant 1.280000e+02 : f32
    %136 = vector.broadcast %cst_85 : f32 to vector<8x1xf32>
    %137 = arith.divf %135, %136 : vector<8x1xf32>
    %cst_86 = arith.constant 9.99999974E-6 : f32
    %138 = vector.broadcast %cst_86 : f32 to vector<8x1xf32>
    %139 = arith.addf %137, %138 : vector<8x1xf32>
    %140 = math.rsqrt %139 : vector<8x1xf32>
    %141 = vector.broadcast %140 : vector<8x1xf32> to vector<8x128xf32>
    %142 = arith.mulf %132, %141 : vector<8x128xf32>
    %143 = vector.broadcast %125 : vector<1x128xf32> to vector<8x128xf32>
    %144 = arith.mulf %142, %143 : vector<8x128xf32>
    %145 = vector.broadcast %126 : vector<1x128xf32> to vector<8x128xf32>
    %146 = arith.addf %144, %145 : vector<8x128xf32>
    %147 = arith.truncf %146 : vector<8x128xf32> to vector<8x128xbf16>
    %c0_87 = arith.constant 0 : index
    %c0_88 = arith.constant 0 : index
    %c0_89 = arith.constant 0 : index
    %148 = vector.load %arg10[%c0_87, %c0_88, %c0_89] : memref<1x128x256xbf16, #tpu.memory_space<vmem>>, vector<1x128x256xbf16>
    %149 = vector.shape_cast %148 : vector<1x128x256xbf16> to vector<128x256xbf16>
    %cst_90 = arith.constant dense<0.000000e+00> : vector<8x256xf32>
    %150 = tpu.matmul %147, %149, %cst_90 {dimension_numbers = #tpu.dot_dimension_numbers<[1], [0], [0], [1], [0, 0, 1, 1], [], []>} : vector<8x128xbf16>, vector<128x256xbf16>, vector<8x256xf32> -> vector<8x256xf32>
    %c0_91 = arith.constant 0 : index
    %c0_92 = arith.constant 0 : index
    %c0_93 = arith.constant 0 : index
    %151 = vector.load %arg11[%c0_91, %c0_92, %c0_93] : memref<1x1x256xf32, #tpu.memory_space<vmem>>, vector<1x1x256xf32>
    %152 = vector.shape_cast %151 : vector<1x1x256xf32> to vector<1x256xf32>
    %153 = vector.broadcast %152 : vector<1x256xf32> to vector<8x256xf32>
    %154 = arith.addf %150, %153 : vector<8x256xf32>
    %cst_94 = arith.constant 0.000000e+00 : f32
    %155 = vector.broadcast %cst_94 : f32 to vector<8x256xf32>
    %156 = arith.maximumf %154, %155 : vector<8x256xf32>
    %157 = arith.truncf %156 : vector<8x256xf32> to vector<8x256xbf16>
    %c0_95 = arith.constant 0 : index
    %c0_96 = arith.constant 0 : index
    %c0_97 = arith.constant 0 : index
    %158 = vector.load %arg12[%c0_95, %c0_96, %c0_97] : memref<1x256x128xbf16, #tpu.memory_space<vmem>>, vector<1x256x128xbf16>
    %159 = vector.shape_cast %158 : vector<1x256x128xbf16> to vector<256x128xbf16>
    %cst_98 = arith.constant dense<0.000000e+00> : vector<8x128xf32>
    %160 = tpu.matmul %157, %159, %cst_98 {dimension_numbers = #tpu.dot_dimension_numbers<[1], [0], [0], [1], [0, 0, 1, 1], [], []>} : vector<8x256xbf16>, vector<256x128xbf16>, vector<8x128xf32> -> vector<8x128xf32>
    %c0_99 = arith.constant 0 : index
    %c0_100 = arith.constant 0 : index
    %c0_101 = arith.constant 0 : index
    %161 = vector.load %arg13[%c0_99, %c0_100, %c0_101] : memref<1x1x128xf32, #tpu.memory_space<vmem>>, vector<1x1x128xf32>
    %162 = vector.shape_cast %161 : vector<1x1x128xf32> to vector<1x128xf32>
    %163 = vector.broadcast %162 : vector<1x128xf32> to vector<8x128xf32>
    %164 = arith.addf %160, %163 : vector<8x128xf32>
    %165 = arith.addf %164, %146 : vector<8x128xf32>
    %166 = vector.extract_strided_slice %70 {offsets = [4, 0], sizes = [1, 128], strides = [1, 1]} : vector<8x128xf32> to vector<1x128xf32>
    %167 = vector.extract_strided_slice %70 {offsets = [5, 0], sizes = [1, 128], strides = [1, 1]} : vector<8x128xf32> to vector<1x128xf32>
    %cst_102 = arith.constant dense<0.000000e+00> : vector<8xf32>
    %168 = vector.multi_reduction <add>, %165, %cst_102 [1] : vector<8x128xf32> to vector<8xf32>
    %169 = vector.shape_cast %168 : vector<8xf32> to vector<8x1xf32>
    %cst_103 = arith.constant 1.280000e+02 : f32
    %170 = vector.broadcast %cst_103 : f32 to vector<8x1xf32>
    %171 = arith.divf %169, %170 : vector<8x1xf32>
    %172 = vector.broadcast %171 : vector<8x1xf32> to vector<8x128xf32>
    %173 = arith.subf %165, %172 : vector<8x128xf32>
    %174 = arith.mulf %173, %173 : vector<8x128xf32>
    %cst_104 = arith.constant dense<0.000000e+00> : vector<8xf32>
    %175 = vector.multi_reduction <add>, %174, %cst_104 [1] : vector<8x128xf32> to vector<8xf32>
    %176 = vector.shape_cast %175 : vector<8xf32> to vector<8x1xf32>
    %cst_105 = arith.constant 1.280000e+02 : f32
    %177 = vector.broadcast %cst_105 : f32 to vector<8x1xf32>
    %178 = arith.divf %176, %177 : vector<8x1xf32>
    %cst_106 = arith.constant 9.99999974E-6 : f32
    %179 = vector.broadcast %cst_106 : f32 to vector<8x1xf32>
    %180 = arith.addf %178, %179 : vector<8x1xf32>
    %181 = math.rsqrt %180 : vector<8x1xf32>
    %182 = vector.broadcast %181 : vector<8x1xf32> to vector<8x128xf32>
    %183 = arith.mulf %173, %182 : vector<8x128xf32>
    %184 = vector.broadcast %166 : vector<1x128xf32> to vector<8x128xf32>
    %185 = arith.mulf %183, %184 : vector<8x128xf32>
    %186 = vector.broadcast %167 : vector<1x128xf32> to vector<8x128xf32>
    %187 = arith.addf %185, %186 : vector<8x128xf32>
    %c0_107 = arith.constant 0 : index
    %c0_108 = arith.constant 0 : index
    %188 = vector.load %arg26[%c0_107, %c0_108] : memref<8x128xf32, #tpu.memory_space<vmem>>, vector<8x128xf32>
    tpu.vector_store %arg26[%c0_107, %c0_108], %187 {strides = array<i32>} : memref<8x128xf32, #tpu.memory_space<vmem>>, vector<8x128xf32>,
    %cst_109 = arith.constant dense<0.000000e+00> : vector<128xf32>
    %189 = vector.multi_reduction <add>, %187, %cst_109 [0] : vector<8x128xf32> to vector<128xf32>
    %190 = vector.shape_cast %189 : vector<128xf32> to vector<1x128xf32>
    %cst_110 = arith.constant 8.000000e+00 : f32
    %191 = vector.broadcast %cst_110 : f32 to vector<1x128xf32>
    %192 = arith.divf %190, %191 : vector<1x128xf32>
    %c0_111 = arith.constant 0 : index
    %c1_112 = arith.constant 1 : index
    %c0_113 = arith.constant 0 : index
    %193 = vector.load %arg17[%c0_111, %c1_112, %c0_113] : memref<1x4x128xf32, #tpu.memory_space<vmem>>, vector<1x3x128xf32>
    %194 = vector.shape_cast %193 : vector<1x3x128xf32> to vector<3x128xf32>
    %c0_114 = arith.constant 0 : index
    %c0_115 = arith.constant 0 : index
    %c0_116 = arith.constant 0 : index
    %195 = vector.load %arg22[%c0_114, %c0_115, %c0_116] : memref<1x4x128xf32, #tpu.memory_space<vmem>>, vector<1x3x128xf32>
    %196 = vector.shape_cast %195 : vector<1x3x128xf32> to vector<3x128xf32>
    %197 = vector.shape_cast %194 : vector<3x128xf32> to vector<1x3x128xf32>
    tpu.vector_store %arg22[%c0_114, %c0_115, %c0_116], %197 {strides = array<i32>} : memref<1x4x128xf32, #tpu.memory_space<vmem>>, vector<1x3x128xf32>,
    %c0_117 = arith.constant 0 : index
    %c3_118 = arith.constant 3 : index
    %c0_119 = arith.constant 0 : index
    %198 = vector.load %arg22[%c0_117, %c3_118, %c0_119] : memref<1x4x128xf32, #tpu.memory_space<vmem>>, vector<1x1x128xf32>
    %199 = vector.shape_cast %198 : vector<1x1x128xf32> to vector<1x128xf32>
    %200 = vector.shape_cast %192 : vector<1x128xf32> to vector<1x1x128xf32>
    tpu.vector_store %arg22[%c0_117, %c3_118, %c0_119], %200 {strides = array<i32>} : memref<1x4x128xf32, #tpu.memory_space<vmem>>, vector<1x1x128xf32>,
    %c0_120 = arith.constant 0 : index
    %c0_121 = arith.constant 0 : index
    %c0_122 = arith.constant 0 : index
    %201 = vector.load %arg23[%c0_120, %c0_121, %c0_122] : memref<1x8x128xf32, #tpu.memory_space<vmem>>, vector<1x8x128xf32>
    %202 = vector.shape_cast %201 : vector<1x8x128xf32> to vector<8x128xf32>
    %203 = vector.shape_cast %20 : vector<8x128xf32> to vector<1x8x128xf32>
    tpu.vector_store %arg23[%c0_120, %c0_121, %c0_122], %203 {strides = array<i32>} : memref<1x8x128xf32, #tpu.memory_space<vmem>>, vector<1x8x128xf32>,
    %c0_123 = arith.constant 0 : index
    %c0_124 = arith.constant 0 : index
    %c0_125 = arith.constant 0 : index
    %204 = vector.load %arg24[%c0_123, %c0_124, %c0_125] : memref<1x8x128xf32, #tpu.memory_space<vmem>>, vector<1x8x128xf32>
    %205 = vector.shape_cast %204 : vector<1x8x128xf32> to vector<8x128xf32>
    %206 = vector.shape_cast %21 : vector<8x128xf32> to vector<1x8x128xf32>
    tpu.vector_store %arg24[%c0_123, %c0_124, %c0_125], %206 {strides = array<i32>} : memref<1x8x128xf32, #tpu.memory_space<vmem>>, vector<1x8x128xf32>,
    %c8_126 = arith.constant 8 : index
    %c0_127 = arith.constant 0 : index
    %207 = vector.load %arg30[%c8_126, %c0_127] : memref<12x128xf32, #tpu.memory_space<vmem>>, vector<4x128xf32>
    %c0_128 = arith.constant 0 : index
    %c0_129 = arith.constant 0 : index
    %c0_130 = arith.constant 0 : index
    %208 = vector.load %arg25[%c0_128, %c0_129, %c0_130] : memref<1x4x128xf32, #tpu.memory_space<vmem>>, vector<1x4x128xf32>
    %209 = vector.shape_cast %208 : vector<1x4x128xf32> to vector<4x128xf32>
    %210 = vector.shape_cast %207 : vector<4x128xf32> to vector<1x4x128xf32>
    tpu.vector_store %arg25[%c0_128, %c0_129, %c0_130], %210 {strides = array<i32>} : memref<1x4x128xf32, #tpu.memory_space<vmem>>, vector<1x4x128xf32>,
    %c1_i32 = arith.constant 1 : i32
    %211 = arith.cmpi eq, %arg0, %c1_i32 : i32
    %212 = arith.extui %211 : i1 to i32
    %c0_i32_131 = arith.constant 0 : i32
    %213 = arith.cmpi ne, %212, %c0_i32_131 : i32
    scf.if %213 {
      %214 = arith.truncf %187 : vector<8x128xf32> to vector<8x128xbf16>
      %c0_132 = arith.constant 0 : index
      %c0_133 = arith.constant 0 : index
      %215 = vector.load %arg15[%c0_132, %c0_133] : memref<128x256xbf16, #tpu.memory_space<vmem>>, vector<128x256xbf16>
      %cst_134 = arith.constant dense<0.000000e+00> : vector<8x256xf32>
      %216 = tpu.matmul %214, %215, %cst_134 {dimension_numbers = #tpu.dot_dimension_numbers<[1], [0], [0], [1], [0, 0, 1, 1], [], []>} : vector<8x128xbf16>, vector<128x256xbf16>, vector<8x256xf32> -> vector<8x256xf32>
      %c0_135 = arith.constant 0 : index
      %c0_136 = arith.constant 0 : index
      %217 = vector.load %arg16[%c0_135, %c0_136] : memref<1x256xf32, #tpu.memory_space<vmem>>, vector<1x256xf32>
      %218 = vector.broadcast %217 : vector<1x256xf32> to vector<8x256xf32>
      %219 = arith.addf %216, %218 : vector<8x256xf32>
      %cst_137 = arith.constant dense<0xFF800000> : vector<8xf32>
      %220 = vector.multi_reduction <maximumf>, %219, %cst_137 [1] : vector<8x256xf32> to vector<8xf32>
      %221 = vector.shape_cast %220 : vector<8xf32> to vector<8x1xf32>
      %222 = vector.broadcast %221 : vector<8x1xf32> to vector<8x256xf32>
      %223 = arith.subf %219, %222 : vector<8x256xf32>
      %224 = math.exp %223 : vector<8x256xf32>
      %cst_138 = arith.constant dense<0.000000e+00> : vector<8xf32>
      %225 = vector.multi_reduction <add>, %224, %cst_138 [1] : vector<8x256xf32> to vector<8xf32>
      %226 = vector.shape_cast %225 : vector<8xf32> to vector<8x1xf32>
      %227 = math.log %226 : vector<8x1xf32>
      %228 = vector.broadcast %227 : vector<8x1xf32> to vector<8x256xf32>
      %229 = arith.subf %223, %228 : vector<8x256xf32>
      %c0_139 = arith.constant 0 : index
      %c0_140 = arith.constant 0 : index
      %230 = vector.load %arg21[%c0_139, %c0_140] : memref<8x256xf32, #tpu.memory_space<vmem>>, vector<8x256xf32>
      tpu.vector_store %arg21[%c0_139, %c0_140], %229 {strides = array<i32>} : memref<8x256xf32, #tpu.memory_space<vmem>>, vector<8x256xf32>,
    } else {
    }
    return
  }
  func.func @transform_0(%arg0: i32) -> (i32, i32) {
    %c0_i32 = arith.constant 0 : i32
    %c0_i32_0 = arith.constant 0 : i32
    %c0_i32_1 = arith.constant 0 : i32
    return %c0_i32, %c0_i32_0 : i32, i32
  }
  func.func @transform_1(%arg0: i32) -> (i32, i32) {
    %c0_i32 = arith.constant 0 : i32
    %c0_i32_0 = arith.constant 0 : i32
    %c0_i32_1 = arith.constant 0 : i32
    return %c0_i32, %c0_i32_0 : i32, i32
  }
  func.func @transform_2(%arg0: i32) -> (i32, i32) {
    %c0_i32 = arith.constant 0 : i32
    %c0_i32_0 = arith.constant 0 : i32
    %c0_i32_1 = arith.constant 0 : i32
    return %c0_i32, %c0_i32_0 : i32, i32
  }
  func.func @transform_3(%arg0: i32) -> (i32, i32) {
    %c0_i32 = arith.constant 0 : i32
    %c0_i32_0 = arith.constant 0 : i32
    %c0_i32_1 = arith.constant 0 : i32
    return %c0_i32, %c0_i32_0 : i32, i32
  }
  func.func @transform_4(%arg0: i32) -> (i32, i32, i32) {
    %c0_i32 = arith.constant 0 : i32
    %c0_i32_0 = arith.constant 0 : i32
    %c0_i32_1 = arith.constant 0 : i32
    return %arg0, %c0_i32, %c0_i32_0 : i32, i32, i32
  }
  func.func @transform_5(%arg0: i32) -> (i32, i32, i32) {
    %c0_i32 = arith.constant 0 : i32
    %c0_i32_0 = arith.constant 0 : i32
    %c0_i32_1 = arith.constant 0 : i32
    return %arg0, %c0_i32, %c0_i32_0 : i32, i32, i32
  }
  func.func @transform_6(%arg0: i32) -> (i32, i32, i32) {
    %c0_i32 = arith.constant 0 : i32
    %c0_i32_0 = arith.constant 0 : i32
    %c0_i32_1 = arith.constant 0 : i32
    return %arg0, %c0_i32, %c0_i32_0 : i32, i32, i32
  }
  func.func @transform_7(%arg0: i32) -> (i32, i32, i32) {
    %c0_i32 = arith.constant 0 : i32
    %c0_i32_0 = arith.constant 0 : i32
    %c0_i32_1 = arith.constant 0 : i32
    return %arg0, %c0_i32, %c0_i32_0 : i32, i32, i32
  }
  func.func @transform_8(%arg0: i32) -> (i32, i32, i32) {
    %c0_i32 = arith.constant 0 : i32
    %c0_i32_0 = arith.constant 0 : i32
    %c0_i32_1 = arith.constant 0 : i32
    return %arg0, %c0_i32, %c0_i32_0 : i32, i32, i32
  }
  func.func @transform_9(%arg0: i32) -> (i32, i32, i32) {
    %c0_i32 = arith.constant 0 : i32
    %c0_i32_0 = arith.constant 0 : i32
    %c0_i32_1 = arith.constant 0 : i32
    return %arg0, %c0_i32, %c0_i32_0 : i32, i32, i32
  }
  func.func @transform_10(%arg0: i32) -> (i32, i32, i32) {
    %c0_i32 = arith.constant 0 : i32
    %c0_i32_0 = arith.constant 0 : i32
    %c0_i32_1 = arith.constant 0 : i32
    return %arg0, %c0_i32, %c0_i32_0 : i32, i32, i32
  }
  func.func @transform_11(%arg0: i32) -> (i32, i32, i32) {
    %c0_i32 = arith.constant 0 : i32
    %c0_i32_0 = arith.constant 0 : i32
    %c0_i32_1 = arith.constant 0 : i32
    return %arg0, %c0_i32, %c0_i32_0 : i32, i32, i32
  }
  func.func @transform_12(%arg0: i32) -> (i32, i32, i32) {
    %c0_i32 = arith.constant 0 : i32
    %c0_i32_0 = arith.constant 0 : i32
    %c0_i32_1 = arith.constant 0 : i32
    return %arg0, %c0_i32, %c0_i32_0 : i32, i32, i32
  }
  func.func @transform_13(%arg0: i32) -> (i32, i32, i32) {
    %c0_i32 = arith.constant 0 : i32
    %c0_i32_0 = arith.constant 0 : i32
    %c0_i32_1 = arith.constant 0 : i32
    return %arg0, %c0_i32, %c0_i32_0 : i32, i32, i32
  }
  func.func @transform_14(%arg0: i32) -> (i32, i32) {
    %c0_i32 = arith.constant 0 : i32
    %c0_i32_0 = arith.constant 0 : i32
    %c0_i32_1 = arith.constant 0 : i32
    return %c0_i32, %c0_i32_0 : i32, i32
  }
  func.func @transform_15(%arg0: i32) -> (i32, i32) {
    %c0_i32 = arith.constant 0 : i32
    %c0_i32_0 = arith.constant 0 : i32
    %c0_i32_1 = arith.constant 0 : i32
    return %c0_i32, %c0_i32_0 : i32, i32
  }
  func.func @transform_16(%arg0: i32) -> (i32, i32, i32) {
    %c0_i32 = arith.constant 0 : i32
    %c0_i32_0 = arith.constant 0 : i32
    %c0_i32_1 = arith.constant 0 : i32
    return %arg0, %c0_i32, %c0_i32_0 : i32, i32, i32
  }
  func.func @transform_17(%arg0: i32) -> (i32, i32, i32) {
    %c0_i32 = arith.constant 0 : i32
    %c0_i32_0 = arith.constant 0 : i32
    %c0_i32_1 = arith.constant 0 : i32
    return %arg0, %c0_i32, %c0_i32_0 : i32, i32, i32
  }
  func.func @transform_18(%arg0: i32) -> (i32, i32, i32) {
    %c0_i32 = arith.constant 0 : i32
    %c0_i32_0 = arith.constant 0 : i32
    %c0_i32_1 = arith.constant 0 : i32
    return %arg0, %c0_i32, %c0_i32_0 : i32, i32, i32
  }
  func.func @transform_19(%arg0: i32) -> (i32, i32, i32) {
    %c0_i32 = arith.constant 0 : i32
    %c0_i32_0 = arith.constant 0 : i32
    %c0_i32_1 = arith.constant 0 : i32
    return %arg0, %c0_i32, %c0_i32_0 : i32, i32, i32
  }
  func.func @transform_20(%arg0: i32) -> (i32, i32) {
    %c0_i32 = arith.constant 0 : i32
    %c0_i32_0 = arith.constant 0 : i32
    %c0_i32_1 = arith.constant 0 : i32
    return %c0_i32, %c0_i32_0 : i32, i32
  }
  func.func @transform_21(%arg0: i32) -> (i32, i32, i32) {
    %c0_i32 = arith.constant 0 : i32
    %c0_i32_0 = arith.constant 0 : i32
    %c0_i32_1 = arith.constant 0 : i32
    return %arg0, %c0_i32, %c0_i32_0 : i32, i32, i32
  }
  func.func @transform_22(%arg0: i32) -> (i32, i32, i32) {
    %c0_i32 = arith.constant 0 : i32
    %c0_i32_0 = arith.constant 0 : i32
    %c0_i32_1 = arith.constant 0 : i32
    return %arg0, %c0_i32, %c0_i32_0 : i32, i32, i32
  }
  func.func @transform_23(%arg0: i32) -> (i32, i32, i32) {
    %c0_i32 = arith.constant 0 : i32
    %c0_i32_0 = arith.constant 0 : i32
    %c0_i32_1 = arith.constant 0 : i32
    return %arg0, %c0_i32, %c0_i32_0 : i32, i32, i32
  }
  func.func @transform_24(%arg0: i32) -> (i32, i32, i32) {
    %c0_i32 = arith.constant 0 : i32
    %c0_i32_0 = arith.constant 0 : i32
    %c0_i32_1 = arith.constant 0 : i32
    return %arg0, %c0_i32, %c0_i32_0 : i32, i32, i32
  }
}

</mosaic_0001>

<llo_original>
// kernel: encoder_ctc_forward.1
$region0: #{encoder_ctc_forward.1}
  #allocation0 [shape = 'u32[]', space=smem, size = 0x4, offset = 0x4, fixed_abs, tag = 'smem constant byte address 0x4 - core index']
  #allocation1 [shape = 'u32[144,128]{1,0:T(1,128)}', space=vmem, size = 0x12000, scoped, tag = 'internal scratch']
  #allocation2 [shape = 'f32[8,128]{1,0:T(8,128)}', space=vmem, size = 0x1000, scoped, tag = 'scratch operand']
  #allocation3 [shape = 'f32[16,128]{1,0:T(8,128)}', space=vmem, size = 0x2000, scoped, tag = 'scratch operand']
  #allocation4 [shape = 'f32[24,128]{1,0:T(8,128)}', space=vmem, size = 0x3000, scoped, tag = 'scratch operand']
  #allocation5 [shape = 'f32[24,128]{1,0:T(8,128)}', space=vmem, size = 0x3000, scoped, tag = 'scratch operand']
  #allocation6 [shape = 'f32[12,128]{1,0:T(8,128)}', space=vmem, size = 0x2000, scoped, tag = 'scratch operand']
  %s0 = inlined_call_operand.vmem [shape: f32[8,128], index: 0, kind: input, shape index: {}]
  %s1 = inlined_call_operand.hbm [shape: bf16[128,128], index: 1, kind: input, shape index: {}]
  %s2 = inlined_call_operand.hbm [shape: f32[1,128], index: 2, kind: input, shape index: {}]
  %s3 = inlined_call_operand.vmem [shape: f32[1,24], index: 3, kind: input, shape index: {}]
  %s4 = inlined_call_operand.hbm [shape: bf16[2,128,384], index: 4, kind: input, shape index: {}]
  %s5 = inlined_call_operand.vmem [shape: f32[2,1,384], index: 5, kind: input, shape index: {}]
  %s6 = inlined_call_operand.hbm [shape: bf16[2,128,128], index: 6, kind: input, shape index: {}]
  %s7 = inlined_call_operand.vmem [shape: f32[2,1,128], index: 7, kind: input, shape index: {}]
  %s8 = inlined_call_operand.vmem [shape: f32[2,5,128], index: 8, kind: input, shape index: {}]
  %s9 = inlined_call_operand.vmem [shape: bf16[2,128,256], index: 9, kind: input, shape index: {}]
  %s10 = inlined_call_operand.hbm [shape: f32[2,1,256], index: 10, kind: input, shape index: {}]
  %s11 = inlined_call_operand.hbm [shape: bf16[2,256,128], index: 11, kind: input, shape index: {}]
  %s12 = inlined_call_operand.hbm [shape: f32[2,1,128], index: 12, kind: input, shape index: {}]
  %s13 = inlined_call_operand.hbm [shape: f32[2,8,128], index: 13, kind: input, shape index: {}]
  %s14 = inlined_call_operand.hbm [shape: bf16[128,256], index: 14, kind: input, shape index: {}]
  %s15 = inlined_call_operand.hbm [shape: f32[1,256], index: 15, kind: input, shape index: {}]
  %s16 = inlined_call_operand.vmem [shape: f32[2,4,128], index: 16, kind: input, shape index: {}, may-alias: {16,21}]
  %s17 = inlined_call_operand.vmem [shape: f32[2,8,128], index: 17, kind: input, shape index: {}, may-alias: {17,22}]
  %s18 = inlined_call_operand.vmem [shape: f32[2,8,128], index: 18, kind: input, shape index: {}, may-alias: {18,23}]
  %s19 = inlined_call_operand.vmem [shape: f32[2,4,128], index: 19, kind: input, shape index: {}, may-alias: {19,24}]
  %s20 = inlined_call_operand.hbm [shape: f32[8,256], index: 20, kind: output, shape index: {0}]
  %s21 = inlined_call_operand.vmem [shape: f32[2,4,128], index: 21, kind: output, shape index: {1}, may-alias: {16,21}]
  %s22 = inlined_call_operand.vmem [shape: f32[2,8,128], index: 22, kind: output, shape index: {2}, may-alias: {17,22}]
  %s23 = inlined_call_operand.vmem [shape: f32[2,8,128], index: 23, kind: output, shape index: {3}, may-alias: {18,23}]
  %s24 = inlined_call_operand.vmem [shape: f32[2,4,128], index: 24, kind: output, shape index: {4}, may-alias: {19,24}]
  %25 = xla_tuple %s20, %s21, %s22, %s23, %s24
  %s26 = sld [smem:[#allocation0]]
  $region193: #{encoder_ctc_forward.1} parent=0
    _
  %s28 = ssub.s32 1, %s26
  %s29 = scalar_select 0, %s28, %s26
  $region1: #{encoder_ctc_forward.1} parent=0
    #allocation7 [shape = 'u8[32768]{0}', space=vmem, size = 0x8000, scoped, tag = 'input window, operand 1, single buffered']
    #allocation8 [shape = 's32[2]{0}', space=sflag, size = 0x8, scoped, tag = 'scoped memory for encoder_ctc_forward.1']
    #allocation9 [shape = 's32[2]{0}', space=sflag, size = 0x8, scoped, tag = 'scoped memory for encoder_ctc_forward.1']
    #allocation10 [shape = 'u8[512]{0}', space=vmem, size = 0x400, scoped, tag = 'input window, operand 2, single buffered']
    #allocation11 [shape = 's32[1]{0}', space=sflag, size = 0x4, scoped, tag = 'scoped memory for encoder_ctc_forward.1']
    #allocation12 [shape = 'u8[196608]{0}', space=vmem, size = 0x30000, scoped, tag = 'input window, operand 4']
    #allocation13 [shape = 'u8[65536]{0}', space=vmem, size = 0x10000, scoped, tag = 'input window, operand 6']
    #allocation14 [shape = 'u8[2048]{0}', space=vmem, size = 0x800, scoped, tag = 'input window, operand 10']
    #allocation15 [shape = 'u8[131072]{0}', space=vmem, size = 0x20000, scoped, tag = 'input window, operand 11']
    #allocation16 [shape = 'u8[1024]{0}', space=vmem, size = 0x400, scoped, tag = 'input window, operand 12']
    #allocation17 [shape = 'u8[8192]{0}', space=vmem, size = 0x2000, scoped, tag = 'input window, operand 13']
    #allocation18 [shape = 'u8[65536]{0}', space=vmem, size = 0x10000, scoped, tag = 'input window, operand 14, single buffered']
    #allocation19 [shape = 'u8[1024]{0}', space=vmem, size = 0x400, scoped, tag = 'input window, operand 15, single buffered']
    #allocation20 [shape = 's32[1]{0}', space=sflag, size = 0x4, scoped, tag = 'scoped memory for encoder_ctc_forward.1']
    #allocation21 [shape = 'u8[8192]{0}', space=vmem, size = 0x2000, scoped, tag = 'output window, operand 0, single buffered']
    %30 = vsyncpa [#allocation8], 0
    %31 = vsyncpa [#allocation11], 0
    %32 = vsyncpa [#allocation20], 0
    %33 = vsyncpa [#allocation9], 0
    loop: start=0, step=1, limit=4
    $region2: #{encoder_ctc_forward.1} parent=1 // loop_pre_header
      _
    $region3: #{encoder_ctc_forward.1} parent=1 // loop_header
      %s35 = sphi 0, %s39
      %p36 = scmp.ge.s32.totalorder %s35, 4
      %s43 = sphi 0, %s43
      %s45 = sphi 0, %s43
      %s46 = sphi 0, %s45
      %s60 = sphi 0, %s46
      %s64 = sphi 0, %s64
      %s66 = sphi 0, %s64
      %s67 = sphi 0, %s66
      %s81 = sphi 0, %s67
      %s85 = sphi 0, %s85
      %s87 = sphi 0, %s85
      %s88 = sphi 0, %s87
      %s102 = sphi 0, %s88
      %s106 = sphi 0, %s106
      %s108 = sphi 0, %s106
      %s109 = sphi 0, %s108
      %s123 = sphi 0, %s109
      %s129 = sphi 0, %s131
      %s132 = sphi 0, %s129
      %s133 = sphi 0, %s132
      %s149 = sphi 0, %s133
      %s155 = sphi 0, %s157
      %s158 = sphi 0, %s155
      %s159 = sphi 0, %s158
      %s175 = sphi 0, %s159
      %s181 = sphi 0, %s183
      %s184 = sphi 0, %s181
      %s185 = sphi 0, %s184
      %s201 = sphi 0, %s185
      %s207 = sphi 0, %s209
      %s210 = sphi 0, %s207
      %s211 = sphi 0, %s210
      %s227 = sphi 0, %s211
      %s233 = sphi 0, %s235
      %s236 = sphi 0, %s233
      %s237 = sphi 0, %s236
      %s253 = sphi 0, %s237
      %s259 = sphi 0, %s261
      %s262 = sphi 0, %s259
      %s263 = sphi 0, %s262
      %s279 = sphi 0, %s263
      %s285 = sphi 0, %s287
      %s288 = sphi 0, %s285
      %s289 = sphi 0, %s288
      %s305 = sphi 0, %s289
      %s311 = sphi 0, %s313
      %s314 = sphi 0, %s311
      %s315 = sphi 0, %s314
      %s331 = sphi 0, %s315
      %s337 = sphi 0, %s339
      %s340 = sphi 0, %s337
      %s341 = sphi 0, %s340
      %s357 = sphi 0, %s341
      %s363 = sphi 0, %s365
      %s366 = sphi 0, %s363
      %s367 = sphi 0, %s366
      %s383 = sphi 0, %s367
      %s387 = sphi 0, %s387
      %s389 = sphi 0, %s387
      %s390 = sphi 0, %s389
      %s404 = sphi 0, %s390
      %s408 = sphi 0, %s408
      %s410 = sphi 0, %s408
      %s411 = sphi 0, %s410
      %s425 = sphi 0, %s411
      %s431 = sphi 0, %s433
      %s434 = sphi 0, %s431
      %s435 = sphi 0, %s434
      %s451 = sphi 0, %s435
      %s457 = sphi 0, %s459
      %s460 = sphi 0, %s457
      %s461 = sphi 0, %s460
      %s477 = sphi 0, %s461
      %s483 = sphi 0, %s485
      %s486 = sphi 0, %s483
      %s487 = sphi 0, %s486
      %s503 = sphi 0, %s487
      %s509 = sphi 0, %s511
      %s512 = sphi 0, %s509
      %s513 = sphi 0, %s512
      %s529 = sphi 0, %s513
      %s533 = sphi 0, %s533
      %s535 = sphi 0, %s533
      %s536 = sphi 0, %s535
      %s550 = sphi 0, %s536
      %s556 = sphi 0, %s558
      %s559 = sphi 0, %s556
      %s560 = sphi 0, %s559
      %s576 = sphi 0, %s560
      %s582 = sphi 0, %s584
      %s585 = sphi 0, %s582
      %s586 = sphi 0, %s585
      %s602 = sphi 0, %s586
      %s608 = sphi 0, %s610
      %s611 = sphi 0, %s608
      %s612 = sphi 0, %s611
      %s628 = sphi 0, %s612
      %s634 = sphi 0, %s636
      %s637 = sphi 0, %s634
      %s638 = sphi 0, %s637
      %s654 = sphi 0, %s638
    $region4: #{encoder_ctc_forward.1} parent=1 // loop_header_branch
      %38 = sbr.rel (%p36) target = $region8
    $region5: #{encoder_ctc_forward.1} parent=1 // loop_body
      %s40 = ssub.s32 %s35, 1
      %s41 = ssub.s32 %s35, 2
      %s42 = sadd.s32 %s35, 1
      %s44 = sadd.s32 %s43, 1
      %p47 = scmp.eq.s32.totalorder %s35, 1
      %p48 = scmp.ne.s32.totalorder %s43, %s45
      %p49 = scmp.eq.s32.totalorder %s35, 0
      %p50 = por %p48, %p49
      %p51 = scmp.ne.s32.totalorder %s43, %s45
      %p52 = scmp.eq.s32.totalorder %s40, 1
      %p53 = por %p51, %p52
      %p54 = scmp.ne.s32.totalorder %s45, %s46
      %p55 = scmp.eq.s32.totalorder %s40, 0
      %p56 = por %p54, %p55
      %p57 = scmp.ne.s32.totalorder %s45, %s46
      %p58 = scmp.eq.s32.totalorder %s41, 1
      %p59 = por %p57, %p58
      %p61 = scmp.ne.s32.totalorder %s46, %s60
      %p62 = scmp.eq.s32.totalorder %s41, 0
      %p63 = por %p61, %p62
      %s65 = sadd.s32 %s64, 1
      %p68 = scmp.eq.s32.totalorder %s35, 1
      %p69 = scmp.ne.s32.totalorder %s64, %s66
      %p70 = scmp.eq.s32.totalorder %s35, 0
      %p71 = por %p69, %p70
      %p72 = scmp.ne.s32.totalorder %s64, %s66
      %p73 = scmp.eq.s32.totalorder %s40, 1
      %p74 = por %p72, %p73
      %p75 = scmp.ne.s32.totalorder %s66, %s67
      %p76 = scmp.eq.s32.totalorder %s40, 0
      %p77 = por %p75, %p76
      %p78 = scmp.ne.s32.totalorder %s66, %s67
      %p79 = scmp.eq.s32.totalorder %s41, 1
      %p80 = por %p78, %p79
      %p82 = scmp.ne.s32.totalorder %s67, %s81
      %p83 = scmp.eq.s32.totalorder %s41, 0
      %p84 = por %p82, %p83
      %s86 = sadd.s32 %s85, 1
      %p89 = scmp.eq.s32.totalorder %s35, 1
      %p90 = scmp.ne.s32.totalorder %s85, %s87
      %p91 = scmp.eq.s32.totalorder %s35, 0
      %p92 = por %p90, %p91
      %p93 = scmp.ne.s32.totalorder %s85, %s87
      %p94 = scmp.eq.s32.totalorder %s40, 1
      %p95 = por %p93, %p94
      %p96 = scmp.ne.s32.totalorder %s87, %s88
      %p97 = scmp.eq.s32.totalorder %s40, 0
      %p98 = por %p96, %p97
      %p99 = scmp.ne.s32.totalorder %s87, %s88
      %p100 = scmp.eq.s32.totalorder %s41, 1
      %p101 = por %p99, %p100
      %p103 = scmp.ne.s32.totalorder %s88, %s102
      %p104 = scmp.eq.s32.totalorder %s41, 0
      %p105 = por %p103, %p104
      %s107 = sadd.s32 %s106, 1
      %p110 = scmp.eq.s32.totalorder %s35, 1
      %p111 = scmp.ne.s32.totalorder %s106, %s108
      %p112 = scmp.eq.s32.totalorder %s35, 0
      %p113 = por %p111, %p112
      %p114 = scmp.ne.s32.totalorder %s106, %s108
      %p115 = scmp.eq.s32.totalorder %s40, 1
      %p116 = por %p114, %p115
      %p117 = scmp.ne.s32.totalorder %s108, %s109
      %p118 = scmp.eq.s32.totalorder %s40, 0
      %p119 = por %p117, %p118
      %p120 = scmp.ne.s32.totalorder %s108, %s109
      %p121 = scmp.eq.s32.totalorder %s41, 1
      %p122 = por %p120, %p121
      %p124 = scmp.ne.s32.totalorder %s109, %s123
      %p125 = scmp.eq.s32.totalorder %s41, 0
      %p126 = por %p124, %p125
      %s127 = ssub.s32 %s35, %s42
      %p128 = scmp.eq.s32.totalorder %s127, 0
      %s130 = sadd.s32 %s129, 1
      %s131 = scalar_select %p128, %s129, %s130
      %p134 = pneg %p128
      %p135 = scmp.eq.s32.totalorder %s35, 1
      %p136 = por %p134, %p135
      %p137 = scmp.ne.s32.totalorder %s129, %s132
      %p138 = scmp.eq.s32.totalorder %s35, 0
      %p139 = por %p137, %p138
      %p140 = scmp.ne.s32.totalorder %s129, %s132
      %p141 = scmp.eq.s32.totalorder %s40, 1
      %p142 = por %p140, %p141
      %p143 = scmp.ne.s32.totalorder %s132, %s133
      %p144 = scmp.eq.s32.totalorder %s40, 0
      %p145 = por %p143, %p144
      %p146 = scmp.ne.s32.totalorder %s132, %s133
      %p147 = scmp.eq.s32.totalorder %s41, 1
      %p148 = por %p146, %p147
      %p150 = scmp.ne.s32.totalorder %s133, %s149
      %p151 = scmp.eq.s32.totalorder %s41, 0
      %p152 = por %p150, %p151
      %s153 = ssub.s32 %s35, %s42
      %p154 = scmp.eq.s32.totalorder %s153, 0
      %s156 = sadd.s32 %s155, 1
      %s157 = scalar_select %p154, %s155, %s156
      %p160 = pneg %p154
      %p161 = scmp.eq.s32.totalorder %s35, 1
      %p162 = por %p160, %p161
      %p163 = scmp.ne.s32.totalorder %s155, %s158
      %p164 = scmp.eq.s32.totalorder %s35, 0
      %p165 = por %p163, %p164
      %p166 = scmp.ne.s32.totalorder %s155, %s158
      %p167 = scmp.eq.s32.totalorder %s40, 1
      %p168 = por %p166, %p167
      %p169 = scmp.ne.s32.totalorder %s158, %s159
      %p170 = scmp.eq.s32.totalorder %s40, 0
      %p171 = por %p169, %p170
      %p172 = scmp.ne.s32.totalorder %s158, %s159
      %p173 = scmp.eq.s32.totalorder %s41, 1
      %p174 = por %p172, %p173
      %p176 = scmp.ne.s32.totalorder %s159, %s175
      %p177 = scmp.eq.s32.totalorder %s41, 0
      %p178 = por %p176, %p177
      %s179 = ssub.s32 %s35, %s42
      %p180 = scmp.eq.s32.totalorder %s179, 0
      %s182 = sadd.s32 %s181, 1
      %s183 = scalar_select %p180, %s181, %s182
      %p186 = pneg %p180
      %p187 = scmp.eq.s32.totalorder %s35, 1
      %p188 = por %p186, %p187
      %p189 = scmp.ne.s32.totalorder %s181, %s184
      %p190 = scmp.eq.s32.totalorder %s35, 0
      %p191 = por %p189, %p190
      %p192 = scmp.ne.s32.totalorder %s181, %s184
      %p193 = scmp.eq.s32.totalorder %s40, 1
      %p194 = por %p192, %p193
      %p195 = scmp.ne.s32.totalorder %s184, %s185
      %p196 = scmp.eq.s32.totalorder %s40, 0
      %p197 = por %p195, %p196
      %p198 = scmp.ne.s32.totalorder %s184, %s185
      %p199 = scmp.eq.s32.totalorder %s41, 1
      %p200 = por %p198, %p199
      %p202 = scmp.ne.s32.totalorder %s185, %s201
      %p203 = scmp.eq.s32.totalorder %s41, 0
      %p204 = por %p202, %p203
      %s205 = ssub.s32 %s35, %s42
      %p206 = scmp.eq.s32.totalorder %s205, 0
      %s208 = sadd.s32 %s207, 1
      %s209 = scalar_select %p206, %s207, %s208
      %p212 = pneg %p206
      %p213 = scmp.eq.s32.totalorder %s35, 1
      %p214 = por %p212, %p213
      %p215 = scmp.ne.s32.totalorder %s207, %s210
      %p216 = scmp.eq.s32.totalorder %s35, 0
      %p217 = por %p215, %p216
      %p218 = scmp.ne.s32.totalorder %s207, %s210
      %p219 = scmp.eq.s32.totalorder %s40, 1
      %p220 = por %p218, %p219
      %p221 = scmp.ne.s32.totalorder %s210, %s211
      %p222 = scmp.eq.s32.totalorder %s40, 0
      %p223 = por %p221, %p222
      %p224 = scmp.ne.s32.totalorder %s210, %s211
      %p225 = scmp.eq.s32.totalorder %s41, 1
      %p226 = por %p224, %p225
      %p228 = scmp.ne.s32.totalorder %s211, %s227
      %p229 = scmp.eq.s32.totalorder %s41, 0
      %p230 = por %p228, %p229
      %s231 = ssub.s32 %s35, %s42
      %p232 = scmp.eq.s32.totalorder %s231, 0
      %s234 = sadd.s32 %s233, 1
      %s235 = scalar_select %p232, %s233, %s234
      %p238 = pneg %p232
      %p239 = scmp.eq.s32.totalorder %s35, 1
      %p240 = por %p238, %p239
      %p241 = scmp.ne.s32.totalorder %s233, %s236
      %p242 = scmp.eq.s32.totalorder %s35, 0
      %p243 = por %p241, %p242
      %p244 = scmp.ne.s32.totalorder %s233, %s236
      %p245 = scmp.eq.s32.totalorder %s40, 1
      %p246 = por %p244, %p245
      %p247 = scmp.ne.s32.totalorder %s236, %s237
      %p248 = scmp.eq.s32.totalorder %s40, 0
      %p249 = por %p247, %p248
      %p250 = scmp.ne.s32.totalorder %s236, %s237
      %p251 = scmp.eq.s32.totalorder %s41, 1
      %p252 = por %p250, %p251
      %p254 = scmp.ne.s32.totalorder %s237, %s253
      %p255 = scmp.eq.s32.totalorder %s41, 0
      %p256 = por %p254, %p255
      %s257 = ssub.s32 %s35, %s42
      %p258 = scmp.eq.s32.totalorder %s257, 0
      %s260 = sadd.s32 %s259, 1
      %s261 = scalar_select %p258, %s259, %s260
      %p264 = pneg %p258
      %p265 = scmp.eq.s32.totalorder %s35, 1
      %p266 = por %p264, %p265
      %p267 = scmp.ne.s32.totalorder %s259, %s262
      %p268 = scmp.eq.s32.totalorder %s35, 0
      %p269 = por %p267, %p268
      %p270 = scmp.ne.s32.totalorder %s259, %s262
      %p271 = scmp.eq.s32.totalorder %s40, 1
      %p272 = por %p270, %p271
      %p273 = scmp.ne.s32.totalorder %s262, %s263
      %p274 = scmp.eq.s32.totalorder %s40, 0
      %p275 = por %p273, %p274
      %p276 = scmp.ne.s32.totalorder %s262, %s263
      %p277 = scmp.eq.s32.totalorder %s41, 1
      %p278 = por %p276, %p277
      %p280 = scmp.ne.s32.totalorder %s263, %s279
      %p281 = scmp.eq.s32.totalorder %s41, 0
      %p282 = por %p280, %p281
      %s283 = ssub.s32 %s35, %s42
      %p284 = scmp.eq.s32.totalorder %s283, 0
      %s286 = sadd.s32 %s285, 1
      %s287 = scalar_select %p284, %s285, %s286
      %p290 = pneg %p284
      %p291 = scmp.eq.s32.totalorder %s35, 1
      %p292 = por %p290, %p291
      %p293 = scmp.ne.s32.totalorder %s285, %s288
      %p294 = scmp.eq.s32.totalorder %s35, 0
      %p295 = por %p293, %p294
      %p296 = scmp.ne.s32.totalorder %s285, %s288
      %p297 = scmp.eq.s32.totalorder %s40, 1
      %p298 = por %p296, %p297
      %p299 = scmp.ne.s32.totalorder %s288, %s289
      %p300 = scmp.eq.s32.totalorder %s40, 0
      %p301 = por %p299, %p300
      %p302 = scmp.ne.s32.totalorder %s288, %s289
      %p303 = scmp.eq.s32.totalorder %s41, 1
      %p304 = por %p302, %p303
      %p306 = scmp.ne.s32.totalorder %s289, %s305
      %p307 = scmp.eq.s32.totalorder %s41, 0
      %p308 = por %p306, %p307
      %s309 = ssub.s32 %s35, %s42
      %p310 = scmp.eq.s32.totalorder %s309, 0
      %s312 = sadd.s32 %s311, 1
      %s313 = scalar_select %p310, %s311, %s312
      %p316 = pneg %p310
      %p317 = scmp.eq.s32.totalorder %s35, 1
      %p318 = por %p316, %p317
      %p319 = scmp.ne.s32.totalorder %s311, %s314
      %p320 = scmp.eq.s32.totalorder %s35, 0
      %p321 = por %p319, %p320
      %p322 = scmp.ne.s32.totalorder %s311, %s314
      %p323 = scmp.eq.s32.totalorder %s40, 1
      %p324 = por %p322, %p323
      %p325 = scmp.ne.s32.totalorder %s314, %s315
      %p326 = scmp.eq.s32.totalorder %s40, 0
      %p327 = por %p325, %p326
      %p328 = scmp.ne.s32.totalorder %s314, %s315
      %p329 = scmp.eq.s32.totalorder %s41, 1
      %p330 = por %p328, %p329
      %p332 = scmp.ne.s32.totalorder %s315, %s331
      %p333 = scmp.eq.s32.totalorder %s41, 0
      %p334 = por %p332, %p333
      %s335 = ssub.s32 %s35, %s42
      %p336 = scmp.eq.s32.totalorder %s335, 0
      %s338 = sadd.s32 %s337, 1
      %s339 = scalar_select %p336, %s337, %s338
      %p342 = pneg %p336
      %p343 = scmp.eq.s32.totalorder %s35, 1
      %p344 = por %p342, %p343
      %p345 = scmp.ne.s32.totalorder %s337, %s340
      %p346 = scmp.eq.s32.totalorder %s35, 0
      %p347 = por %p345, %p346
      %p348 = scmp.ne.s32.totalorder %s337, %s340
      %p349 = scmp.eq.s32.totalorder %s40, 1
      %p350 = por %p348, %p349
      %p351 = scmp.ne.s32.totalorder %s340, %s341
      %p352 = scmp.eq.s32.totalorder %s40, 0
      %p353 = por %p351, %p352
      %p354 = scmp.ne.s32.totalorder %s340, %s341
      %p355 = scmp.eq.s32.totalorder %s41, 1
      %p356 = por %p354, %p355
      %p358 = scmp.ne.s32.totalorder %s341, %s357
      %p359 = scmp.eq.s32.totalorder %s41, 0
      %p360 = por %p358, %p359
      %s361 = ssub.s32 %s35, %s42
      %p362 = scmp.eq.s32.totalorder %s361, 0
      %s364 = sadd.s32 %s363, 1
      %s365 = scalar_select %p362, %s363, %s364
      %p368 = pneg %p362
      %p369 = scmp.eq.s32.totalorder %s35, 1
      %p370 = por %p368, %p369
      %p371 = scmp.ne.s32.totalorder %s363, %s366
      %p372 = scmp.eq.s32.totalorder %s35, 0
      %p373 = por %p371, %p372
      %p374 = scmp.ne.s32.totalorder %s363, %s366
      %p375 = scmp.eq.s32.totalorder %s40, 1
      %p376 = por %p374, %p375
      %p377 = scmp.ne.s32.totalorder %s366, %s367
      %p378 = scmp.eq.s32.totalorder %s40, 0
      %p379 = por %p377, %p378
      %p380 = scmp.ne.s32.totalorder %s366, %s367
      %p381 = scmp.eq.s32.totalorder %s41, 1
      %p382 = por %p380, %p381
      %p384 = scmp.ne.s32.totalorder %s367, %s383
      %p385 = scmp.eq.s32.totalorder %s41, 0
      %p386 = por %p384, %p385
      %s388 = sadd.s32 %s387, 1
      %p391 = scmp.eq.s32.totalorder %s35, 1
      %p392 = scmp.ne.s32.totalorder %s387, %s389
      %p393 = scmp.eq.s32.totalorder %s35, 0
      %p394 = por %p392, %p393
      %p395 = scmp.ne.s32.totalorder %s387, %s389
      %p396 = scmp.eq.s32.totalorder %s40, 1
      %p397 = por %p395, %p396
      %p398 = scmp.ne.s32.totalorder %s389, %s390
      %p399 = scmp.eq.s32.totalorder %s40, 0
      %p400 = por %p398, %p399
      %p401 = scmp.ne.s32.totalorder %s389, %s390
      %p402 = scmp.eq.s32.totalorder %s41, 1
      %p403 = por %p401, %p402
      %p405 = scmp.ne.s32.totalorder %s390, %s404
      %p406 = scmp.eq.s32.totalorder %s41, 0
      %p407 = por %p405, %p406
      %s409 = sadd.s32 %s408, 1
      %p412 = scmp.eq.s32.totalorder %s35, 1
      %p413 = scmp.ne.s32.totalorder %s408, %s410
      %p414 = scmp.eq.s32.totalorder %s35, 0
      %p415 = por %p413, %p414
      %p416 = scmp.ne.s32.totalorder %s408, %s410
      %p417 = scmp.eq.s32.totalorder %s40, 1
      %p418 = por %p416, %p417
      %p419 = scmp.ne.s32.totalorder %s410, %s411
      %p420 = scmp.eq.s32.totalorder %s40, 0
      %p421 = por %p419, %p420
      %p422 = scmp.ne.s32.totalorder %s410, %s411
      %p423 = scmp.eq.s32.totalorder %s41, 1
      %p424 = por %p422, %p423
      %p426 = scmp.ne.s32.totalorder %s411, %s425
      %p427 = scmp.eq.s32.totalorder %s41, 0
      %p428 = por %p426, %p427
      %s429 = ssub.s32 %s35, %s42
      %p430 = scmp.eq.s32.totalorder %s429, 0
      %s432 = sadd.s32 %s431, 1
      %s433 = scalar_select %p430, %s431, %s432
      %p436 = pneg %p430
      %p437 = scmp.eq.s32.totalorder %s35, 1
      %p438 = por %p436, %p437
      %p439 = scmp.ne.s32.totalorder %s431, %s434
      %p440 = scmp.eq.s32.totalorder %s35, 0
      %p441 = por %p439, %p440
      %p442 = scmp.ne.s32.totalorder %s431, %s434
      %p443 = scmp.eq.s32.totalorder %s40, 1
      %p444 = por %p442, %p443
      %p445 = scmp.ne.s32.totalorder %s434, %s435
      %p446 = scmp.eq.s32.totalorder %s40, 0
      %p447 = por %p445, %p446
      %p448 = scmp.ne.s32.totalorder %s434, %s435
      %p449 = scmp.eq.s32.totalorder %s41, 1
      %p450 = por %p448, %p449
      %p452 = scmp.ne.s32.totalorder %s435, %s451
      %p453 = scmp.eq.s32.totalorder %s41, 0
      %p454 = por %p452, %p453
      %s455 = ssub.s32 %s35, %s42
      %p456 = scmp.eq.s32.totalorder %s455, 0
      %s458 = sadd.s32 %s457, 1
      %s459 = scalar_select %p456, %s457, %s458
      %p462 = pneg %p456
      %p463 = scmp.eq.s32.totalorder %s35, 1
      %p464 = por %p462, %p463
      %p465 = scmp.ne.s32.totalorder %s457, %s460
      %p466 = scmp.eq.s32.totalorder %s35, 0
      %p467 = por %p465, %p466
      %p468 = scmp.ne.s32.totalorder %s457, %s460
      %p469 = scmp.eq.s32.totalorder %s40, 1
      %p470 = por %p468, %p469
      %p471 = scmp.ne.s32.totalorder %s460, %s461
      %p472 = scmp.eq.s32.totalorder %s40, 0
      %p473 = por %p471, %p472
      %p474 = scmp.ne.s32.totalorder %s460, %s461
      %p475 = scmp.eq.s32.totalorder %s41, 1
      %p476 = por %p474, %p475
      %p478 = scmp.ne.s32.totalorder %s461, %s477
      %p479 = scmp.eq.s32.totalorder %s41, 0
      %p480 = por %p478, %p479
      %s481 = ssub.s32 %s35, %s42
      %p482 = scmp.eq.s32.totalorder %s481, 0
      %s484 = sadd.s32 %s483, 1
      %s485 = scalar_select %p482, %s483, %s484
      %p488 = pneg %p482
      %p489 = scmp.eq.s32.totalorder %s35, 1
      %p490 = por %p488, %p489
      %p491 = scmp.ne.s32.totalorder %s483, %s486
      %p492 = scmp.eq.s32.totalorder %s35, 0
      %p493 = por %p491, %p492
      %p494 = scmp.ne.s32.totalorder %s483, %s486
      %p495 = scmp.eq.s32.totalorder %s40, 1
      %p496 = por %p494, %p495
      %p497 = scmp.ne.s32.totalorder %s486, %s487
      %p498 = scmp.eq.s32.totalorder %s40, 0
      %p499 = por %p497, %p498
      %p500 = scmp.ne.s32.totalorder %s486, %s487
      %p501 = scmp.eq.s32.totalorder %s41, 1
      %p502 = por %p500, %p501
      %p504 = scmp.ne.s32.totalorder %s487, %s503
      %p505 = scmp.eq.s32.totalorder %s41, 0
      %p506 = por %p504, %p505
      %s507 = ssub.s32 %s35, %s42
      %p508 = scmp.eq.s32.totalorder %s507, 0
      %s510 = sadd.s32 %s509, 1
      %s511 = scalar_select %p508, %s509, %s510
      %p514 = pneg %p508
      %p515 = scmp.eq.s32.totalorder %s35, 1
      %p516 = por %p514, %p515
      %p517 = scmp.ne.s32.totalorder %s509, %s512
      %p518 = scmp.eq.s32.totalorder %s35, 0
      %p519 = por %p517, %p518
      %p520 = scmp.ne.s32.totalorder %s509, %s512
      %p521 = scmp.eq.s32.totalorder %s40, 1
      %p522 = por %p520, %p521
      %p523 = scmp.ne.s32.totalorder %s512, %s513
      %p524 = scmp.eq.s32.totalorder %s40, 0
      %p525 = por %p523, %p524
      %p526 = scmp.ne.s32.totalorder %s512, %s513
      %p527 = scmp.eq.s32.totalorder %s41, 1
      %p528 = por %p526, %p527
      %p530 = scmp.ne.s32.totalorder %s513, %s529
      %p531 = scmp.eq.s32.totalorder %s41, 0
      %p532 = por %p530, %p531
      %s534 = sadd.s32 %s533, 1
      %p537 = scmp.eq.s32.totalorder %s35, 1
      %p538 = scmp.ne.s32.totalorder %s533, %s535
      %p539 = scmp.eq.s32.totalorder %s35, 0
      %p540 = por %p538, %p539
      %p541 = scmp.ne.s32.totalorder %s533, %s535
      %p542 = scmp.eq.s32.totalorder %s40, 1
      %p543 = por %p541, %p542
      %p544 = scmp.ne.s32.totalorder %s535, %s536
      %p545 = scmp.eq.s32.totalorder %s40, 0
      %p546 = por %p544, %p545
      %p547 = scmp.ne.s32.totalorder %s535, %s536
      %p548 = scmp.eq.s32.totalorder %s41, 1
      %p549 = por %p547, %p548
      %p551 = scmp.ne.s32.totalorder %s536, %s550
      %p552 = scmp.eq.s32.totalorder %s41, 0
      %p553 = por %p551, %p552
      %s554 = ssub.s32 %s35, %s42
      %p555 = scmp.eq.s32.totalorder %s554, 0
      %s557 = sadd.s32 %s556, 1
      %s558 = scalar_select %p555, %s556, %s557
      %p561 = pneg %p555
      %p562 = scmp.eq.s32.totalorder %s35, 1
      %p563 = por %p561, %p562
      %p564 = scmp.ne.s32.totalorder %s556, %s559
      %p565 = scmp.eq.s32.totalorder %s35, 0
      %p566 = por %p564, %p565
      %p567 = scmp.ne.s32.totalorder %s556, %s559
      %p568 = scmp.eq.s32.totalorder %s40, 1
      %p569 = por %p567, %p568
      %p570 = scmp.ne.s32.totalorder %s559, %s560
      %p571 = scmp.eq.s32.totalorder %s40, 0
      %p572 = por %p570, %p571
      %p573 = scmp.ne.s32.totalorder %s559, %s560
      %p574 = scmp.eq.s32.totalorder %s41, 1
      %p575 = por %p573, %p574
      %p577 = scmp.ne.s32.totalorder %s560, %s576
      %p578 = scmp.eq.s32.totalorder %s41, 0
      %p579 = por %p577, %p578
      %s580 = ssub.s32 %s35, %s42
      %p581 = scmp.eq.s32.totalorder %s580, 0
      %s583 = sadd.s32 %s582, 1
      %s584 = scalar_select %p581, %s582, %s583
      %p587 = pneg %p581
      %p588 = scmp.eq.s32.totalorder %s35, 1
      %p589 = por %p587, %p588
      %p590 = scmp.ne.s32.totalorder %s582, %s585
      %p591 = scmp.eq.s32.totalorder %s35, 0
      %p592 = por %p590, %p591
      %p593 = scmp.ne.s32.totalorder %s582, %s585
      %p594 = scmp.eq.s32.totalorder %s40, 1
      %p595 = por %p593, %p594
      %p596 = scmp.ne.s32.totalorder %s585, %s586
      %p597 = scmp.eq.s32.totalorder %s40, 0
      %p598 = por %p596, %p597
      %p599 = scmp.ne.s32.totalorder %s585, %s586
      %p600 = scmp.eq.s32.totalorder %s41, 1
      %p601 = por %p599, %p600
      %p603 = scmp.ne.s32.totalorder %s586, %s602
      %p604 = scmp.eq.s32.totalorder %s41, 0
      %p605 = por %p603, %p604
      %s606 = ssub.s32 %s35, %s42
      %p607 = scmp.eq.s32.totalorder %s606, 0
      %s609 = sadd.s32 %s608, 1
      %s610 = scalar_select %p607, %s608, %s609
      %p613 = pneg %p607
      %p614 = scmp.eq.s32.totalorder %s35, 1
      %p615 = por %p613, %p614
      %p616 = scmp.ne.s32.totalorder %s608, %s611
      %p617 = scmp.eq.s32.totalorder %s35, 0
      %p618 = por %p616, %p617
      %p619 = scmp.ne.s32.totalorder %s608, %s611
      %p620 = scmp.eq.s32.totalorder %s40, 1
      %p621 = por %p619, %p620
      %p622 = scmp.ne.s32.totalorder %s611, %s612
      %p623 = scmp.eq.s32.totalorder %s40, 0
      %p624 = por %p622, %p623
      %p625 = scmp.ne.s32.totalorder %s611, %s612
      %p626 = scmp.eq.s32.totalorder %s41, 1
      %p627 = por %p625, %p626
      %p629 = scmp.ne.s32.totalorder %s612, %s628
      %p630 = scmp.eq.s32.totalorder %s41, 0
      %p631 = por %p629, %p630
      %s632 = ssub.s32 %s35, %s42
      %p633 = scmp.eq.s32.totalorder %s632, 0
      %s635 = sadd.s32 %s634, 1
      %s636 = scalar_select %p633, %s634, %s635
      %p639 = pneg %p633
      %p640 = scmp.eq.s32.totalorder %s35, 1
      %p641 = por %p639, %p640
      %p642 = scmp.ne.s32.totalorder %s634, %s637
      %p643 = scmp.eq.s32.totalorder %s35, 0
      %p644 = por %p642, %p643
      %p645 = scmp.ne.s32.totalorder %s634, %s637
      %p646 = scmp.eq.s32.totalorder %s40, 1
      %p647 = por %p645, %p646
      %p648 = scmp.ne.s32.totalorder %s637, %s638
      %p649 = scmp.eq.s32.totalorder %s40, 0
      %p650 = por %p648, %p649
      %p651 = scmp.ne.s32.totalorder %s637, %s638
      %p652 = scmp.eq.s32.totalorder %s41, 1
      %p653 = por %p651, %p652
      %p655 = scmp.ne.s32.totalorder %s638, %s654
      %p656 = scmp.eq.s32.totalorder %s41, 0
      %p657 = por %p655, %p656
      %p658 = scmp.le.s32.totalorder 1, %s35
      %p659 = scmp.lt.s32.totalorder %s35, 3
      %p660 = pnand %p658, %p659
      %p661 = pneg %p660
      // Predicated region
      $region9: #{encoder_ctc_forward.1} parent=5 // pred_check
        _
      $region10: #{encoder_ctc_forward.1} parent=5 // pred_check_branch
        %663 = sbr.rel (%p660) target = $region12
      $region11: #{encoder_ctc_forward.1} parent=5 // pred_region
        %s664 = ssub.s32 %s35, 1
        // Predicated region
        $region13: #{encoder_ctc_forward.1} parent=11 // pred_check
          %p665 = pneg %p56
        $region14: #{encoder_ctc_forward.1} parent=11 // pred_check_branch
          %667 = sbr.rel (%p665) target = $region16
        $region15: #{encoder_ctc_forward.1} parent=11 // pred_region
          _
        $region16: #{encoder_ctc_forward.1} parent=11 // pred_fallthru
          _
        // Predicated region
        $region17: #{encoder_ctc_forward.1} parent=11 // pred_check
          %p668 = pneg %p77
        $region18: #{encoder_ctc_forward.1} parent=11 // pred_check_branch
          %670 = sbr.rel (%p668) target = $region20
        $region19: #{encoder_ctc_forward.1} parent=11 // pred_region
          %s672 = ssub.s32 1024, 1024
          %673 = vsyncadd [#allocation8], %s672
          %s674 = sshll.u32 [#allocation7], 4
          %s675 = int_to_ptr.vmem [resolvable:$true] %s674
          %680 = dma.hbm_to_vmem [thread:$0]  %s1, 1024, %s675, [#allocation8], 64, 64, 4
        $region20: #{encoder_ctc_forward.1} parent=11 // pred_fallthru
          _
        // Predicated region
        $region21: #{encoder_ctc_forward.1} parent=11 // pred_check
          %p681 = pneg %p98
        $region22: #{encoder_ctc_forward.1} parent=11 // pred_check_branch
          %683 = sbr.rel (%p681) target = $region24
        $region23: #{encoder_ctc_forward.1} parent=11 // pred_region
          %s685 = ssub.s32 16, 16
          %686 = vsyncadd [#allocation11], %s685
          %s688 = sshll.u32 [#allocation10], 4
          %s689 = int_to_ptr.vmem [resolvable:$true] %s688
          %691 = dma.hbm_to_vmem [thread:$0]  %s2, 16, %s689, [#allocation11]
        $region24: #{encoder_ctc_forward.1} parent=11 // pred_fallthru
          _
        // Predicated region
        $region25: #{encoder_ctc_forward.1} parent=11 // pred_check
          %p692 = pneg %p119
        $region26: #{encoder_ctc_forward.1} parent=11 // pred_check_branch
          %694 = sbr.rel (%p692) target = $region28
        $region27: #{encoder_ctc_forward.1} parent=11 // pred_region
          _
        $region28: #{encoder_ctc_forward.1} parent=11 // pred_fallthru
          _
        // Predicated region
        $region29: #{encoder_ctc_forward.1} parent=11 // pred_check
          %p695 = pneg %p400
        $region30: #{encoder_ctc_forward.1} parent=11 // pred_check_branch
          %697 = sbr.rel (%p695) target = $region32
        $region31: #{encoder_ctc_forward.1} parent=11 // pred_region
          %s699 = ssub.s32 2048, 2048
          %700 = vsyncadd [#allocation11], %s699
          %s701 = sshll.u32 [#allocation18], 4
          %s702 = int_to_ptr.vmem [resolvable:$true] %s701
          %707 = dma.hbm_to_vmem [thread:$0]  %s14, 2048, %s702, [#allocation11], 128, 128, 8
        $region32: #{encoder_ctc_forward.1} parent=11 // pred_fallthru
          _
        // Predicated region
        $region33: #{encoder_ctc_forward.1} parent=11 // pred_check
          %p708 = pneg %p421
        $region34: #{encoder_ctc_forward.1} parent=11 // pred_check_branch
          %710 = sbr.rel (%p708) target = $region36
        $region35: #{encoder_ctc_forward.1} parent=11 // pred_region
          %s712 = ssub.s32 32, 32
          %713 = vsyncadd [#allocation20], %s712
          %s715 = sshll.u32 [#allocation19], 4
          %s716 = int_to_ptr.vmem [resolvable:$true] %s715
          %718 = dma.hbm_to_vmem [thread:$0]  %s15, 32, %s716, [#allocation20]
        $region36: #{encoder_ctc_forward.1} parent=11 // pred_fallthru
          _
      $region12: #{encoder_ctc_forward.1} parent=5 // pred_fallthru
        _
      %p719 = scmp.lt.s32.totalorder %s35, 2
      // Predicated region
      $region37: #{encoder_ctc_forward.1} parent=5 // pred_check
        %p720 = pneg %p719
      $region38: #{encoder_ctc_forward.1} parent=5 // pred_check_branch
        %722 = sbr.rel (%p720) target = $region40
      $region39: #{encoder_ctc_forward.1} parent=5 // pred_region
        // Predicated region
        $region41: #{encoder_ctc_forward.1} parent=39 // pred_check
          %p723 = pneg %p139
        $region42: #{encoder_ctc_forward.1} parent=39 // pred_check_branch
          %725 = sbr.rel (%p723) target = $region44
        $region43: #{encoder_ctc_forward.1} parent=39 // pred_region
          %s726 = sand.u32 %s35, 1
          %s727 = scalar_lea.sflag [#allocation8], %s726
          %s728 = sand.u32 %s129, 1
          %s729 = smul.addr %s728, 192
          %s730 = scalar_lea.vmem [#allocation12], %s729
          %s732 = ssub.s32 3072, 3072
          %733 = vsyncadd %s727, %s732
          %s734 = smul.addr %s35, 48
          %s735 = smul.addr %s734, 64
          %s736 = scalar_lea.hbm %s4, %s735
          %s737 = sshll.u32 %s730, 4
          %s738 = int_to_ptr.vmem [resolvable:$true] %s737
          %743 = dma.hbm_to_vmem [thread:$0]  %s736, 3072, %s738, %s727, 192, 192, 12
        $region44: #{encoder_ctc_forward.1} parent=39 // pred_fallthru
          _
        // Predicated region
        $region45: #{encoder_ctc_forward.1} parent=39 // pred_check
          %p744 = pneg %p165
        $region46: #{encoder_ctc_forward.1} parent=39 // pred_check_branch
          %746 = sbr.rel (%p744) target = $region48
        $region47: #{encoder_ctc_forward.1} parent=39 // pred_region
          %p747 = scmp.lt.s32.totalorder %s35, 1
          %s748 = scalar_select %p747, %s35, 1
          %s749 = smul.addr %s748, 3
          %s750 = scalar_lea.vmem %s5, %s749
        $region48: #{encoder_ctc_forward.1} parent=39 // pred_fallthru
          _
        // Predicated region
        $region49: #{encoder_ctc_forward.1} parent=39 // pred_check
          %p751 = pneg %p191
        $region50: #{encoder_ctc_forward.1} parent=39 // pred_check_branch
          %753 = sbr.rel (%p751) target = $region52
        $region51: #{encoder_ctc_forward.1} parent=39 // pred_region
          %s754 = sand.u32 %s35, 1
          %s755 = scalar_lea.sflag [#allocation8], %s754
          %s756 = sand.u32 %s181, 1
          %s757 = smul.addr %s756, 64
          %s758 = scalar_lea.vmem [#allocation13], %s757
          %s760 = ssub.s32 1024, 1024
          %761 = vsyncadd %s755, %s760
          %s762 = smul.addr %s35, 16
          %s763 = smul.addr %s762, 64
          %s764 = scalar_lea.hbm %s6, %s763
          %s765 = sshll.u32 %s758, 4
          %s766 = int_to_ptr.vmem [resolvable:$true] %s765
          %771 = dma.hbm_to_vmem [thread:$0]  %s764, 1024, %s766, %s755, 64, 64, 4
        $region52: #{encoder_ctc_forward.1} parent=39 // pred_fallthru
          _
        // Predicated region
        $region53: #{encoder_ctc_forward.1} parent=39 // pred_check
          %p772 = pneg %p217
        $region54: #{encoder_ctc_forward.1} parent=39 // pred_check_branch
          %774 = sbr.rel (%p772) target = $region56
        $region55: #{encoder_ctc_forward.1} parent=39 // pred_region
          %p775 = scmp.lt.s32.totalorder %s35, 1
          %s776 = scalar_select %p775, %s35, 1
          %s777 = scalar_lea.vmem %s7, %s776
        $region56: #{encoder_ctc_forward.1} parent=39 // pred_fallthru
          _
        // Predicated region
        $region57: #{encoder_ctc_forward.1} parent=39 // pred_check
          %p778 = pneg %p243
        $region58: #{encoder_ctc_forward.1} parent=39 // pred_check_branch
          %780 = sbr.rel (%p778) target = $region60
        $region59: #{encoder_ctc_forward.1} parent=39 // pred_region
          %p781 = scmp.lt.s32.totalorder %s35, 1
          %s782 = scalar_select %p781, %s35, 1
          %s783 = smul.addr %s782, 8
          %s784 = scalar_lea.vmem %s8, %s783
        $region60: #{encoder_ctc_forward.1} parent=39 // pred_fallthru
          _
        // Predicated region
        $region61: #{encoder_ctc_forward.1} parent=39 // pred_check
          %p785 = pneg %p269
        $region62: #{encoder_ctc_forward.1} parent=39 // pred_check_branch
          %787 = sbr.rel (%p785) target = $region64
        $region63: #{encoder_ctc_forward.1} parent=39 // pred_region
          %p788 = scmp.lt.s32.totalorder %s35, 1
          %s789 = scalar_select %p788, %s35, 1
          %s790 = smul.addr %s789, 32
          %s791 = smul.addr %s790, 4
          %s792 = scalar_lea.vmem %s9, %s791
        $region64: #{encoder_ctc_forward.1} parent=39 // pred_fallthru
          _
        // Predicated region
        $region65: #{encoder_ctc_forward.1} parent=39 // pred_check
          %p793 = pneg %p295
        $region66: #{encoder_ctc_forward.1} parent=39 // pred_check_branch
          %795 = sbr.rel (%p793) target = $region68
        $region67: #{encoder_ctc_forward.1} parent=39 // pred_region
          %s796 = sand.u32 %s35, 1
          %s797 = scalar_lea.sflag [#allocation8], %s796
          %s798 = sand.u32 %s285, 1
          %s799 = smul.addr %s798, 2
          %s800 = scalar_lea.vmem [#allocation14], %s799
          %s802 = ssub.s32 32, 32
          %803 = vsyncadd %s797, %s802
          %s804 = smul.addr %s35, 2
          %s805 = smul.addr %s804, 16
          %s806 = scalar_lea.hbm %s10, %s805
          %s808 = sshll.u32 %s800, 4
          %s809 = int_to_ptr.vmem [resolvable:$true] %s808
          %811 = dma.hbm_to_vmem [thread:$0]  %s806, 32, %s809, %s797
        $region68: #{encoder_ctc_forward.1} parent=39 // pred_fallthru
          _
        // Predicated region
        $region69: #{encoder_ctc_forward.1} parent=39 // pred_check
          %p812 = pneg %p321
        $region70: #{encoder_ctc_forward.1} parent=39 // pred_check_branch
          %814 = sbr.rel (%p812) target = $region72
        $region71: #{encoder_ctc_forward.1} parent=39 // pred_region
          %s815 = sand.u32 %s35, 1
          %s816 = scalar_lea.sflag [#allocation8], %s815
          %s817 = sand.u32 %s311, 1
          %s818 = smul.addr %s817, 128
          %s819 = scalar_lea.vmem [#allocation15], %s818
          %s821 = ssub.s32 2048, 2048
          %822 = vsyncadd %s816, %s821
          %s823 = smul.addr %s35, 32
          %s824 = smul.addr %s823, 64
          %s825 = scalar_lea.hbm %s11, %s824
          %s826 = sshll.u32 %s819, 4
          %s827 = int_to_ptr.vmem [resolvable:$true] %s826
          %832 = dma.hbm_to_vmem [thread:$0]  %s825, 2048, %s827, %s816, 64, 64, 4
        $region72: #{encoder_ctc_forward.1} parent=39 // pred_fallthru
          _
        // Predicated region
        $region73: #{encoder_ctc_forward.1} parent=39 // pred_check
          %p833 = pneg %p347
        $region74: #{encoder_ctc_forward.1} parent=39 // pred_check_branch
          %835 = sbr.rel (%p833) target = $region76
        $region75: #{encoder_ctc_forward.1} parent=39 // pred_region
          %s836 = sand.u32 %s35, 1
          %s837 = scalar_lea.sflag [#allocation8], %s836
          %s838 = sand.u32 %s337, 1
          %s839 = scalar_lea.vmem [#allocation16], %s838
          %s841 = ssub.s32 16, 16
          %842 = vsyncadd %s837, %s841
          %s843 = smul.addr %s35, 16
          %s844 = scalar_lea.hbm %s12, %s843
          %s846 = sshll.u32 %s839, 4
          %s847 = int_to_ptr.vmem [resolvable:$true] %s846
          %849 = dma.hbm_to_vmem [thread:$0]  %s844, 16, %s847, %s837
        $region76: #{encoder_ctc_forward.1} parent=39 // pred_fallthru
          _
        // Predicated region
        $region77: #{encoder_ctc_forward.1} parent=39 // pred_check
          %p850 = pneg %p373
        $region78: #{encoder_ctc_forward.1} parent=39 // pred_check_branch
          %852 = sbr.rel (%p850) target = $region80
        $region79: #{encoder_ctc_forward.1} parent=39 // pred_region
          %s853 = sand.u32 %s35, 1
          %s854 = scalar_lea.sflag [#allocation8], %s853
          %s855 = sand.u32 %s363, 1
          %s856 = smul.addr %s855, 8
          %s857 = scalar_lea.vmem [#allocation17], %s856
          %s859 = ssub.s32 128, 128
          %860 = vsyncadd %s854, %s859
          %s861 = smul.addr %s35, 128
          %s862 = scalar_lea.hbm %s13, %s861
          %s864 = sshll.u32 %s857, 4
          %s865 = int_to_ptr.vmem [resolvable:$true] %s864
          %867 = dma.hbm_to_vmem [thread:$0]  %s862, 128, %s865, %s854
        $region80: #{encoder_ctc_forward.1} parent=39 // pred_fallthru
          _
        // Predicated region
        $region81: #{encoder_ctc_forward.1} parent=39 // pred_check
          %p868 = pneg %p441
        $region82: #{encoder_ctc_forward.1} parent=39 // pred_check_branch
          %870 = sbr.rel (%p868) target = $region84
        $region83: #{encoder_ctc_forward.1} parent=39 // pred_region
          %p871 = scmp.lt.s32.totalorder %s35, 1
          %s872 = scalar_select %p871, %s35, 1
          %s873 = smul.addr %s872, 4
          %s874 = scalar_lea.vmem %s16, %s873
        $region84: #{encoder_ctc_forward.1} parent=39 // pred_fallthru
          _
        // Predicated region
        $region85: #{encoder_ctc_forward.1} parent=39 // pred_check
          %p875 = pneg %p467
        $region86: #{encoder_ctc_forward.1} parent=39 // pred_check_branch
          %877 = sbr.rel (%p875) target = $region88
        $region87: #{encoder_ctc_forward.1} parent=39 // pred_region
          %p878 = scmp.lt.s32.totalorder %s35, 1
          %s879 = scalar_select %p878, %s35, 1
          %s880 = smul.addr %s879, 8
          %s881 = scalar_lea.vmem %s17, %s880
        $region88: #{encoder_ctc_forward.1} parent=39 // pred_fallthru
          _
        // Predicated region
        $region89: #{encoder_ctc_forward.1} parent=39 // pred_check
          %p882 = pneg %p493
        $region90: #{encoder_ctc_forward.1} parent=39 // pred_check_branch
          %884 = sbr.rel (%p882) target = $region92
        $region91: #{encoder_ctc_forward.1} parent=39 // pred_region
          %p885 = scmp.lt.s32.totalorder %s35, 1
          %s886 = scalar_select %p885, %s35, 1
          %s887 = smul.addr %s886, 8
          %s888 = scalar_lea.vmem %s18, %s887
        $region92: #{encoder_ctc_forward.1} parent=39 // pred_fallthru
          _
        // Predicated region
        $region93: #{encoder_ctc_forward.1} parent=39 // pred_check
          %p889 = pneg %p519
        $region94: #{encoder_ctc_forward.1} parent=39 // pred_check_branch
          %891 = sbr.rel (%p889) target = $region96
        $region95: #{encoder_ctc_forward.1} parent=39 // pred_region
          %p892 = scmp.lt.s32.totalorder %s35, 1
          %s893 = scalar_select %p892, %s35, 1
          %s894 = smul.addr %s893, 4
          %s895 = scalar_lea.vmem %s19, %s894
        $region96: #{encoder_ctc_forward.1} parent=39 // pred_fallthru
          _
      $region40: #{encoder_ctc_forward.1} parent=5 // pred_fallthru
        _
      %p896 = scmp.le.s32.totalorder 1, %s35
      %p897 = scmp.lt.s32.totalorder %s35, 3
      %p898 = pnand %p896, %p897
      %p899 = pneg %p898
      // Predicated region
      $region97: #{encoder_ctc_forward.1} parent=5 // pred_check
        _
      $region98: #{encoder_ctc_forward.1} parent=5 // pred_check_branch
        %901 = sbr.rel (%p898) target = $region100
      $region99: #{encoder_ctc_forward.1} parent=5 // pred_region
        %s902 = ssub.s32 %s35, 1
        // Predicated region
        $region101: #{encoder_ctc_forward.1} parent=99 // pred_check
          %p903 = pneg %p77
        $region102: #{encoder_ctc_forward.1} parent=99 // pred_check_branch
          %905 = sbr.rel (%p903) target = $region104
        $region103: #{encoder_ctc_forward.1} parent=99 // pred_region
          %906 = dma.done [#allocation8], 1024
        $region104: #{encoder_ctc_forward.1} parent=99 // pred_fallthru
          _
        // Predicated region
        $region105: #{encoder_ctc_forward.1} parent=99 // pred_check
          %p907 = pneg %p98
        $region106: #{encoder_ctc_forward.1} parent=99 // pred_check_branch
          %909 = sbr.rel (%p907) target = $region108
        $region107: #{encoder_ctc_forward.1} parent=99 // pred_region
          %910 = dma.done [#allocation11], 16
        $region108: #{encoder_ctc_forward.1} parent=99 // pred_fallthru
          _
        %s911 = sand.u32 %s40, 1
        %s912 = scalar_lea.sflag [#allocation8], %s911
        %s913 = sand.u32 %s132, 1
        %s914 = smul.addr %s913, 192
        %s915 = scalar_lea.vmem [#allocation12], %s914
        // Predicated region
        $region109: #{encoder_ctc_forward.1} parent=99 // pred_check
          %p916 = pneg %p145
        $region110: #{encoder_ctc_forward.1} parent=99 // pred_check_branch
          %918 = sbr.rel (%p916) target = $region112
        $region111: #{encoder_ctc_forward.1} parent=99 // pred_region
          %919 = dma.done %s912, 3072
        $region112: #{encoder_ctc_forward.1} parent=99 // pred_fallthru
          _
        %s920 = sand.u32 %s40, 1
        %s921 = scalar_lea.sflag [#allocation8], %s920
        %s922 = sand.u32 %s184, 1
        %s923 = smul.addr %s922, 64
        %s924 = scalar_lea.vmem [#allocation13], %s923
        // Predicated region
        $region113: #{encoder_ctc_forward.1} parent=99 // pred_check
          %p925 = pneg %p197
        $region114: #{encoder_ctc_forward.1} parent=99 // pred_check_branch
          %927 = sbr.rel (%p925) target = $region116
        $region115: #{encoder_ctc_forward.1} parent=99 // pred_region
          %928 = dma.done %s921, 1024
        $region116: #{encoder_ctc_forward.1} parent=99 // pred_fallthru
          _
        %s929 = sand.u32 %s40, 1
        %s930 = scalar_lea.sflag [#allocation8], %s929
        %s931 = sand.u32 %s288, 1
        %s932 = smul.addr %s931, 2
        %s933 = scalar_lea.vmem [#allocation14], %s932
        // Predicated region
        $region117: #{encoder_ctc_forward.1} parent=99 // pred_check
          %p934 = pneg %p301
        $region118: #{encoder_ctc_forward.1} parent=99 // pred_check_branch
          %936 = sbr.rel (%p934) target = $region120
        $region119: #{encoder_ctc_forward.1} parent=99 // pred_region
          %937 = dma.done %s930, 32
        $region120: #{encoder_ctc_forward.1} parent=99 // pred_fallthru
          _
        %s938 = sand.u32 %s40, 1
        %s939 = scalar_lea.sflag [#allocation8], %s938
        %s940 = sand.u32 %s314, 1
        %s941 = smul.addr %s940, 128
        %s942 = scalar_lea.vmem [#allocation15], %s941
        // Predicated region
        $region121: #{encoder_ctc_forward.1} parent=99 // pred_check
          %p943 = pneg %p327
        $region122: #{encoder_ctc_forward.1} parent=99 // pred_check_branch
          %945 = sbr.rel (%p943) target = $region124
        $region123: #{encoder_ctc_forward.1} parent=99 // pred_region
          %946 = dma.done %s939, 2048
        $region124: #{encoder_ctc_forward.1} parent=99 // pred_fallthru
          _
        %s947 = sand.u32 %s40, 1
        %s948 = scalar_lea.sflag [#allocation8], %s947
        %s949 = sand.u32 %s340, 1
        %s950 = scalar_lea.vmem [#allocation16], %s949
        // Predicated region
        $region125: #{encoder_ctc_forward.1} parent=99 // pred_check
          %p951 = pneg %p353
        $region126: #{encoder_ctc_forward.1} parent=99 // pred_check_branch
          %953 = sbr.rel (%p951) target = $region128
        $region127: #{encoder_ctc_forward.1} parent=99 // pred_region
          %954 = dma.done %s948, 16
        $region128: #{encoder_ctc_forward.1} parent=99 // pred_fallthru
          _
        %s955 = sand.u32 %s40, 1
        %s956 = scalar_lea.sflag [#allocation8], %s955
        %s957 = sand.u32 %s366, 1
        %s958 = smul.addr %s957, 8
        %s959 = scalar_lea.vmem [#allocation17], %s958
        // Predicated region
        $region129: #{encoder_ctc_forward.1} parent=99 // pred_check
          %p960 = pneg %p379
        $region130: #{encoder_ctc_forward.1} parent=99 // pred_check_branch
          %962 = sbr.rel (%p960) target = $region132
        $region131: #{encoder_ctc_forward.1} parent=99 // pred_region
          %963 = dma.done %s956, 128
        $region132: #{encoder_ctc_forward.1} parent=99 // pred_fallthru
          _
        // Predicated region
        $region133: #{encoder_ctc_forward.1} parent=99 // pred_check
          %p964 = pneg %p400
        $region134: #{encoder_ctc_forward.1} parent=99 // pred_check_branch
          %966 = sbr.rel (%p964) target = $region136
        $region135: #{encoder_ctc_forward.1} parent=99 // pred_region
          %967 = dma.done [#allocation11], 2048
        $region136: #{encoder_ctc_forward.1} parent=99 // pred_fallthru
          _
        // Predicated region
        $region137: #{encoder_ctc_forward.1} parent=99 // pred_check
          %p968 = pneg %p421
        $region138: #{encoder_ctc_forward.1} parent=99 // pred_check_branch
          %970 = sbr.rel (%p968) target = $region140
        $region139: #{encoder_ctc_forward.1} parent=99 // pred_region
          %971 = dma.done [#allocation20], 32
        $region140: #{encoder_ctc_forward.1} parent=99 // pred_fallthru
          _
        %p972 = pneg %p56
        %p973 = pneg %p53
        %p974 = pneg %p77
        %p975 = pneg %p74
        %p976 = pneg %p98
        %p977 = pneg %p95
        %p978 = pneg %p119
        %p979 = pneg %p116
        %s980 = sand.u32 %s40, 1
        %s981 = scalar_lea.sflag [#allocation8], %s980
        %s982 = sand.u32 %s132, 1
        %s983 = smul.addr %s982, 192
        %s984 = scalar_lea.vmem [#allocation12], %s983
        %p985 = pneg %p145
        %p986 = pneg %p142
        %p987 = scmp.lt.s32.totalorder %s40, 1
        %s988 = scalar_select %p987, %s40, 1
        %s989 = smul.addr %s988, 3
        %s990 = scalar_lea.vmem %s5, %s989
        %p991 = pneg %p171
        %p992 = pneg %p168
        %s993 = sand.u32 %s40, 1
        %s994 = scalar_lea.sflag [#allocation8], %s993
        %s995 = sand.u32 %s184, 1
        %s996 = smul.addr %s995, 64
        %s997 = scalar_lea.vmem [#allocation13], %s996
        %p998 = pneg %p197
        %p999 = pneg %p194
        %p1000 = scmp.lt.s32.totalorder %s40, 1
        %s1001 = scalar_select %p1000, %s40, 1
        %s1002 = scalar_lea.vmem %s7, %s1001
        %p1003 = pneg %p223
        %p1004 = pneg %p220
        %p1005 = scmp.lt.s32.totalorder %s40, 1
        %s1006 = scalar_select %p1005, %s40, 1
        %s1007 = smul.addr %s1006, 8
        %s1008 = scalar_lea.vmem %s8, %s1007
        %p1009 = pneg %p249
        %p1010 = pneg %p246
        %p1011 = scmp.lt.s32.totalorder %s40, 1
        %s1012 = scalar_select %p1011, %s40, 1
        %s1013 = smul.addr %s1012, 32
        %s1014 = smul.addr %s1013, 4
        %s1015 = scalar_lea.vmem %s9, %s1014
        %p1016 = pneg %p275
        %p1017 = pneg %p272
        %s1018 = sand.u32 %s40, 1
        %s1019 = scalar_lea.sflag [#allocation8], %s1018
        %s1020 = sand.u32 %s288, 1
        %s1021 = smul.addr %s1020, 2
        %s1022 = scalar_lea.vmem [#allocation14], %s1021
        %p1023 = pneg %p301
        %p1024 = pneg %p298
        %s1025 = sand.u32 %s40, 1
        %s1026 = scalar_lea.sflag [#allocation8], %s1025
        %s1027 = sand.u32 %s314, 1
        %s1028 = smul.addr %s1027, 128
        %s1029 = scalar_lea.vmem [#allocation15], %s1028
        %p1030 = pneg %p327
        %p1031 = pneg %p324
        %s1032 = sand.u32 %s40, 1
        %s1033 = scalar_lea.sflag [#allocation8], %s1032
        %s1034 = sand.u32 %s340, 1
        %s1035 = scalar_lea.vmem [#allocation16], %s1034
        %p1036 = pneg %p353
        %p1037 = pneg %p350
        %s1038 = sand.u32 %s40, 1
        %s1039 = scalar_lea.sflag [#allocation8], %s1038
        %s1040 = sand.u32 %s366, 1
        %s1041 = smul.addr %s1040, 8
        %s1042 = scalar_lea.vmem [#allocation17], %s1041
        %p1043 = pneg %p379
        %p1044 = pneg %p376
        %p1045 = pneg %p400
        %p1046 = pneg %p397
        %p1047 = pneg %p421
        %p1048 = pneg %p418
        %p1049 = scmp.lt.s32.totalorder %s40, 1
        %s1050 = scalar_select %p1049, %s40, 1
        %s1051 = smul.addr %s1050, 4
        %s1052 = scalar_lea.vmem %s16, %s1051
        %p1053 = pneg %p447
        %p1054 = pneg %p444
        %p1055 = scmp.lt.s32.totalorder %s40, 1
        %s1056 = scalar_select %p1055, %s40, 1
        %s1057 = smul.addr %s1056, 8
        %s1058 = scalar_lea.vmem %s17, %s1057
        %p1059 = pneg %p473
        %p1060 = pneg %p470
        %p1061 = scmp.lt.s32.totalorder %s40, 1
        %s1062 = scalar_select %p1061, %s40, 1
        %s1063 = smul.addr %s1062, 8
        %s1064 = scalar_lea.vmem %s18, %s1063
        %p1065 = pneg %p499
        %p1066 = pneg %p496
        %p1067 = scmp.lt.s32.totalorder %s40, 1
        %s1068 = scalar_select %p1067, %s40, 1
        %s1069 = smul.addr %s1068, 4
        %s1070 = scalar_lea.vmem %s19, %s1069
        %p1071 = pneg %p525
        %p1072 = pneg %p522
        %p1073 = pneg %p546
        %p1074 = pneg %p543
        %p1075 = pneg %p572
        %p1076 = pneg %p569
        %p1077 = scmp.lt.s32.totalorder %s40, 1
        %s1078 = scalar_select %p1077, %s40, 1
        %s1079 = smul.addr %s1078, 4
        %s1080 = scalar_lea.vmem %s21, %s1079
        %p1081 = pneg %p598
        %p1082 = pneg %p595
        %p1083 = scmp.lt.s32.totalorder %s40, 1
        %s1084 = scalar_select %p1083, %s40, 1
        %s1085 = smul.addr %s1084, 8
        %s1086 = scalar_lea.vmem %s22, %s1085
        %p1087 = pneg %p624
        %p1088 = pneg %p621
        %p1089 = scmp.lt.s32.totalorder %s40, 1
        %s1090 = scalar_select %p1089, %s40, 1
        %s1091 = smul.addr %s1090, 8
        %s1092 = scalar_lea.vmem %s23, %s1091
        %p1093 = pneg %p650
        %p1094 = pneg %p647
        %p1095 = scmp.lt.s32.totalorder %s40, 1
        %s1096 = scalar_select %p1095, %s40, 1
        %s1097 = smul.addr %s1096, 4
        %s1098 = scalar_lea.vmem %s24, %s1097
        %p1099 = scmp.lt.s32.totalorder %s40, 1
        %s1100 = scalar_select %p1099, %s40, 1
        %s1101 = smul.addr %s1100, 3
        %s1102 = scalar_lea.vmem %s5, %s1101
        %p1103 = scmp.lt.s32.totalorder %s40, 1
        %s1104 = scalar_select %p1103, %s40, 1
        %s1105 = scalar_lea.vmem %s7, %s1104
        %p1106 = scmp.lt.s32.totalorder %s40, 1
        %s1107 = scalar_select %p1106, %s40, 1
        %s1108 = smul.addr %s1107, 8
        %s1109 = scalar_lea.vmem %s8, %s1108
        %p1110 = scmp.lt.s32.totalorder %s40, 1
        %s1111 = scalar_select %p1110, %s40, 1
        %s1112 = smul.addr %s1111, 32
        %s1113 = smul.addr %s1112, 4
        %s1114 = scalar_lea.vmem %s9, %s1113
        %p1115 = scmp.lt.s32.totalorder %s40, 1
        %s1116 = scalar_select %p1115, %s40, 1
        %s1117 = smul.addr %s1116, 4
        %s1118 = scalar_lea.vmem %s16, %s1117
        %p1119 = scmp.lt.s32.totalorder %s40, 1
        %s1120 = scalar_select %p1119, %s40, 1
        %s1121 = smul.addr %s1120, 8
        %s1122 = scalar_lea.vmem %s17, %s1121
        %p1123 = scmp.lt.s32.totalorder %s40, 1
        %s1124 = scalar_select %p1123, %s40, 1
        %s1125 = smul.addr %s1124, 8
        %s1126 = scalar_lea.vmem %s18, %s1125
        %p1127 = scmp.lt.s32.totalorder %s40, 1
        %s1128 = scalar_select %p1127, %s40, 1
        %s1129 = smul.addr %s1128, 4
        %s1130 = scalar_lea.vmem %s19, %s1129
        %p1131 = scmp.lt.s32.totalorder %s40, 1
        %s1132 = scalar_select %p1131, %s40, 1
        %s1133 = smul.addr %s1132, 4
        %s1134 = scalar_lea.vmem %s21, %s1133
        %p1135 = scmp.lt.s32.totalorder %s40, 1
        %s1136 = scalar_select %p1135, %s40, 1
        %s1137 = smul.addr %s1136, 8
        %s1138 = scalar_lea.vmem %s22, %s1137
        %p1139 = scmp.lt.s32.totalorder %s40, 1
        %s1140 = scalar_select %p1139, %s40, 1
        %s1141 = smul.addr %s1140, 8
        %s1142 = scalar_lea.vmem %s23, %s1141
        %p1143 = scmp.lt.s32.totalorder %s40, 1
        %s1144 = scalar_select %p1143, %s40, 1
        %s1145 = smul.addr %s1144, 4
        %s1146 = scalar_lea.vmem %s24, %s1145
        %p1148 = scmp.eq.s32.totalorder %s40, 0
        // Predicated region
        $region141: #{encoder_ctc_forward.1} parent=99 // pred_check
          %p1149 = pneg %p1148
        $region142: #{encoder_ctc_forward.1} parent=99 // pred_check_branch
          %1151 = sbr.rel (%p1149) target = $region144
        $region143: #{encoder_ctc_forward.1} parent=99 // pred_region
          %v1152 = vld [vmem:[%s0] sm:$0xff]
          %v1153 = vpack.c.bf16 %v1152, %v1152
          %v1154 = vld [vmem:[#allocation7] sm:$0xf]
          %v1155 = vld [vmem:[#allocation7 + $0x4] sm:$0xf]
          %v1156 = vld [vmem:[#allocation7 + $0x8] sm:$0xf]
          %v1157 = vld [vmem:[#allocation7 + $0xc] sm:$0xf]
          %v1158 = vld [vmem:[#allocation7 + $0x10] sm:$0xf]
          %v1159 = vld [vmem:[#allocation7 + $0x14] sm:$0xf]
          %v1160 = vld [vmem:[#allocation7 + $0x18] sm:$0xf]
          %v1161 = vld [vmem:[#allocation7 + $0x1c] sm:$0xf]
          %v1162 = vld [vmem:[#allocation7 + $0x20] sm:$0xf]
          %v1163 = vld [vmem:[#allocation7 + $0x24] sm:$0xf]
          %v1164 = vld [vmem:[#allocation7 + $0x28] sm:$0xf]
          %v1165 = vld [vmem:[#allocation7 + $0x2c] sm:$0xf]
          %v1166 = vld [vmem:[#allocation7 + $0x30] sm:$0xf]
          %v1167 = vld [vmem:[#allocation7 + $0x34] sm:$0xf]
          %v1168 = vld [vmem:[#allocation7 + $0x38] sm:$0xf]
          %v1169 = vld [vmem:[#allocation7 + $0x3c] sm:$0xf]
          %v1170 = vld [vmem:[#allocation10] sm:$0x1]
          %v1172 = vlaneseq
          %v1173 = vshrl.u32 %v1172, 7
          %v1174 = vsub.s32 0, %v1173
          %v1175 = vrot.slane %v1170, %v1174
          %v1193 = vunpack.c.l.b16 %v1154
          %v1194 = vunpack.c.l.b16 %v1155
          %v1195 = vunpack.c.l.b16 %v1156
          %v1196 = vunpack.c.l.b16 %v1157
          %v1197 = vunpack.c.l.b16 %v1158
          %v1198 = vunpack.c.l.b16 %v1159
          %v1199 = vunpack.c.l.b16 %v1160
          %v1200 = vunpack.c.l.b16 %v1161
          %v1201 = vunpack.c.l.b16 %v1162
          %v1202 = vunpack.c.l.b16 %v1163
          %v1203 = vunpack.c.l.b16 %v1164
          %v1204 = vunpack.c.l.b16 %v1165
          %v1205 = vunpack.c.l.b16 %v1166
          %v1206 = vunpack.c.l.b16 %v1167
          %v1207 = vunpack.c.l.b16 %v1168
          %v1208 = vunpack.c.l.b16 %v1169
          %v1209 = vpack.c.b16 %v1194, %v1193
          %v1210 = vpack.c.b16 %v1196, %v1195
          %v1211 = vpack.c.b16 %v1198, %v1197
          %v1212 = vpack.c.b16 %v1200, %v1199
          %v1213 = vpack.c.b16 %v1202, %v1201
          %v1214 = vpack.c.b16 %v1204, %v1203
          %v1215 = vpack.c.b16 %v1206, %v1205
          %v1216 = vpack.c.b16 %v1208, %v1207
          %1225 = vmatprep.subr.bf16.mxu0 0
          %1226 = vmatpush1.bf16.msra.mxu0 %v1209
          %1227 = vmatprep.subr.bf16.mxu0 0
          %1228 = vmatpush1.bf16.msra.mxu0 %v1210
          %1229 = vmatprep.subr.bf16.mxu0 0
          %1230 = vmatpush1.bf16.msra.mxu0 %v1211
          %1231 = vmatprep.subr.bf16.mxu0 0
          %1232 = vmatpush1.bf16.msra.mxu0 %v1212
          %1233 = vmatprep.subr.bf16.mxu0 0
          %1234 = vmatpush1.bf16.msra.mxu0 %v1213
          %1235 = vmatprep.subr.bf16.mxu0 0
          %1236 = vmatpush1.bf16.msra.mxu0 %v1214
          %1237 = vmatprep.subr.bf16.mxu0 0
          %1238 = vmatpush1.bf16.msra.mxu0 %v1215
          %1239 = vmatprep.subr.bf16.mxu0 0
          %1240 = vmatpush1.bf16.msra.mxu0 %v1216
          %1241 = vmatprep.subr.bf16.mxu0 0
          %1242 = vmatpush1.bf16.msra.mxu0 0
          %1243 = vmatprep.subr.bf16.mxu0 0
          %1244 = vmatpush1.bf16.msra.mxu0 0
          %1245 = vmatprep.subr.bf16.mxu0 0
          %1246 = vmatpush1.bf16.msra.mxu0 0
          %1247 = vmatprep.subr.bf16.mxu0 0
          %1248 = vmatpush1.bf16.msra.mxu0 0
          %1249 = vmatprep.subr.bf16.mxu0 0
          %1250 = vmatpush1.bf16.msra.mxu0 0
          %1251 = vmatprep.subr.bf16.mxu0 0
          %1252 = vmatpush1.bf16.msra.mxu0 0
          %1253 = vmatprep.subr.bf16.mxu0 0
          %1254 = vmatpush1.bf16.msra.mxu0 0
          %1255 = vmatprep.subr.bf16.mxu0 0
          %1256 = vmatpush1.bf16.msra.mxu0 0
          %1257 = vmatprep.mubr.bf16.mxu0 0
          %1258 = vmatmul.mubr.bf16.gmra.mrb[0].mxu0 %v1153
          %v1259 = vpop.f32.mrb[0].mxu0
          %v1260 = vadd.f32 %v1175, %v1259
          %v1261 = vpop.f32.mrb[0].mxu0
          %v1262 = vpop.f32.mrb[0].mxu0
          %v1263 = vpop.f32.mrb[0].mxu0
          %1264 = vdwg.mxu0
          %1265 = vst [vmem:[#allocation2] sm:$0xff] %v1260
        $region144: #{encoder_ctc_forward.1} parent=99 // pred_fallthru
          _
        %v1266 = vld [vmem:[#allocation2] sm:$0xff]
        %1267 = vst [vmem:[#allocation3] sm:$0xff] %v1266
        %v1268 = vld [vmem:[%s1118] sm:$0xf]
        %1269 = vst [vmem:[#allocation3 + $0x8] sm:$0xf] %v1268
        %1270 = vst [vmem:[#allocation3 + $0xc] sm:$0xf] 0.0
        %v1271 = vld [vmem:[#allocation3] sm:$0xff]
        %v1272 = vld [vmem:[#allocation3 + $0x8] sm:$0xff]
        %v1273 = vpack.c.bf16 %v1272, %v1271
        %v1274 = vld [vmem:[%s915] sm:$0xff]
        %v1275 = vld [vmem:[%s915 + $0x8] sm:$0xf]
        %v1276 = vld [vmem:[%s915 + $0xc] sm:$0xff]
        %v1277 = vld [vmem:[%s915 + $0x14] sm:$0xf]
        %v1278 = vld [vmem:[%s915 + $0x18] sm:$0xff]
        %v1279 = vld [vmem:[%s915 + $0x20] sm:$0xf]
        %v1280 = vld [vmem:[%s915 + $0x24] sm:$0xff]
        %v1281 = vld [vmem:[%s915 + $0x2c] sm:$0xf]
        %v1282 = vld [vmem:[%s915 + $0x30] sm:$0xff]
        %v1283 = vld [vmem:[%s915 + $0x38] sm:$0xf]
        %v1284 = vld [vmem:[%s915 + $0x3c] sm:$0xff]
        %v1285 = vld [vmem:[%s915 + $0x44] sm:$0xf]
        %v1286 = vld [vmem:[%s915 + $0x48] sm:$0xff]
        %v1287 = vld [vmem:[%s915 + $0x50] sm:$0xf]
        %v1288 = vld [vmem:[%s915 + $0x54] sm:$0xff]
        %v1289 = vld [vmem:[%s915 + $0x5c] sm:$0xf]
        %v1290 = vld [vmem:[%s915 + $0x60] sm:$0xff]
        %v1291 = vld [vmem:[%s915 + $0x68] sm:$0xf]
        %v1292 = vld [vmem:[%s915 + $0x6c] sm:$0xff]
        %v1293 = vld [vmem:[%s915 + $0x74] sm:$0xf]
        %v1294 = vld [vmem:[%s915 + $0x78] sm:$0xff]
        %v1295 = vld [vmem:[%s915 + $0x80] sm:$0xf]
        %v1296 = vld [vmem:[%s915 + $0x84] sm:$0xff]
        %v1297 = vld [vmem:[%s915 + $0x8c] sm:$0xf]
        %v1298 = vld [vmem:[%s915 + $0x90] sm:$0xff]
        %v1299 = vld [vmem:[%s915 + $0x98] sm:$0xf]
        %v1300 = vld [vmem:[%s915 + $0x9c] sm:$0xff]
        %v1301 = vld [vmem:[%s915 + $0xa4] sm:$0xf]
        %v1302 = vld [vmem:[%s915 + $0xa8] sm:$0xff]
        %v1303 = vld [vmem:[%s915 + $0xb0] sm:$0xf]
        %v1304 = vld [vmem:[%s915 + $0xb4] sm:$0xff]
        %v1305 = vld [vmem:[%s915 + $0xbc] sm:$0xf]
        %v1306 = vld [vmem:[%s1102] sm:$0x7]
        %v1308 = vlaneseq
        %v1309 = vshrl.u32 %v1308, 7
        %v1310 = vsub.s32 0, %v1309
        %v1311 = vrot.slane %v1306, %v1310
        %v1312 = vlaneseq
        %v1313 = vshrl.u32 %v1312, 7
        %v1314 = vsub.s32 1, %v1313
        %v1315 = vrot.slane %v1306, %v1314
        %v1316 = vlaneseq
        %v1317 = vshrl.u32 %v1316, 7
        %v1318 = vsub.s32 2, %v1317
        %v1319 = vrot.slane %v1306, %v1318
        %v1355 = vunpack.c.l.b16 %v1274
        %v1356 = vunpack.c.h.b16 %v1274
        %v1357 = vunpack.c.l.b16 %v1275
        %v1358 = vunpack.c.l.b16 %v1276
        %v1359 = vunpack.c.h.b16 %v1276
        %v1360 = vunpack.c.l.b16 %v1277
        %v1361 = vunpack.c.l.b16 %v1278
        %v1362 = vunpack.c.h.b16 %v1278
        %v1363 = vunpack.c.l.b16 %v1279
        %v1364 = vunpack.c.l.b16 %v1280
        %v1365 = vunpack.c.h.b16 %v1280
        %v1366 = vunpack.c.l.b16 %v1281
        %v1367 = vunpack.c.l.b16 %v1282
        %v1368 = vunpack.c.h.b16 %v1282
        %v1369 = vunpack.c.l.b16 %v1283
        %v1370 = vunpack.c.l.b16 %v1284
        %v1371 = vunpack.c.h.b16 %v1284
        %v1372 = vunpack.c.l.b16 %v1285
        %v1373 = vunpack.c.l.b16 %v1286
        %v1374 = vunpack.c.h.b16 %v1286
        %v1375 = vunpack.c.l.b16 %v1287
        %v1376 = vunpack.c.l.b16 %v1288
        %v1377 = vunpack.c.h.b16 %v1288
        %v1378 = vunpack.c.l.b16 %v1289
        %v1379 = vunpack.c.l.b16 %v1290
        %v1380 = vunpack.c.h.b16 %v1290
        %v1381 = vunpack.c.l.b16 %v1291
        %v1382 = vunpack.c.l.b16 %v1292
        %v1383 = vunpack.c.h.b16 %v1292
        %v1384 = vunpack.c.l.b16 %v1293
        %v1385 = vunpack.c.l.b16 %v1294
        %v1386 = vunpack.c.h.b16 %v1294
        %v1387 = vunpack.c.l.b16 %v1295
        %v1388 = vunpack.c.l.b16 %v1296
        %v1389 = vunpack.c.h.b16 %v1296
        %v1390 = vunpack.c.l.b16 %v1297
        %v1391 = vunpack.c.l.b16 %v1298
        %v1392 = vunpack.c.h.b16 %v1298
        %v1393 = vunpack.c.l.b16 %v1299
        %v1394 = vunpack.c.l.b16 %v1300
        %v1395 = vunpack.c.h.b16 %v1300
        %v1396 = vunpack.c.l.b16 %v1301
        %v1397 = vunpack.c.l.b16 %v1302
        %v1398 = vunpack.c.h.b16 %v1302
        %v1399 = vunpack.c.l.b16 %v1303
        %v1400 = vunpack.c.l.b16 %v1304
        %v1401 = vunpack.c.h.b16 %v1304
        %v1402 = vunpack.c.l.b16 %v1305
        %v1403 = vpack.c.b16 %v1358, %v1355
        %v1404 = vpack.c.b16 %v1359, %v1356
        %v1405 = vpack.c.b16 %v1360, %v1357
        %v1406 = vpack.c.b16 %v1364, %v1361
        %v1407 = vpack.c.b16 %v1365, %v1362
        %v1408 = vpack.c.b16 %v1366, %v1363
        %v1409 = vpack.c.b16 %v1370, %v1367
        %v1410 = vpack.c.b16 %v1371, %v1368
        %v1411 = vpack.c.b16 %v1372, %v1369
        %v1412 = vpack.c.b16 %v1376, %v1373
        %v1413 = vpack.c.b16 %v1377, %v1374
        %v1414 = vpack.c.b16 %v1378, %v1375
        %v1415 = vpack.c.b16 %v1382, %v1379
        %v1416 = vpack.c.b16 %v1383, %v1380
        %v1417 = vpack.c.b16 %v1384, %v1381
        %v1418 = vpack.c.b16 %v1388, %v1385
        %v1419 = vpack.c.b16 %v1389, %v1386
        %v1420 = vpack.c.b16 %v1390, %v1387
        %v1421 = vpack.c.b16 %v1394, %v1391
        %v1422 = vpack.c.b16 %v1395, %v1392
        %v1423 = vpack.c.b16 %v1396, %v1393
        %v1424 = vpack.c.b16 %v1400, %v1397
        %v1425 = vpack.c.b16 %v1401, %v1398
        %v1426 = vpack.c.b16 %v1402, %v1399
        %1451 = vmatprep.subr.bf16.mxu0 %v1404
        %1452 = vmatpush1.bf16.msra.mxu0 %v1403
        %1453 = vmatprep.subr.bf16.mxu0 %v1407
        %1454 = vmatpush1.bf16.msra.mxu0 %v1406
        %1455 = vmatprep.subr.bf16.mxu0 %v1410
        %1456 = vmatpush1.bf16.msra.mxu0 %v1409
        %1457 = vmatprep.subr.bf16.mxu0 %v1413
        %1458 = vmatpush1.bf16.msra.mxu0 %v1412
        %1459 = vmatprep.subr.bf16.mxu0 %v1416
        %1460 = vmatpush1.bf16.msra.mxu0 %v1415
        %1461 = vmatprep.subr.bf16.mxu0 %v1419
        %1462 = vmatpush1.bf16.msra.mxu0 %v1418
        %1463 = vmatprep.subr.bf16.mxu0 %v1422
        %1464 = vmatpush1.bf16.msra.mxu0 %v1421
        %1465 = vmatprep.subr.bf16.mxu0 %v1425
        %1466 = vmatpush1.bf16.msra.mxu0 %v1424
        %1467 = vmatprep.subr.bf16.mxu0 0
        %1468 = vmatpush1.bf16.msra.mxu0 0
        %1469 = vmatprep.subr.bf16.mxu0 0
        %1470 = vmatpush1.bf16.msra.mxu0 0
        %1471 = vmatprep.subr.bf16.mxu0 0
        %1472 = vmatpush1.bf16.msra.mxu0 0
        %1473 = vmatprep.subr.bf16.mxu0 0
        %1474 = vmatpush1.bf16.msra.mxu0 0
        %1475 = vmatprep.subr.bf16.mxu0 0
        %1476 = vmatpush1.bf16.msra.mxu0 0
        %1477 = vmatprep.subr.bf16.mxu0 0
        %1478 = vmatpush1.bf16.msra.mxu0 0
        %1479 = vmatprep.subr.bf16.mxu0 0
        %1480 = vmatpush1.bf16.msra.mxu0 0
        %1481 = vmatprep.subr.bf16.mxu0 0
        %1482 = vmatpush1.bf16.msra.mxu0 0
        %1483 = vmatprep.mubr.bf16.mxu0 0
        %1484 = vmatmul.mubr.bf16.gmra.mrb[0].mxu0 %v1273
        %v1485 = vpop.f32.mrb[0].mxu0
        %v1486 = vadd.f32 %v1311, %v1485
        %v1487 = vpop.f32.mrb[0].mxu0
        %v1488 = vadd.f32 %v1315, %v1487
        %v1489 = vpop.f32.mrb[0].mxu0
        %v1490 = vpop.f32.mrb[0].mxu0
        %v1491 = vadd.f32 %v1315, %v1490
        %1492 = vdwg.mxu0
        %1493 = vmatprep.subr.bf16.mxu0 0
        %1494 = vmatpush1.bf16.msra.mxu0 %v1405
        %1495 = vmatprep.subr.bf16.mxu0 0
        %1496 = vmatpush1.bf16.msra.mxu0 %v1408
        %1497 = vmatprep.subr.bf16.mxu0 0
        %1498 = vmatpush1.bf16.msra.mxu0 %v1411
        %1499 = vmatprep.subr.bf16.mxu0 0
        %1500 = vmatpush1.bf16.msra.mxu0 %v1414
        %1501 = vmatprep.subr.bf16.mxu0 0
        %1502 = vmatpush1.bf16.msra.mxu0 %v1417
        %1503 = vmatprep.subr.bf16.mxu0 0
        %1504 = vmatpush1.bf16.msra.mxu0 %v1420
        %1505 = vmatprep.subr.bf16.mxu0 0
        %1506 = vmatpush1.bf16.msra.mxu0 %v1423
        %1507 = vmatprep.subr.bf16.mxu0 0
        %1508 = vmatpush1.bf16.msra.mxu0 %v1426
        %1509 = vmatprep.subr.bf16.mxu0 0
        %1510 = vmatpush1.bf16.msra.mxu0 0
        %1511 = vmatprep.subr.bf16.mxu0 0
        %1512 = vmatpush1.bf16.msra.mxu0 0
        %1513 = vmatprep.subr.bf16.mxu0 0
        %1514 = vmatpush1.bf16.msra.mxu0 0
        %1515 = vmatprep.subr.bf16.mxu0 0
        %1516 = vmatpush1.bf16.msra.mxu0 0
        %1517 = vmatprep.subr.bf16.mxu0 0
        %1518 = vmatpush1.bf16.msra.mxu0 0
        %1519 = vmatprep.subr.bf16.mxu0 0
        %1520 = vmatpush1.bf16.msra.mxu0 0
        %1521 = vmatprep.subr.bf16.mxu0 0
        %1522 = vmatpush1.bf16.msra.mxu0 0
        %1523 = vmatprep.subr.bf16.mxu0 0
        %1524 = vmatpush1.bf16.msra.mxu0 0
        %1525 = vmatprep.mubr.bf16.mxu0 0
        %1526 = vmatmul.mubr.bf16.gmra.mrb[0].mxu0 %v1273
        %v1527 = vpop.f32.mrb[0].mxu0
        %v1528 = vadd.f32 %v1319, %v1527
        %v1529 = vpop.f32.mrb[0].mxu0
        %v1530 = vpop.f32.mrb[0].mxu0
        %v1531 = vadd.f32 %v1319, %v1530
        %v1532 = vpop.f32.mrb[0].mxu0
        %1533 = vdwg.mxu0
        %v1534 = vld [vmem:[%s1122] sm:$0xff]
        %1535 = vst [vmem:[#allocation4] sm:$0xff] %v1534
        %1536 = vst [vmem:[#allocation4 + $0x8] sm:$0xff] %v1488
        %1537 = vst [vmem:[#allocation4 + $0x10] sm:$0xf] %v1491
        %v1538 = vld [vmem:[%s1126] sm:$0xff]
        %1539 = vst [vmem:[#allocation5] sm:$0xff] %v1538
        %1540 = vst [vmem:[#allocation5 + $0x8] sm:$0xff] %v1528
        %1541 = vst [vmem:[#allocation5 + $0x10] sm:$0xf] %v1531
        %1542 = vst [vmem:[#allocation4 + $0x14] sm:$0xf] 0.0
        %1543 = vst [vmem:[#allocation5 + $0x14] sm:$0xf] 0.0
        %v1544 = vpack.c.bf16 %v1486, %v1486
        %v1545 = vld [vmem:[#allocation4] sm:$0xff]
        %v1546 = vld [vmem:[#allocation4 + $0x8] sm:$0xff]
        %v1547 = vld [vmem:[#allocation4 + $0x10] sm:$0xff]
        %v1548 = vpack.c.bf16 %v1546, %v1545
        %v1549 = vpack.c.bf16 %v1547, %v1547
        %1550 = vmatprep.subr.bf16.mxu0 0
        %1551 = vmatpush1.bf16.xpose.msra.mxu0 %v1548
        %1552 = vmatprep.subr.bf16.mxu0 0
        %1553 = vmatpush1.bf16.xpose.msra.mxu0 %v1549
        %1554 = vmatprep.subr.bf16.mxu0 0
        %1555 = vmatpush1.bf16.xpose.msra.mxu0 0
        %1556 = vmatprep.subr.bf16.mxu0 0
        %1557 = vmatpush1.bf16.xpose.msra.mxu0 0
        %1558 = vmatprep.subr.bf16.mxu0 0
        %1559 = vmatpush1.bf16.xpose.msra.mxu0 0
        %1560 = vmatprep.subr.bf16.mxu0 0
        %1561 = vmatpush1.bf16.xpose.msra.mxu0 0
        %1562 = vmatprep.subr.bf16.mxu0 0
        %1563 = vmatpush1.bf16.xpose.msra.mxu0 0
        %1564 = vmatprep.subr.bf16.mxu0 0
        %1565 = vmatpush1.bf16.xpose.msra.mxu0 0
        %1566 = vmatprep.subr.bf16.mxu0 0
        %1567 = vmatpush1.bf16.xpose.msra.mxu0 0
        %1568 = vmatprep.subr.bf16.mxu0 0
        %1569 = vmatpush1.bf16.xpose.msra.mxu0 0
        %1570 = vmatprep.subr.bf16.mxu0 0
        %1571 = vmatpush1.bf16.xpose.msra.mxu0 0
        %1572 = vmatprep.subr.bf16.mxu0 0
        %1573 = vmatpush1.bf16.xpose.msra.mxu0 0
        %1574 = vmatprep.subr.bf16.mxu0 0
        %1575 = vmatpush1.bf16.xpose.msra.mxu0 0
        %1576 = vmatprep.subr.bf16.mxu0 0
        %1577 = vmatpush1.bf16.xpose.msra.mxu0 0
        %1578 = vmatprep.subr.bf16.mxu0 0
        %1579 = vmatpush1.bf16.xpose.msra.mxu0 0
        %1580 = vmatprep.subr.bf16.mxu0 0
        %1581 = vmatpush1.bf16.xpose.msra.mxu0 0
        %1582 = vmatprep.mubr.bf16.mxu0 0
        %1583 = vmatmul.mubr.bf16.gmra.mrb[0].mxu0 %v1544
        %v1584 = vpop.f32.mrb[0].mxu0
        %v1585 = vadd.f32 0.0, %v1584
        %v1586 = vpop.f32.mrb[0].mxu0
        %v1587 = vpop.f32.mrb[0].mxu0
        %v1588 = vpop.f32.mrb[0].mxu0
        %1589 = vdwg.mxu0
        %v1590 = vmul.f32 %v1585, 0.088388346
        %v1591 = vld [vmem:[%s3] sm:$0x1]
        %v1593 = vlaneseq
        %v1594 = vshrl.u32 %v1593, 7
        %v1595 = vsub.s32 0, %v1594
        %v1596 = vrot.slane %v1591, %v1595
        %v1598 = vadd.f32 %v1590, %v1596
        %vm1599 = vcmask 195584
        %v1600 = vsel %vm1599, %v1598, -inf
        %1601 = vmax.xlane.f32.xlu0 %v1600
        %v1602 = vpop.xlane.xlu0 %1601
        %v1603 = vsub.f32 %v1598, %v1602
        %v1604 = vmul.f32 %v1603, 1.442695
        %v1605 = vpow.pop %v1604
        %v1606 = vsel %vm1599, %v1605, 0.0
        %1607 = vadd.xlane.f32.xlu0 %v1606
        %v1608 = vpop.xlane.xlu0 %1607
        %v1609 = vpack.c.bf16 %v1605, %v1605
        %v1610 = vld [vmem:[#allocation5] sm:$0xff]
        %v1611 = vld [vmem:[#allocation5 + $0x8] sm:$0xff]
        %v1612 = vld [vmem:[#allocation5 + $0x10] sm:$0xff]
        %v1613 = vpack.c.bf16 %v1611, %v1610
        %v1614 = vpack.c.bf16 %v1612, %v1612
        %v1616 = vsel %vm1599, %v1609, 0
        %vm1618 = vcmask 1043456
        %v1620 = vsel %vm1618, %v1614, 0
        %1622 = vmatprep.subr.bf16.mxu0 0
        %1623 = vmatpush1.bf16.msra.mxu0 %v1613
        %1624 = vmatprep.subr.bf16.mxu0 0
        %1625 = vmatpush1.bf16.msra.mxu0 %v1620
        %1626 = vmatprep.subr.bf16.mxu0 0
        %1627 = vmatpush1.bf16.msra.mxu0 0
        %1628 = vmatprep.subr.bf16.mxu0 0
        %1629 = vmatpush1.bf16.msra.mxu0 0
        %1630 = vmatprep.subr.bf16.mxu0 0
        %1631 = vmatpush1.bf16.msra.mxu0 0
        %1632 = vmatprep.subr.bf16.mxu0 0
        %1633 = vmatpush1.bf16.msra.mxu0 0
        %1634 = vmatprep.subr.bf16.mxu0 0
        %1635 = vmatpush1.bf16.msra.mxu0 0
        %1636 = vmatprep.subr.bf16.mxu0 0
        %1637 = vmatpush1.bf16.msra.mxu0 0
        %1638 = vmatprep.subr.bf16.mxu0 0
        %1639 = vmatpush1.bf16.msra.mxu0 0
        %1640 = vmatprep.subr.bf16.mxu0 0
        %1641 = vmatpush1.bf16.msra.mxu0 0
        %1642 = vmatprep.subr.bf16.mxu0 0
        %1643 = vmatpush1.bf16.msra.mxu0 0
        %1644 = vmatprep.subr.bf16.mxu0 0
        %1645 = vmatpush1.bf16.msra.mxu0 0
        %1646 = vmatprep.subr.bf16.mxu0 0
        %1647 = vmatpush1.bf16.msra.mxu0 0
        %1648 = vmatprep.subr.bf16.mxu0 0
        %1649 = vmatpush1.bf16.msra.mxu0 0
        %1650 = vmatprep.subr.bf16.mxu0 0
        %1651 = vmatpush1.bf16.msra.mxu0 0
        %1652 = vmatprep.subr.bf16.mxu0 0
        %1653 = vmatpush1.bf16.msra.mxu0 0
        %1654 = vmatprep.mubr.bf16.mxu0 0
        %1655 = vmatmul.mubr.bf16.gmra.mrb[0].mxu0 %v1616
        %v1656 = vpop.f32.mrb[0].mxu0
        %v1657 = vadd.f32 0.0, %v1656
        %v1658 = vpop.f32.mrb[0].mxu0
        %v1659 = vpop.f32.mrb[0].mxu0
        %v1660 = vpop.f32.mrb[0].mxu0
        %1661 = vdwg.mxu0
        %v1662 = vrcp.pop %v1608
        %v1663 = vmul.f32 %v1657, %v1662
        %v1664 = vpack.c.bf16 %v1663, %v1663
        %v1665 = vld [vmem:[%s924] sm:$0xf]
        %v1666 = vld [vmem:[%s924 + $0x4] sm:$0xf]
        %v1667 = vld [vmem:[%s924 + $0x8] sm:$0xf]
        %v1668 = vld [vmem:[%s924 + $0xc] sm:$0xf]
        %v1669 = vld [vmem:[%s924 + $0x10] sm:$0xf]
        %v1670 = vld [vmem:[%s924 + $0x14] sm:$0xf]
        %v1671 = vld [vmem:[%s924 + $0x18] sm:$0xf]
        %v1672 = vld [vmem:[%s924 + $0x1c] sm:$0xf]
        %v1673 = vld [vmem:[%s924 + $0x20] sm:$0xf]
        %v1674 = vld [vmem:[%s924 + $0x24] sm:$0xf]
        %v1675 = vld [vmem:[%s924 + $0x28] sm:$0xf]
        %v1676 = vld [vmem:[%s924 + $0x2c] sm:$0xf]
        %v1677 = vld [vmem:[%s924 + $0x30] sm:$0xf]
        %v1678 = vld [vmem:[%s924 + $0x34] sm:$0xf]
        %v1679 = vld [vmem:[%s924 + $0x38] sm:$0xf]
        %v1680 = vld [vmem:[%s924 + $0x3c] sm:$0xf]
        %v1681 = vld [vmem:[%s1105] sm:$0x1]
        %v1683 = vlaneseq
        %v1684 = vshrl.u32 %v1683, 7
        %v1685 = vsub.s32 0, %v1684
        %v1686 = vrot.slane %v1681, %v1685
        %v1704 = vunpack.c.l.b16 %v1665
        %v1705 = vunpack.c.l.b16 %v1666
        %v1706 = vunpack.c.l.b16 %v1667
        %v1707 = vunpack.c.l.b16 %v1668
        %v1708 = vunpack.c.l.b16 %v1669
        %v1709 = vunpack.c.l.b16 %v1670
        %v1710 = vunpack.c.l.b16 %v1671
        %v1711 = vunpack.c.l.b16 %v1672
        %v1712 = vunpack.c.l.b16 %v1673
        %v1713 = vunpack.c.l.b16 %v1674
        %v1714 = vunpack.c.l.b16 %v1675
        %v1715 = vunpack.c.l.b16 %v1676
        %v1716 = vunpack.c.l.b16 %v1677
        %v1717 = vunpack.c.l.b16 %v1678
        %v1718 = vunpack.c.l.b16 %v1679
        %v1719 = vunpack.c.l.b16 %v1680
        %v1720 = vpack.c.b16 %v1705, %v1704
        %v1721 = vpack.c.b16 %v1707, %v1706
        %v1722 = vpack.c.b16 %v1709, %v1708
        %v1723 = vpack.c.b16 %v1711, %v1710
        %v1724 = vpack.c.b16 %v1713, %v1712
        %v1725 = vpack.c.b16 %v1715, %v1714
        %v1726 = vpack.c.b16 %v1717, %v1716
        %v1727 = vpack.c.b16 %v1719, %v1718
        %1736 = vmatprep.subr.bf16.mxu0 0
        %1737 = vmatpush1.bf16.msra.mxu0 %v1720
        %1738 = vmatprep.subr.bf16.mxu0 0
        %1739 = vmatpush1.bf16.msra.mxu0 %v1721
        %1740 = vmatprep.subr.bf16.mxu0 0
        %1741 = vmatpush1.bf16.msra.mxu0 %v1722
        %1742 = vmatprep.subr.bf16.mxu0 0
        %1743 = vmatpush1.bf16.msra.mxu0 %v1723
        %1744 = vmatprep.subr.bf16.mxu0 0
        %1745 = vmatpush1.bf16.msra.mxu0 %v1724
        %1746 = vmatprep.subr.bf16.mxu0 0
        %1747 = vmatpush1.bf16.msra.mxu0 %v1725
        %1748 = vmatprep.subr.bf16.mxu0 0
        %1749 = vmatpush1.bf16.msra.mxu0 %v1726
        %1750 = vmatprep.subr.bf16.mxu0 0
        %1751 = vmatpush1.bf16.msra.mxu0 %v1727
        %1752 = vmatprep.subr.bf16.mxu0 0
        %1753 = vmatpush1.bf16.msra.mxu0 0
        %1754 = vmatprep.subr.bf16.mxu0 0
        %1755 = vmatpush1.bf16.msra.mxu0 0
        %1756 = vmatprep.subr.bf16.mxu0 0
        %1757 = vmatpush1.bf16.msra.mxu0 0
        %1758 = vmatprep.subr.bf16.mxu0 0
        %1759 = vmatpush1.bf16.msra.mxu0 0
        %1760 = vmatprep.subr.bf16.mxu0 0
        %1761 = vmatpush1.bf16.msra.mxu0 0
        %1762 = vmatprep.subr.bf16.mxu0 0
        %1763 = vmatpush1.bf16.msra.mxu0 0
        %1764 = vmatprep.subr.bf16.mxu0 0
        %1765 = vmatpush1.bf16.msra.mxu0 0
        %1766 = vmatprep.subr.bf16.mxu0 0
        %1767 = vmatpush1.bf16.msra.mxu0 0
        %1768 = vmatprep.mubr.bf16.mxu0 0
        %1769 = vmatmul.mubr.bf16.gmra.mrb[0].mxu0 %v1664
        %v1770 = vpop.f32.mrb[0].mxu0
        %v1771 = vadd.f32 %v1686, %v1770
        %v1772 = vpop.f32.mrb[0].mxu0
        %v1773 = vpop.f32.mrb[0].mxu0
        %v1774 = vpop.f32.mrb[0].mxu0
        %1775 = vdwg.mxu0
        %v1776 = vld [vmem:[%s959] sm:$0xff]
        %v1777 = vadd.f32 %v1771, %v1266
        %1778 = vadd.xlane.f32.xlu0 %v1777
        %v1779 = vpop.xlane.xlu0 %1778
        %v1780 = vrcp.pop 128.0
        %v1781 = vmul.f32 %v1779, %v1780
        %v1782 = vsub.f32 %v1777, %v1781
        %v1783 = vmul.f32 %v1782, %v1782
        %1784 = vadd.xlane.f32.xlu0 %v1783
        %v1785 = vpop.xlane.xlu0 %1784
        %v1786 = vmul.f32 %v1785, %v1780
        %v1787 = vadd.f32 %v1786, 1e-05
        %v1788 = vrsqrt.pop %v1787
        %v1789 = vmul.f32 %v1782, %v1788
        %v1790 = vlaneseq
        %v1791 = vshrl.u32 %v1790, 7
        %v1792 = vsub.s32 0, %v1791
        %v1793 = vrot.slane %v1776, %v1792
        %v1794 = vmul.f32 %v1789, %v1793
        %v1795 = vlaneseq
        %v1796 = vshrl.u32 %v1795, 7
        %v1797 = vsub.s32 1, %v1796
        %v1798 = vrot.slane %v1776, %v1797
        %v1799 = vadd.f32 %v1794, %v1798
        %v1800 = vld [vmem:[%s1130] sm:$0xf]
        %1801 = vst [vmem:[#allocation6] sm:$0xf] %v1800
        %1802 = vst [vmem:[#allocation6 + $0x4] sm:$0xff] %v1799
        %v1803 = vld [vmem:[%s1109] sm:$0x1f]
        %v1804 = vld [vmem:[#allocation6] sm:$0xff]
        %v1805 = vlaneseq
        %v1806 = vshrl.u32 %v1805, 7
        %v1807 = vsub.s32 0, %v1806
        %v1808 = vrot.slane %v1803, %v1807
        %v1809 = vmul.f32 %v1804, %v1808
        %v1810 = vld [vmem:[#allocation6 + $0x1] sm:$0xff]
        %v1811 = vlaneseq
        %v1812 = vshrl.u32 %v1811, 7
        %v1813 = vsub.s32 1, %v1812
        %v1814 = vrot.slane %v1803, %v1813
        %v1815 = vmul.f32 %v1810, %v1814
        %v1816 = vadd.f32 %v1809, %v1815
        %v1817 = vld [vmem:[#allocation6 + $0x2] sm:$0xff]
        %v1818 = vlaneseq
        %v1819 = vshrl.u32 %v1818, 7
        %v1820 = vsub.s32 2, %v1819
        %v1821 = vrot.slane %v1803, %v1820
        %v1822 = vmul.f32 %v1817, %v1821
        %v1823 = vadd.f32 %v1816, %v1822
        %v1824 = vld [vmem:[#allocation6 + $0x3] sm:$0xff]
        %v1825 = vlaneseq
        %v1826 = vshrl.u32 %v1825, 7
        %v1827 = vsub.s32 3, %v1826
        %v1828 = vrot.slane %v1803, %v1827
        %v1829 = vmul.f32 %v1824, %v1828
        %v1830 = vadd.f32 %v1823, %v1829
        %v1831 = vld [vmem:[#allocation6 + $0x4] sm:$0xff]
        %v1832 = vlaneseq
        %v1833 = vshrl.u32 %v1832, 7
        %v1834 = vsub.s32 4, %v1833
        %v1835 = vrot.slane %v1803, %v1834
        %v1836 = vmul.f32 %v1831, %v1835
        %v1837 = vadd.f32 %v1830, %v1836
        %v1838 = vadd.f32 %v1837, %v1799
        %1839 = vadd.xlane.f32.xlu0 %v1838
        %v1840 = vpop.xlane.xlu0 %1839
        %v1841 = vmul.f32 %v1840, %v1780
        %v1842 = vsub.f32 %v1838, %v1841
        %v1843 = vmul.f32 %v1842, %v1842
        %1844 = vadd.xlane.f32.xlu0 %v1843
        %v1845 = vpop.xlane.xlu0 %1844
        %v1846 = vmul.f32 %v1845, %v1780
        %v1847 = vadd.f32 %v1846, 1e-05
        %v1848 = vrsqrt.pop %v1847
        %v1849 = vmul.f32 %v1842, %v1848
        %v1850 = vlaneseq
        %v1851 = vshrl.u32 %v1850, 7
        %v1852 = vsub.s32 2, %v1851
        %v1853 = vrot.slane %v1776, %v1852
        %v1854 = vmul.f32 %v1849, %v1853
        %v1855 = vlaneseq
        %v1856 = vshrl.u32 %v1855, 7
        %v1857 = vsub.s32 3, %v1856
        %v1858 = vrot.slane %v1776, %v1857
        %v1859 = vadd.f32 %v1854, %v1858
        %v1860 = vpack.c.bf16 %v1859, %v1859
        %v1861 = vld [vmem:[%s1114] sm:$0xff]
        %v1862 = vld [vmem:[%s1114 + $0x8] sm:$0xff]
        %v1863 = vld [vmem:[%s1114 + $0x10] sm:$0xff]
        %v1864 = vld [vmem:[%s1114 + $0x18] sm:$0xff]
        %v1865 = vld [vmem:[%s1114 + $0x20] sm:$0xff]
        %v1866 = vld [vmem:[%s1114 + $0x28] sm:$0xff]
        %v1867 = vld [vmem:[%s1114 + $0x30] sm:$0xff]
        %v1868 = vld [vmem:[%s1114 + $0x38] sm:$0xff]
        %v1869 = vld [vmem:[%s1114 + $0x40] sm:$0xff]
        %v1870 = vld [vmem:[%s1114 + $0x48] sm:$0xff]
        %v1871 = vld [vmem:[%s1114 + $0x50] sm:$0xff]
        %v1872 = vld [vmem:[%s1114 + $0x58] sm:$0xff]
        %v1873 = vld [vmem:[%s1114 + $0x60] sm:$0xff]
        %v1874 = vld [vmem:[%s1114 + $0x68] sm:$0xff]
        %v1875 = vld [vmem:[%s1114 + $0x70] sm:$0xff]
        %v1876 = vld [vmem:[%s1114 + $0x78] sm:$0xff]
        %v1877 = vld [vmem:[%s933] sm:$0x3]
        %v1879 = vlaneseq
        %v1880 = vshrl.u32 %v1879, 7
        %v1881 = vsub.s32 0, %v1880
        %v1882 = vrot.slane %v1877, %v1881
        %v1883 = vlaneseq
        %v1884 = vshrl.u32 %v1883, 7
        %v1885 = vsub.s32 1, %v1884
        %v1886 = vrot.slane %v1877, %v1885
        %v1905 = vunpack.c.l.b16 %v1861
        %v1906 = vunpack.c.h.b16 %v1861
        %v1907 = vunpack.c.l.b16 %v1862
        %v1908 = vunpack.c.h.b16 %v1862
        %v1909 = vunpack.c.l.b16 %v1863
        %v1910 = vunpack.c.h.b16 %v1863
        %v1911 = vunpack.c.l.b16 %v1864
        %v1912 = vunpack.c.h.b16 %v1864
        %v1913 = vunpack.c.l.b16 %v1865
        %v1914 = vunpack.c.h.b16 %v1865
        %v1915 = vunpack.c.l.b16 %v1866
        %v1916 = vunpack.c.h.b16 %v1866
        %v1917 = vunpack.c.l.b16 %v1867
        %v1918 = vunpack.c.h.b16 %v1867
        %v1919 = vunpack.c.l.b16 %v1868
        %v1920 = vunpack.c.h.b16 %v1868
        %v1921 = vunpack.c.l.b16 %v1869
        %v1922 = vunpack.c.h.b16 %v1869
        %v1923 = vunpack.c.l.b16 %v1870
        %v1924 = vunpack.c.h.b16 %v1870
        %v1925 = vunpack.c.l.b16 %v1871
        %v1926 = vunpack.c.h.b16 %v1871
        %v1927 = vunpack.c.l.b16 %v1872
        %v1928 = vunpack.c.h.b16 %v1872
        %v1929 = vunpack.c.l.b16 %v1873
        %v1930 = vunpack.c.h.b16 %v1873
        %v1931 = vunpack.c.l.b16 %v1874
        %v1932 = vunpack.c.h.b16 %v1874
        %v1933 = vunpack.c.l.b16 %v1875
        %v1934 = vunpack.c.h.b16 %v1875
        %v1935 = vunpack.c.l.b16 %v1876
        %v1936 = vunpack.c.h.b16 %v1876
        %v1937 = vpack.c.b16 %v1907, %v1905
        %v1938 = vpack.c.b16 %v1908, %v1906
        %v1939 = vpack.c.b16 %v1911, %v1909
        %v1940 = vpack.c.b16 %v1912, %v1910
        %v1941 = vpack.c.b16 %v1915, %v1913
        %v1942 = vpack.c.b16 %v1916, %v1914
        %v1943 = vpack.c.b16 %v1919, %v1917
        %v1944 = vpack.c.b16 %v1920, %v1918
        %v1945 = vpack.c.b16 %v1923, %v1921
        %v1946 = vpack.c.b16 %v1924, %v1922
        %v1947 = vpack.c.b16 %v1927, %v1925
        %v1948 = vpack.c.b16 %v1928, %v1926
        %v1949 = vpack.c.b16 %v1931, %v1929
        %v1950 = vpack.c.b16 %v1932, %v1930
        %v1951 = vpack.c.b16 %v1935, %v1933
        %v1952 = vpack.c.b16 %v1936, %v1934
        %1969 = vmatprep.subr.bf16.mxu0 %v1938
        %1970 = vmatpush1.bf16.msra.mxu0 %v1937
        %1971 = vmatprep.subr.bf16.mxu0 %v1940
        %1972 = vmatpush1.bf16.msra.mxu0 %v1939
        %1973 = vmatprep.subr.bf16.mxu0 %v1942
        %1974 = vmatpush1.bf16.msra.mxu0 %v1941
        %1975 = vmatprep.subr.bf16.mxu0 %v1944
        %1976 = vmatpush1.bf16.msra.mxu0 %v1943
        %1977 = vmatprep.subr.bf16.mxu0 %v1946
        %1978 = vmatpush1.bf16.msra.mxu0 %v1945
        %1979 = vmatprep.subr.bf16.mxu0 %v1948
        %1980 = vmatpush1.bf16.msra.mxu0 %v1947
        %1981 = vmatprep.subr.bf16.mxu0 %v1950
        %1982 = vmatpush1.bf16.msra.mxu0 %v1949
        %1983 = vmatprep.subr.bf16.mxu0 %v1952
        %1984 = vmatpush1.bf16.msra.mxu0 %v1951
        %1985 = vmatprep.subr.bf16.mxu0 0
        %1986 = vmatpush1.bf16.msra.mxu0 0
        %1987 = vmatprep.subr.bf16.mxu0 0
        %1988 = vmatpush1.bf16.msra.mxu0 0
        %1989 = vmatprep.subr.bf16.mxu0 0
        %1990 = vmatpush1.bf16.msra.mxu0 0
        %1991 = vmatprep.subr.bf16.mxu0 0
        %1992 = vmatpush1.bf16.msra.mxu0 0
        %1993 = vmatprep.subr.bf16.mxu0 0
        %1994 = vmatpush1.bf16.msra.mxu0 0
        %1995 = vmatprep.subr.bf16.mxu0 0
        %1996 = vmatpush1.bf16.msra.mxu0 0
        %1997 = vmatprep.subr.bf16.mxu0 0
        %1998 = vmatpush1.bf16.msra.mxu0 0
        %1999 = vmatprep.subr.bf16.mxu0 0
        %2000 = vmatpush1.bf16.msra.mxu0 0
        %2001 = vmatprep.mubr.bf16.mxu0 0
        %2002 = vmatmul.mubr.bf16.gmra.mrb[0].mxu0 %v1860
        %v2003 = vpop.f32.mrb[0].mxu0
        %v2004 = vadd.f32 %v1882, %v2003
        %v2005 = vpop.f32.mrb[0].mxu0
        %v2006 = vadd.f32 %v1886, %v2005
        %v2007 = vpop.f32.mrb[0].mxu0
        %v2008 = vpop.f32.mrb[0].mxu0
        %2009 = vdwg.mxu0
        %v2010 = vmax.f32 %v2004, 0.0
        %v2011 = vmax.f32 %v2006, 0.0
        %v2012 = vpack.c.bf16 %v2010, %v2010
        %v2013 = vpack.c.bf16 %v2011, %v2011
        %v2014 = vld [vmem:[%s942] sm:$0xf]
        %v2015 = vld [vmem:[%s942 + $0x4] sm:$0xf]
        %v2016 = vld [vmem:[%s942 + $0x8] sm:$0xf]
        %v2017 = vld [vmem:[%s942 + $0xc] sm:$0xf]
        %v2018 = vld [vmem:[%s942 + $0x10] sm:$0xf]
        %v2019 = vld [vmem:[%s942 + $0x14] sm:$0xf]
        %v2020 = vld [vmem:[%s942 + $0x18] sm:$0xf]
        %v2021 = vld [vmem:[%s942 + $0x1c] sm:$0xf]
        %v2022 = vld [vmem:[%s942 + $0x20] sm:$0xf]
        %v2023 = vld [vmem:[%s942 + $0x24] sm:$0xf]
        %v2024 = vld [vmem:[%s942 + $0x28] sm:$0xf]
        %v2025 = vld [vmem:[%s942 + $0x2c] sm:$0xf]
        %v2026 = vld [vmem:[%s942 + $0x30] sm:$0xf]
        %v2027 = vld [vmem:[%s942 + $0x34] sm:$0xf]
        %v2028 = vld [vmem:[%s942 + $0x38] sm:$0xf]
        %v2029 = vld [vmem:[%s942 + $0x3c] sm:$0xf]
        %v2030 = vld [vmem:[%s942 + $0x40] sm:$0xf]
        %v2031 = vld [vmem:[%s942 + $0x44] sm:$0xf]
        %v2032 = vld [vmem:[%s942 + $0x48] sm:$0xf]
        %v2033 = vld [vmem:[%s942 + $0x4c] sm:$0xf]
        %v2034 = vld [vmem:[%s942 + $0x50] sm:$0xf]
        %v2035 = vld [vmem:[%s942 + $0x54] sm:$0xf]
        %v2036 = vld [vmem:[%s942 + $0x58] sm:$0xf]
        %v2037 = vld [vmem:[%s942 + $0x5c] sm:$0xf]
        %v2038 = vld [vmem:[%s942 + $0x60] sm:$0xf]
        %v2039 = vld [vmem:[%s942 + $0x64] sm:$0xf]
        %v2040 = vld [vmem:[%s942 + $0x68] sm:$0xf]
        %v2041 = vld [vmem:[%s942 + $0x6c] sm:$0xf]
        %v2042 = vld [vmem:[%s942 + $0x70] sm:$0xf]
        %v2043 = vld [vmem:[%s942 + $0x74] sm:$0xf]
        %v2044 = vld [vmem:[%s942 + $0x78] sm:$0xf]
        %v2045 = vld [vmem:[%s942 + $0x7c] sm:$0xf]
        %v2046 = vld [vmem:[%s950] sm:$0x1]
        %v2048 = vlaneseq
        %v2049 = vshrl.u32 %v2048, 7
        %v2050 = vsub.s32 0, %v2049
        %v2051 = vrot.slane %v2046, %v2050
        %v2085 = vunpack.c.l.b16 %v2014
        %v2086 = vunpack.c.l.b16 %v2015
        %v2087 = vunpack.c.l.b16 %v2016
        %v2088 = vunpack.c.l.b16 %v2017
        %v2089 = vunpack.c.l.b16 %v2018
        %v2090 = vunpack.c.l.b16 %v2019
        %v2091 = vunpack.c.l.b16 %v2020
        %v2092 = vunpack.c.l.b16 %v2021
        %v2093 = vunpack.c.l.b16 %v2022
        %v2094 = vunpack.c.l.b16 %v2023
        %v2095 = vunpack.c.l.b16 %v2024
        %v2096 = vunpack.c.l.b16 %v2025
        %v2097 = vunpack.c.l.b16 %v2026
        %v2098 = vunpack.c.l.b16 %v2027
        %v2099 = vunpack.c.l.b16 %v2028
        %v2100 = vunpack.c.l.b16 %v2029
        %v2101 = vunpack.c.l.b16 %v2030
        %v2102 = vunpack.c.l.b16 %v2031
        %v2103 = vunpack.c.l.b16 %v2032
        %v2104 = vunpack.c.l.b16 %v2033
        %v2105 = vunpack.c.l.b16 %v2034
        %v2106 = vunpack.c.l.b16 %v2035
        %v2107 = vunpack.c.l.b16 %v2036
        %v2108 = vunpack.c.l.b16 %v2037
        %v2109 = vunpack.c.l.b16 %v2038
        %v2110 = vunpack.c.l.b16 %v2039
        %v2111 = vunpack.c.l.b16 %v2040
        %v2112 = vunpack.c.l.b16 %v2041
        %v2113 = vunpack.c.l.b16 %v2042
        %v2114 = vunpack.c.l.b16 %v2043
        %v2115 = vunpack.c.l.b16 %v2044
        %v2116 = vunpack.c.l.b16 %v2045
        %v2117 = vpack.c.b16 %v2086, %v2085
        %v2118 = vpack.c.b16 %v2088, %v2087
        %v2119 = vpack.c.b16 %v2090, %v2089
        %v2120 = vpack.c.b16 %v2092, %v2091
        %v2121 = vpack.c.b16 %v2094, %v2093
        %v2122 = vpack.c.b16 %v2096, %v2095
        %v2123 = vpack.c.b16 %v2098, %v2097
        %v2124 = vpack.c.b16 %v2100, %v2099
        %v2125 = vpack.c.b16 %v2102, %v2101
        %v2126 = vpack.c.b16 %v2104, %v2103
        %v2127 = vpack.c.b16 %v2106, %v2105
        %v2128 = vpack.c.b16 %v2108, %v2107
        %v2129 = vpack.c.b16 %v2110, %v2109
        %v2130 = vpack.c.b16 %v2112, %v2111
        %v2131 = vpack.c.b16 %v2114, %v2113
        %v2132 = vpack.c.b16 %v2116, %v2115
        %2149 = vmatprep.subr.bf16.mxu0 0
        %2150 = vmatpush1.bf16.msra.mxu0 %v2117
        %2151 = vmatprep.subr.bf16.mxu0 0
        %2152 = vmatpush1.bf16.msra.mxu0 %v2118
        %2153 = vmatprep.subr.bf16.mxu0 0
        %2154 = vmatpush1.bf16.msra.mxu0 %v2119
        %2155 = vmatprep.subr.bf16.mxu0 0
        %2156 = vmatpush1.bf16.msra.mxu0 %v2120
        %2157 = vmatprep.subr.bf16.mxu0 0
        %2158 = vmatpush1.bf16.msra.mxu0 %v2121
        %2159 = vmatprep.subr.bf16.mxu0 0
        %2160 = vmatpush1.bf16.msra.mxu0 %v2122
        %2161 = vmatprep.subr.bf16.mxu0 0
        %2162 = vmatpush1.bf16.msra.mxu0 %v2123
        %2163 = vmatprep.subr.bf16.mxu0 0
        %2164 = vmatpush1.bf16.msra.mxu0 %v2124
        %2165 = vmatprep.subr.bf16.mxu0 0
        %2166 = vmatpush1.bf16.msra.mxu0 %v2125
        %2167 = vmatprep.subr.bf16.mxu0 0
        %2168 = vmatpush1.bf16.msra.mxu0 %v2126
        %2169 = vmatprep.subr.bf16.mxu0 0
        %2170 = vmatpush1.bf16.msra.mxu0 %v2127
        %2171 = vmatprep.subr.bf16.mxu0 0
        %2172 = vmatpush1.bf16.msra.mxu0 %v2128
        %2173 = vmatprep.subr.bf16.mxu0 0
        %2174 = vmatpush1.bf16.msra.mxu0 %v2129
        %2175 = vmatprep.subr.bf16.mxu0 0
        %2176 = vmatpush1.bf16.msra.mxu0 %v2130
        %2177 = vmatprep.subr.bf16.mxu0 0
        %2178 = vmatpush1.bf16.msra.mxu0 %v2131
        %2179 = vmatprep.subr.bf16.mxu0 0
        %2180 = vmatpush1.bf16.msra.mxu0 %v2132
        %2181 = vmatprep.mubr.bf16.mxu0 %v2013
        %2182 = vmatmul.mubr.bf16.gmra.mrb[0].mxu0 %v2012
        %v2183 = vpop.f32.mrb[0].mxu0
        %v2184 = vadd.f32 %v2051, %v2183
        %v2185 = vpop.f32.mrb[0].mxu0
        %v2186 = vpop.f32.mrb[0].mxu0
        %v2187 = vpop.f32.mrb[0].mxu0
        %2188 = vdwg.mxu0
        %v2189 = vadd.f32 %v2184, %v1859
        %2190 = vadd.xlane.f32.xlu0 %v2189
        %v2191 = vpop.xlane.xlu0 %2190
        %v2192 = vmul.f32 %v2191, %v1780
        %v2193 = vsub.f32 %v2189, %v2192
        %v2194 = vmul.f32 %v2193, %v2193
        %2195 = vadd.xlane.f32.xlu0 %v2194
        %v2196 = vpop.xlane.xlu0 %2195
        %v2197 = vmul.f32 %v2196, %v1780
        %v2198 = vadd.f32 %v2197, 1e-05
        %v2199 = vrsqrt.pop %v2198
        %v2200 = vmul.f32 %v2193, %v2199
        %v2201 = vlaneseq
        %v2202 = vshrl.u32 %v2201, 7
        %v2203 = vsub.s32 4, %v2202
        %v2204 = vrot.slane %v1776, %v2203
        %v2205 = vmul.f32 %v2200, %v2204
        %v2206 = vlaneseq
        %v2207 = vshrl.u32 %v2206, 7
        %v2208 = vsub.s32 5, %v2207
        %v2209 = vrot.slane %v1776, %v2208
        %v2210 = vadd.f32 %v2205, %v2209
        %2211 = vst [vmem:[#allocation2] sm:$0xff] %v2210
        %v2212 = vrot.slane %v2210, 4
        %v2213 = vadd.f32 %v2210, %v2212
        %v2214 = vrot.slane %v2213, 2
        %v2215 = vadd.f32 %v2213, %v2214
        %v2216 = vrot.slane %v2215, 1
        %v2217 = vadd.f32 %v2215, %v2216
        %v2218 = vrcp.pop 8.0
        %v2219 = vmul.f32 %v2217, %v2218
        %v2220 = vld [vmem:[%s1118 + $0x1] sm:$0x7]
        %2221 = vst [vmem:[%s1134] sm:$0x7] %v2220
        %2222 = vst [vmem:[%s1134 + $0x3] sm:$0x1] %v2219
        %2223 = vst [vmem:[%s1138] sm:$0xff] %v1488
        %2224 = vst [vmem:[%s1142] sm:$0xff] %v1528
        %v2225 = vld [vmem:[#allocation6 + $0x8] sm:$0xf]
        %2226 = vst [vmem:[%s1146] sm:$0xf] %v2225
        %p2227 = scmp.eq.s32.totalorder %s40, 1
        // Predicated region
        $region145: #{encoder_ctc_forward.1} parent=99 // pred_check
          %p2228 = pneg %p2227
        $region146: #{encoder_ctc_forward.1} parent=99 // pred_check_branch
          %2230 = sbr.rel (%p2228) target = $region148
        $region147: #{encoder_ctc_forward.1} parent=99 // pred_region
          %v2231 = vpack.c.bf16 %v2210, %v2210
          %v2232 = vld [vmem:[#allocation18] sm:$0xff]
          %v2233 = vld [vmem:[#allocation18 + $0x8] sm:$0xff]
          %v2234 = vld [vmem:[#allocation18 + $0x10] sm:$0xff]
          %v2235 = vld [vmem:[#allocation18 + $0x18] sm:$0xff]
          %v2236 = vld [vmem:[#allocation18 + $0x20] sm:$0xff]
          %v2237 = vld [vmem:[#allocation18 + $0x28] sm:$0xff]
          %v2238 = vld [vmem:[#allocation18 + $0x30] sm:$0xff]
          %v2239 = vld [vmem:[#allocation18 + $0x38] sm:$0xff]
          %v2240 = vld [vmem:[#allocation18 + $0x40] sm:$0xff]
          %v2241 = vld [vmem:[#allocation18 + $0x48] sm:$0xff]
          %v2242 = vld [vmem:[#allocation18 + $0x50] sm:$0xff]
          %v2243 = vld [vmem:[#allocation18 + $0x58] sm:$0xff]
          %v2244 = vld [vmem:[#allocation18 + $0x60] sm:$0xff]
          %v2245 = vld [vmem:[#allocation18 + $0x68] sm:$0xff]
          %v2246 = vld [vmem:[#allocation18 + $0x70] sm:$0xff]
          %v2247 = vld [vmem:[#allocation18 + $0x78] sm:$0xff]
          %v2248 = vld [vmem:[#allocation19] sm:$0x3]
          %v2250 = vlaneseq
          %v2251 = vshrl.u32 %v2250, 7
          %v2252 = vsub.s32 0, %v2251
          %v2253 = vrot.slane %v2248, %v2252
          %v2254 = vlaneseq
          %v2255 = vshrl.u32 %v2254, 7
          %v2256 = vsub.s32 1, %v2255
          %v2257 = vrot.slane %v2248, %v2256
          %v2276 = vunpack.c.l.b16 %v2232
          %v2277 = vunpack.c.h.b16 %v2232
          %v2278 = vunpack.c.l.b16 %v2233
          %v2279 = vunpack.c.h.b16 %v2233
          %v2280 = vunpack.c.l.b16 %v2234
          %v2281 = vunpack.c.h.b16 %v2234
          %v2282 = vunpack.c.l.b16 %v2235
          %v2283 = vunpack.c.h.b16 %v2235
          %v2284 = vunpack.c.l.b16 %v2236
          %v2285 = vunpack.c.h.b16 %v2236
          %v2286 = vunpack.c.l.b16 %v2237
          %v2287 = vunpack.c.h.b16 %v2237
          %v2288 = vunpack.c.l.b16 %v2238
          %v2289 = vunpack.c.h.b16 %v2238
          %v2290 = vunpack.c.l.b16 %v2239
          %v2291 = vunpack.c.h.b16 %v2239
          %v2292 = vunpack.c.l.b16 %v2240
          %v2293 = vunpack.c.h.b16 %v2240
          %v2294 = vunpack.c.l.b16 %v2241
          %v2295 = vunpack.c.h.b16 %v2241
          %v2296 = vunpack.c.l.b16 %v2242
          %v2297 = vunpack.c.h.b16 %v2242
          %v2298 = vunpack.c.l.b16 %v2243
          %v2299 = vunpack.c.h.b16 %v2243
          %v2300 = vunpack.c.l.b16 %v2244
          %v2301 = vunpack.c.h.b16 %v2244
          %v2302 = vunpack.c.l.b16 %v2245
          %v2303 = vunpack.c.h.b16 %v2245
          %v2304 = vunpack.c.l.b16 %v2246
          %v2305 = vunpack.c.h.b16 %v2246
          %v2306 = vunpack.c.l.b16 %v2247
          %v2307 = vunpack.c.h.b16 %v2247
          %v2308 = vpack.c.b16 %v2278, %v2276
          %v2309 = vpack.c.b16 %v2279, %v2277
          %v2310 = vpack.c.b16 %v2282, %v2280
          %v2311 = vpack.c.b16 %v2283, %v2281
          %v2312 = vpack.c.b16 %v2286, %v2284
          %v2313 = vpack.c.b16 %v2287, %v2285
          %v2314 = vpack.c.b16 %v2290, %v2288
          %v2315 = vpack.c.b16 %v2291, %v2289
          %v2316 = vpack.c.b16 %v2294, %v2292
          %v2317 = vpack.c.b16 %v2295, %v2293
          %v2318 = vpack.c.b16 %v2298, %v2296
          %v2319 = vpack.c.b16 %v2299, %v2297
          %v2320 = vpack.c.b16 %v2302, %v2300
          %v2321 = vpack.c.b16 %v2303, %v2301
          %v2322 = vpack.c.b16 %v2306, %v2304
          %v2323 = vpack.c.b16 %v2307, %v2305
          %2340 = vmatprep.subr.bf16.mxu0 %v2309
          %2341 = vmatpush1.bf16.msra.mxu0 %v2308
          %2342 = vmatprep.subr.bf16.mxu0 %v2311
          %2343 = vmatpush1.bf16.msra.mxu0 %v2310
          %2344 = vmatprep.subr.bf16.mxu0 %v2313
          %2345 = vmatpush1.bf16.msra.mxu0 %v2312
          %2346 = vmatprep.subr.bf16.mxu0 %v2315
          %2347 = vmatpush1.bf16.msra.mxu0 %v2314
          %2348 = vmatprep.subr.bf16.mxu0 %v2317
          %2349 = vmatpush1.bf16.msra.mxu0 %v2316
          %2350 = vmatprep.subr.bf16.mxu0 %v2319
          %2351 = vmatpush1.bf16.msra.mxu0 %v2318
          %2352 = vmatprep.subr.bf16.mxu0 %v2321
          %2353 = vmatpush1.bf16.msra.mxu0 %v2320
          %2354 = vmatprep.subr.bf16.mxu0 %v2323
          %2355 = vmatpush1.bf16.msra.mxu0 %v2322
          %2356 = vmatprep.subr.bf16.mxu0 0
          %2357 = vmatpush1.bf16.msra.mxu0 0
          %2358 = vmatprep.subr.bf16.mxu0 0
          %2359 = vmatpush1.bf16.msra.mxu0 0
          %2360 = vmatprep.subr.bf16.mxu0 0
          %2361 = vmatpush1.bf16.msra.mxu0 0
          %2362 = vmatprep.subr.bf16.mxu0 0
          %2363 = vmatpush1.bf16.msra.mxu0 0
          %2364 = vmatprep.subr.bf16.mxu0 0
          %2365 = vmatpush1.bf16.msra.mxu0 0
          %2366 = vmatprep.subr.bf16.mxu0 0
          %2367 = vmatpush1.bf16.msra.mxu0 0
          %2368 = vmatprep.subr.bf16.mxu0 0
          %2369 = vmatpush1.bf16.msra.mxu0 0
          %2370 = vmatprep.subr.bf16.mxu0 0
          %2371 = vmatpush1.bf16.msra.mxu0 0
          %2372 = vmatprep.mubr.bf16.mxu0 0
          %2373 = vmatmul.mubr.bf16.gmra.mrb[0].mxu0 %v2231
          %v2374 = vpop.f32.mrb[0].mxu0
          %v2375 = vadd.f32 %v2253, %v2374
          %v2376 = vpop.f32.mrb[0].mxu0
          %v2377 = vadd.f32 %v2257, %v2376
          %v2378 = vpop.f32.mrb[0].mxu0
          %v2379 = vpop.f32.mrb[0].mxu0
          %2380 = vdwg.mxu0
          %v2381 = vmax.f32 %v2375, %v2377
          %2382 = vmax.xlane.f32.xlu0 %v2381
          %v2383 = vpop.xlane.xlu0 %2382
          %v2384 = vsub.f32 %v2375, %v2383
          %v2385 = vsub.f32 %v2377, %v2383
          %v2386 = vmul.f32 %v2384, 1.442695
          %v2387 = vpow.pop %v2386
          %v2388 = vmul.f32 %v2385, 1.442695
          %v2389 = vpow.pop %v2388
          %v2390 = vadd.f32 %v2387, %v2389
          %2391 = vadd.xlane.f32.xlu0 %v2390
          %v2392 = vpop.xlane.xlu0 %2391
          %v2393 = vlog2.pop %v2392
          %v2394 = vmul.f32 %v2393, 0.6931472
          %v2395 = vsub.f32 %v2384, %v2394
          %v2396 = vsub.f32 %v2385, %v2394
          %2397 = vst [vmem:[#allocation21] sm:$0xff] %v2395
          %2398 = vst [vmem:[#allocation21 + $0x8] sm:$0xff] %v2396
        $region148: #{encoder_ctc_forward.1} parent=99 // pred_fallthru
          _
        %p2399 = scmp.lt.s32.totalorder %s40, 1
        %s2400 = scalar_select %p2399, %s40, 1
        %s2401 = smul.addr %s2400, 4
        %s2402 = scalar_lea.vmem %s21, %s2401
        %p2403 = scmp.lt.s32.totalorder %s40, 1
        %s2404 = scalar_select %p2403, %s40, 1
        %s2405 = smul.addr %s2404, 8
        %s2406 = scalar_lea.vmem %s22, %s2405
        %p2407 = scmp.lt.s32.totalorder %s40, 1
        %s2408 = scalar_select %p2407, %s40, 1
        %s2409 = smul.addr %s2408, 8
        %s2410 = scalar_lea.vmem %s23, %s2409
        %p2411 = scmp.lt.s32.totalorder %s40, 1
        %s2412 = scalar_select %p2411, %s40, 1
        %s2413 = smul.addr %s2412, 4
        %s2414 = scalar_lea.vmem %s24, %s2413
        // Predicated region
        $region149: #{encoder_ctc_forward.1} parent=99 // pred_check
          %p2415 = pneg %p543
        $region150: #{encoder_ctc_forward.1} parent=99 // pred_check_branch
          %2417 = sbr.rel (%p2415) target = $region152
        $region151: #{encoder_ctc_forward.1} parent=99 // pred_region
          %s2419 = ssub.s32 256, 256
          %2420 = vsyncadd [#allocation9], %s2419
          %s2422 = sshll.u32 [#allocation21], 4
          %s2423 = int_to_ptr.vmem [resolvable:$true] %s2422
          %2425 = dma.vmem_to_hbm [thread:$0]  %s2423, 256, %s20, [#allocation9]
        $region152: #{encoder_ctc_forward.1} parent=99 // pred_fallthru
          _
        // Predicated region
        $region153: #{encoder_ctc_forward.1} parent=99 // pred_check
          %p2426 = pneg %p569
        $region154: #{encoder_ctc_forward.1} parent=99 // pred_check_branch
          %2428 = sbr.rel (%p2426) target = $region156
        $region155: #{encoder_ctc_forward.1} parent=99 // pred_region
          _
        $region156: #{encoder_ctc_forward.1} parent=99 // pred_fallthru
          _
        // Predicated region
        $region157: #{encoder_ctc_forward.1} parent=99 // pred_check
          %p2429 = pneg %p595
        $region158: #{encoder_ctc_forward.1} parent=99 // pred_check_branch
          %2431 = sbr.rel (%p2429) target = $region160
        $region159: #{encoder_ctc_forward.1} parent=99 // pred_region
          _
        $region160: #{encoder_ctc_forward.1} parent=99 // pred_fallthru
          _
        // Predicated region
        $region161: #{encoder_ctc_forward.1} parent=99 // pred_check
          %p2432 = pneg %p621
        $region162: #{encoder_ctc_forward.1} parent=99 // pred_check_branch
          %2434 = sbr.rel (%p2432) target = $region164
        $region163: #{encoder_ctc_forward.1} parent=99 // pred_region
          _
        $region164: #{encoder_ctc_forward.1} parent=99 // pred_fallthru
          _
        // Predicated region
        $region165: #{encoder_ctc_forward.1} parent=99 // pred_check
          %p2435 = pneg %p647
        $region166: #{encoder_ctc_forward.1} parent=99 // pred_check_branch
          %2437 = sbr.rel (%p2435) target = $region168
        $region167: #{encoder_ctc_forward.1} parent=99 // pred_region
          _
        $region168: #{encoder_ctc_forward.1} parent=99 // pred_fallthru
          _
        // Predicated region
        $region169: #{encoder_ctc_forward.1} parent=99 // pred_check
          %p2438 = pneg %p543
        $region170: #{encoder_ctc_forward.1} parent=99 // pred_check_branch
          %2440 = sbr.rel (%p2438) target = $region172
        $region171: #{encoder_ctc_forward.1} parent=99 // pred_region
          %2441 = dma.done [#allocation9], 256
        $region172: #{encoder_ctc_forward.1} parent=99 // pred_fallthru
          _
      $region100: #{encoder_ctc_forward.1} parent=5 // pred_fallthru
        _
      %p2442 = scmp.le.s32.totalorder 2, %s35
      // Predicated region
      $region173: #{encoder_ctc_forward.1} parent=5 // pred_check
        %p2443 = pneg %p2442
      $region174: #{encoder_ctc_forward.1} parent=5 // pred_check_branch
        %2445 = sbr.rel (%p2443) target = $region176
      $region175: #{encoder_ctc_forward.1} parent=5 // pred_region
        %s2446 = ssub.s32 %s35, 2
        // Predicated region
        $region177: #{encoder_ctc_forward.1} parent=175 // pred_check
          %p2447 = pneg %p575
        $region178: #{encoder_ctc_forward.1} parent=175 // pred_check_branch
          %2449 = sbr.rel (%p2447) target = $region180
        $region179: #{encoder_ctc_forward.1} parent=175 // pred_region
          %p2450 = scmp.lt.s32.totalorder %s41, 1
          %s2451 = scalar_select %p2450, %s41, 1
          %s2452 = smul.addr %s2451, 4
          %s2453 = scalar_lea.vmem %s21, %s2452
        $region180: #{encoder_ctc_forward.1} parent=175 // pred_fallthru
          _
        // Predicated region
        $region181: #{encoder_ctc_forward.1} parent=175 // pred_check
          %p2454 = pneg %p601
        $region182: #{encoder_ctc_forward.1} parent=175 // pred_check_branch
          %2456 = sbr.rel (%p2454) target = $region184
        $region183: #{encoder_ctc_forward.1} parent=175 // pred_region
          %p2457 = scmp.lt.s32.totalorder %s41, 1
          %s2458 = scalar_select %p2457, %s41, 1
          %s2459 = smul.addr %s2458, 8
          %s2460 = scalar_lea.vmem %s22, %s2459
        $region184: #{encoder_ctc_forward.1} parent=175 // pred_fallthru
          _
        // Predicated region
        $region185: #{encoder_ctc_forward.1} parent=175 // pred_check
          %p2461 = pneg %p627
        $region186: #{encoder_ctc_forward.1} parent=175 // pred_check_branch
          %2463 = sbr.rel (%p2461) target = $region188
        $region187: #{encoder_ctc_forward.1} parent=175 // pred_region
          %p2464 = scmp.lt.s32.totalorder %s41, 1
          %s2465 = scalar_select %p2464, %s41, 1
          %s2466 = smul.addr %s2465, 8
          %s2467 = scalar_lea.vmem %s23, %s2466
        $region188: #{encoder_ctc_forward.1} parent=175 // pred_fallthru
          _
        // Predicated region
        $region189: #{encoder_ctc_forward.1} parent=175 // pred_check
          %p2468 = pneg %p653
        $region190: #{encoder_ctc_forward.1} parent=175 // pred_check_branch
          %2470 = sbr.rel (%p2468) target = $region192
        $region191: #{encoder_ctc_forward.1} parent=175 // pred_region
          %p2471 = scmp.lt.s32.totalorder %s41, 1
          %s2472 = scalar_select %p2471, %s41, 1
          %s2473 = smul.addr %s2472, 4
          %s2474 = scalar_lea.vmem %s24, %s2473
        $region192: #{encoder_ctc_forward.1} parent=175 // pred_fallthru
          _
      $region176: #{encoder_ctc_forward.1} parent=5 // pred_fallthru
        _
    $region6: #{encoder_ctc_forward.1} parent=1 // loop_footer
      %s39 = sadd.s32 1, %s35
    $region7: #{encoder_ctc_forward.1} parent=1 // loop_footer_branch
      %34 = sbr.rel target = $region3
    $region8: #{encoder_ctc_forward.1} parent=1 // loop_exit
      _
    %2475 = vsyncpa [#allocation8], 1
    %s2476 = scalar_lea.sflag [#allocation8], 1
    %2477 = vsyncpa %s2476, 1
    %2478 = vsyncpa [#allocation11], 1
    %2479 = vsyncpa [#allocation20], 1
    %2480 = vsyncpa [#allocation9], 1
    %s2481 = scalar_lea.sflag [#allocation9], 1
    %2482 = vsyncpa %s2481, 1

</llo_original>
